<compile_context>
chip_gen: v5e
topology: v5e:2x2
jax: 0.10.0
libtpu: 0.0.40
codegen_flags: <defaults>
</compile_context>

<pallas_src>
import functools

import numpy as np
import jax
import jax.numpy as jnp
from jax.experimental import pallas as pl
from jax.experimental.pallas import tpu as pltpu


def _full_spec(shape):
    nd = len(shape)
    return pl.BlockSpec(shape, lambda i: (0,) * nd)


_CP = pltpu.CompilerParams(dimension_semantics=("arbitrary",))


# ----------------------------- fused forward kernel ------------------------ #

def _tpc_fused_kernel(*refs, F, ks, n_layers):
    dot = functools.partial(jnp.dot, preferred_element_type=jnp.float32)

    x_tm = refs[0][...]          # (N, 2F+1)  time-major raw input  (== x_orig)
    flat_rep = refs[1][...]      # (N, nf)    static features repeated over time
    sel0 = refs[2][...]          # (2F+1, 2F) value/mask interleave selector
    hb = 3 + 6 * n_layers
    wl = refs[hb + 0][...]       # (los_in, L) to_los weight (pre-transposed)
    bl = refs[hb + 1][...]       # (1, L)
    bn_s = refs[hb + 2][...]     # (1, L)     folded BN scale = gamma * rsqrt(var+eps)
    bn_b = refs[hb + 3][...]     # (1, L)     folded BN shift = beta - mean*scale
    wh = refs[hb + 4][...]       # (L, 2)     [los | mort] head weights
    bh = refs[hb + 5][...]       # (1, 2)
    los_ref = refs[hb + 6]       # (N, 1)
    mort_ref = refs[hb + 7]      # (N, 1)

    x_orig = x_tm
    ps_pieces = [x_tm[:, 1:1 + F]]          # point_skip kept as a list of column blocks
    cur = dot(x_tm, sel0)                   # (N, 2F) = [v0, m0, v1, m1, ...]
    prev_conv = None
    prev_lin = None

    for i in range(n_layers):
        base = 3 + 6 * i
        wc3 = refs[base + 0][...]           # (ks, Cin, G*K)  per-tap block-diag conv weight
        bc = refs[base + 1][...]            # (1, G*K)
        smat = refs[base + 2][...]          # (ks-1, N, N)    causal time-shift matrices
        wp = refs[base + 3][...]            # (point_in, P)   pointwise weight (pre-transposed)
        bp = refs[base + 4][...]            # (1, P)
        sel = refs[base + 5][...]           # (G + G*K + P, (G+P)*(K+1)) interleave selector

        # Grouped dilated causal Conv1d:  conv = sum_j S_{s_j} @ (cur @ Wc_j) + b
        conv = dot(cur, wc3[ks - 1]) + bc                     # tap with zero time shift
        for j in range(ks - 1):
            conv = conv + dot(smat[j], dot(cur, wc3[j]))      # (N, G*K)

        # Pointwise Linear on cat(prev_conv, prev_lin, x_orig, flat): sum of partial
        # matmuls against row blocks of the weight (no in-kernel concatenate).
        xp = bp
        off = 0
        for piece in (prev_conv, prev_lin, x_orig, flat_rep):
            if piece is None:
                continue
            w = piece.shape[1]
            xp = xp + dot(piece, wp[off:off + w, :])
            off += w                                          # xp: (N, P)

        # point_skip grows by the previous layer's pointwise output.
        if prev_lin is not None:
            ps_pieces.append(prev_lin)

        # next_x = relu( [point_skip | conv | x_point] @ Sel ): Sel copies / duplicates
        # columns into the (G+P)*(K+1) layout the next layer's grouped conv expects.
        nxt = None
        off = 0
        for piece in ps_pieces + [conv, xp]:
            w = piece.shape[1]
            contrib = dot(piece, sel[off:off + w, :])
            nxt = contrib if nxt is None else nxt + contrib
            off += w
        cur = jnp.maximum(nxt, 0.0)                           # (N, (G+P)*(K+1))
        prev_conv, prev_lin = conv, xp

    # Head: to_los + BatchNorm (eval, folded) + ReLU + exp/hardtanh (los) + sigmoid (mort).
    nf = flat_rep.shape[1]
    h = dot(flat_rep, wl[0:nf, :]) + dot(cur, wl[nf:, :]) + bl
    h = jnp.maximum(h * bn_s + bn_b, 0.0)                     # (N, L)
    logits = dot(h, wh) + bh                                  # (N, 2)
    # hardtanh(exp(x), 1/48, 100): clamp the exponent first so exp never overflows.
    los_ref[...] = jnp.clip(jnp.exp(jnp.minimum(logits[:, 0:1], 5.0)), 1.0 / 48.0, 100.0)
    mort_ref[...] = 1.0 / (1.0 + jnp.exp(-logits[:, 1:2]))


# ------------------------------ model config ------------------------------- #

def make_cfg():
    return dict(num_features=4, no_flat_features=3, num_layers=3, kernel_size=3,
                temp_kernels=3, point_size=2, last_size=8, add_features=1,
                task='multi', time_before_pred=5)


def layer_dims(cfg):
    F, K, P, ks = cfg['num_features'], cfg['temp_kernels'], cfg['point_size'], cfg['kernel_size']
    nf, add = cfg['no_flat_features'], cfg['add_features']
    dims, Z, Y, Zcumm = [], 0, 0, 0
    for i in range(cfg['num_layers']):
        if i < 1:
            dilation, cn_input = 1, 2 * F
        else:
            dilation, cn_input = i * (ks - 1), (F + Zcumm) * (Y + 1)
        G = F + Zcumm
        dims.append(dict(dilation=dilation, G=G, Cg=cn_input // G,
                         point_in=(F + (Zcumm - Z)) * Y + Z + 2 * F + add + nf))
        Y, Z = K, P
        Zcumm += P
    los_in = (F + Zcumm) * (1 + Y) + nf
    return dims, los_in


def init_params(cfg, key):
    F, K, P, ks = cfg['num_features'], cfg['temp_kernels'], cfg['point_size'], cfg['kernel_size']
    dims, los_in = layer_dims(cfg)
    params = {}
    for i, d in enumerate(dims):
        key, k1, k2, k3, k4 = jax.random.split(key, 5)
        params[f'tcn_w_{i}'] = 0.2 * jax.random.normal(k1, (d['G'], K, d['Cg'], ks), jnp.float32)
        params[f'tcn_b_{i}'] = 0.1 * jax.random.normal(k2, (d['G'], K), jnp.float32)
        params[f'point_w_{i}'] = 0.2 * jax.random.normal(k3, (P, d['point_in']), jnp.float32)
        params[f'point_b_{i}'] = 0.1 * jax.random.normal(k4, (P,), jnp.float32)
    key, k1, k2, k3, k4, k5, k6, k7, k8 = jax.random.split(key, 9)
    L = cfg['last_size']
    params['to_los_w'] = 0.2 * jax.random.normal(k1, (L, los_in), jnp.float32)
    params['to_los_b'] = 0.1 * jax.random.normal(k2, (L,), jnp.float32)
    params['bn_gamma'] = 1.0 + 0.1 * jax.random.normal(k3, (L,), jnp.float32)
    params['bn_beta'] = 0.1 * jax.random.normal(k4, (L,), jnp.float32)
    params['bn_mean'] = 0.1 * jax.random.normal(k5, (L,), jnp.float32)
    params['bn_var'] = 1.0 + jax.nn.softplus(jax.random.normal(k6, (L,), jnp.float32))
    params['los_w'] = 0.2 * jax.random.normal(k7, (1, L), jnp.float32)
    params['los_b'] = jnp.zeros((1,), jnp.float32)
    params['mort_w'] = 0.2 * jax.random.normal(k8, (1, L), jnp.float32)
    params['mort_b'] = jnp.zeros((1,), jnp.float32)
    return params, dims, los_in


def prepare_params(params, cfg, dims, B, T):
    """One-time host-side re-layout of the PyTorch-style parameters for the fused kernel."""
    F, K, P, ks = cfg['num_features'], cfg['temp_kernels'], cfg['point_size'], cfg['kernel_size']
    L = cfg['last_size']
    N = B * T
    pp = {}

    # value/mask interleave selector: x_tm (N, 2F+1) @ sel0 -> (N, 2F) = [v0,m0,v1,m1,...]
    sel0 = np.zeros((2 * F + 1, 2 * F), np.float32)
    for f in range(F):
        sel0[1 + f, 2 * f] = 1.0
        sel0[1 + F + f, 2 * f + 1] = 1.0
    pp['sel0'] = jnp.asarray(sel0)

    for i, d in enumerate(dims):
        G, Cg, dil = d['G'], d['Cg'], d['dilation']
        Cin = G * Cg
        w = np.asarray(params[f'tcn_w_{i}'])                  # (G, K, Cg, ks)
        wc3 = np.zeros((ks, Cin, G * K), np.float32)          # per-tap block-diagonal weight
        for j in range(ks):
            for g in range(G):
                for k in range(K):
                    for c in range(Cg):
                        wc3[j, g * Cg + c, g * K + k] = w[g, k, c, j]
        pp[f'wc_{i}'] = jnp.asarray(wc3)
        pp[f'bc_{i}'] = jnp.asarray(np.asarray(params[f'tcn_b_{i}']).reshape(1, G * K))

        # causal shift matrices: (S_s @ x)[b*T+t] = x[b*T+t-s] if t >= s else 0
        smat = np.zeros((ks - 1, N, N), np.float32)
        for j in range(ks - 1):
            s = (ks - 1 - j) * dil
            for r in range(N):
                if (r % T) >= s:
                    smat[j, r, r - s] = 1.0
        pp[f'smat_{i}'] = jnp.asarray(smat)

        pp[f'wp_{i}'] = jnp.asarray(np.asarray(params[f'point_w_{i}']).T)   # (point_in, P)
        pp[f'bp_{i}'] = jnp.asarray(np.asarray(params[f'point_b_{i}']).reshape(1, P))

        # selector assembling relu([point_skip | conv | x_point]) into the next layer layout
        nin = G + G * K + P
        nout = (G + P) * (K + 1)
        sel = np.zeros((nin, nout), np.float32)
        for g in range(G):
            sel[g, g * (K + 1)] = 1.0                          # point_skip column g
            for k in range(K):
                sel[G + g * K + k, g * (K + 1) + 1 + k] = 1.0  # conv column g*K+k
        for p in range(P):
            for r in range(K + 1):
                sel[G + G * K + p, (G + p) * (K + 1) + r] = 1.0  # x_point column p (tiled)
        pp[f'sel_{i}'] = jnp.asarray(sel)

    pp['wl'] = jnp.asarray(np.asarray(params['to_los_w']).T)   # (los_in, L)
    pp['bl'] = jnp.asarray(np.asarray(params['to_los_b']).reshape(1, L))
    eps = 1e-5                                                 # torch.nn.BatchNorm1d default
    scale = np.asarray(params['bn_gamma']) / np.sqrt(np.asarray(params['bn_var']) + eps)
    shift = np.asarray(params['bn_beta']) - np.asarray(params['bn_mean']) * scale
    pp['bn_scale'] = jnp.asarray(scale.reshape(1, L).astype(np.float32))
    pp['bn_shift'] = jnp.asarray(shift.reshape(1, L).astype(np.float32))
    wh = np.concatenate([np.asarray(params['los_w']).reshape(L, 1),
                         np.asarray(params['mort_w']).reshape(L, 1)], axis=1)
    pp['wh'] = jnp.asarray(wh.astype(np.float32))
    bh = np.array([[float(np.asarray(params['los_b'])[0]),
                    float(np.asarray(params['mort_b'])[0])]], np.float32)
    pp['bh'] = jnp.asarray(bh)
    return pp


# ------------------------------ forward glue -------------------------------- #

def tpc_forward(pp, cfg, dims, x, flat):
    B, C, T = x.shape
    F, ks = cfg['num_features'], cfg['kernel_size']
    tbp = cfg['time_before_pred']
    n_layers = len(dims)
    N = B * T

    x_tm = jnp.transpose(x, (0, 2, 1)).reshape(N, C)           # time-major raw input
    flat_rep = jnp.repeat(flat, T, axis=0)                     # == repeat_interleave(T, dim=0)

    inputs = [x_tm, flat_rep, pp['sel0']]
    for i in range(n_layers):
        inputs += [pp[f'wc_{i}'], pp[f'bc_{i}'], pp[f'smat_{i}'],
                   pp[f'wp_{i}'], pp[f'bp_{i}'], pp[f'sel_{i}']]
    inputs += [pp['wl'], pp['bl'], pp['bn_scale'], pp['bn_shift'], pp['wh'], pp['bh']]

    kern = functools.partial(_tpc_fused_kernel, F=F, ks=ks, n_layers=n_layers)
    los_all, mort_all = pl.pallas_call(
        kern,
        grid=(1,),
        in_specs=[_full_spec(a.shape) for a in inputs],
        out_specs=(_full_spec((N, 1)), _full_spec((N, 1))),
        out_shape=(jax.ShapeDtypeStruct((N, 1), jnp.float32),
                   jax.ShapeDtypeStruct((N, 1), jnp.float32)),
        compiler_params=_CP,
    )(*inputs)

    los = los_all.reshape(B, T)[:, tbp:]
    mort = mort_all.reshape(B, T)[:, tbp:]
    return los, mort


if __name__ == "__main__":
    cfg = make_cfg()
    B, T = 2, 16
    F, nf = cfg['num_features'], cfg['no_flat_features']
    key = jax.random.PRNGKey(0)
    kp, kx, kf = jax.random.split(key, 3)
    params, dims, _ = init_params(cfg, kp)
    pp = prepare_params(params, cfg, dims, B, T)
    x = jax.random.normal(kx, (B, 2 * F + 1, T), jnp.float32)   # time + F values + F masks
    flat = jax.random.normal(kf, (B, nf), jnp.float32)
    fwd = jax.jit(functools.partial(tpc_forward, pp, cfg, dims))
    los, mort = fwd(x, flat)
    jax.block_until_ready((los, mort))
    assert los.shape == (B, T - cfg['time_before_pred'])
    assert mort.shape == (B, T - cfg['time_before_pred'])
    assert bool(jnp.all(jnp.isfinite(los))) and bool(jnp.all(jnp.isfinite(mort)))
    print("KERNEL_OK")
</pallas_src>

<mosaic_0001>
module attributes {stable_mosaic.version = 11 : i64} {
  func.func @_tpc_fused_kernel(%arg0: i32, %arg1: memref<32x9xf32, #tpu.memory_space<vmem>>, %arg2: memref<32x3xf32, #tpu.memory_space<vmem>>, %arg3: memref<9x8xf32, #tpu.memory_space<vmem>>, %arg4: memref<3x8x12xf32, #tpu.memory_space<vmem>>, %arg5: memref<1x12xf32, #tpu.memory_space<vmem>>, %arg6: memref<2x32x32xf32, #tpu.memory_space<vmem>>, %arg7: memref<12x2xf32, #tpu.memory_space<vmem>>, %arg8: memref<1x2xf32, #tpu.memory_space<vmem>>, %arg9: memref<18x24xf32, #tpu.memory_space<vmem>>, %arg10: memref<3x24x18xf32, #tpu.memory_space<vmem>>, %arg11: memref<1x18xf32, #tpu.memory_space<vmem>>, %arg12: memref<2x32x32xf32, #tpu.memory_space<vmem>>, %arg13: memref<26x2xf32, #tpu.memory_space<vmem>>, %arg14: memref<1x2xf32, #tpu.memory_space<vmem>>, %arg15: memref<26x32xf32, #tpu.memory_space<vmem>>, %arg16: memref<3x32x24xf32, #tpu.memory_space<vmem>>, %arg17: memref<1x24xf32, #tpu.memory_space<vmem>>, %arg18: memref<2x32x32xf32, #tpu.memory_space<vmem>>, %arg19: memref<32x2xf32, #tpu.memory_space<vmem>>, %arg20: memref<1x2xf32, #tpu.memory_space<vmem>>, %arg21: memref<34x40xf32, #tpu.memory_space<vmem>>, %arg22: memref<43x8xf32, #tpu.memory_space<vmem>>, %arg23: memref<1x8xf32, #tpu.memory_space<vmem>>, %arg24: memref<1x8xf32, #tpu.memory_space<vmem>>, %arg25: memref<1x8xf32, #tpu.memory_space<vmem>>, %arg26: memref<8x2xf32, #tpu.memory_space<vmem>>, %arg27: memref<1x2xf32, #tpu.memory_space<vmem>>, %arg28: memref<32x1xf32, #tpu.memory_space<vmem>>, %arg29: memref<32x1xf32, #tpu.memory_space<vmem>>) attributes {dimension_semantics = [#tpu.dimension_semantics<arbitrary>], iteration_bounds = array<i64: 1>, scalar_prefetch = 0 : i64, scratch_operands = 0 : i64, tpu.core_type = #tpu.core_type<tc>, window_params = [{pipeline_mode = #tpu.pipeline_mode<synchronous>, transform_indices = @transform_0, window_bounds = array<i64: 32, 9>}, {pipeline_mode = #tpu.pipeline_mode<synchronous>, transform_indices = @transform_1, window_bounds = array<i64: 32, 3>}, {pipeline_mode = #tpu.pipeline_mode<synchronous>, transform_indices = @transform_2, window_bounds = array<i64: 9, 8>}, {pipeline_mode = #tpu.pipeline_mode<synchronous>, transform_indices = @transform_3, window_bounds = array<i64: 3, 8, 12>}, {pipeline_mode = #tpu.pipeline_mode<synchronous>, transform_indices = @transform_4, window_bounds = array<i64: 1, 12>}, {pipeline_mode = #tpu.pipeline_mode<synchronous>, transform_indices = @transform_5, window_bounds = array<i64: 2, 32, 32>}, {pipeline_mode = #tpu.pipeline_mode<synchronous>, transform_indices = @transform_6, window_bounds = array<i64: 12, 2>}, {pipeline_mode = #tpu.pipeline_mode<synchronous>, transform_indices = @transform_7, window_bounds = array<i64: 1, 2>}, {pipeline_mode = #tpu.pipeline_mode<synchronous>, transform_indices = @transform_8, window_bounds = array<i64: 18, 24>}, {pipeline_mode = #tpu.pipeline_mode<synchronous>, transform_indices = @transform_9, window_bounds = array<i64: 3, 24, 18>}, {pipeline_mode = #tpu.pipeline_mode<synchronous>, transform_indices = @transform_10, window_bounds = array<i64: 1, 18>}, {pipeline_mode = #tpu.pipeline_mode<synchronous>, transform_indices = @transform_11, window_bounds = array<i64: 2, 32, 32>}, {pipeline_mode = #tpu.pipeline_mode<synchronous>, transform_indices = @transform_12, window_bounds = array<i64: 26, 2>}, {pipeline_mode = #tpu.pipeline_mode<synchronous>, transform_indices = @transform_13, window_bounds = array<i64: 1, 2>}, {pipeline_mode = #tpu.pipeline_mode<synchronous>, transform_indices = @transform_14, window_bounds = array<i64: 26, 32>}, {pipeline_mode = #tpu.pipeline_mode<synchronous>, transform_indices = @transform_15, window_bounds = array<i64: 3, 32, 24>}, {pipeline_mode = #tpu.pipeline_mode<synchronous>, transform_indices = @transform_16, window_bounds = array<i64: 1, 24>}, {pipeline_mode = #tpu.pipeline_mode<synchronous>, transform_indices = @transform_17, window_bounds = array<i64: 2, 32, 32>}, {pipeline_mode = #tpu.pipeline_mode<synchronous>, transform_indices = @transform_18, window_bounds = array<i64: 32, 2>}, {pipeline_mode = #tpu.pipeline_mode<synchronous>, transform_indices = @transform_19, window_bounds = array<i64: 1, 2>}, {pipeline_mode = #tpu.pipeline_mode<synchronous>, transform_indices = @transform_20, window_bounds = array<i64: 34, 40>}, {pipeline_mode = #tpu.pipeline_mode<synchronous>, transform_indices = @transform_21, window_bounds = array<i64: 43, 8>}, {pipeline_mode = #tpu.pipeline_mode<synchronous>, transform_indices = @transform_22, window_bounds = array<i64: 1, 8>}, {pipeline_mode = #tpu.pipeline_mode<synchronous>, transform_indices = @transform_23, window_bounds = array<i64: 1, 8>}, {pipeline_mode = #tpu.pipeline_mode<synchronous>, transform_indices = @transform_24, window_bounds = array<i64: 1, 8>}, {pipeline_mode = #tpu.pipeline_mode<synchronous>, transform_indices = @transform_25, window_bounds = array<i64: 8, 2>}, {pipeline_mode = #tpu.pipeline_mode<synchronous>, transform_indices = @transform_26, window_bounds = array<i64: 1, 2>}, {pipeline_mode = #tpu.pipeline_mode<synchronous>, transform_indices = @transform_27, window_bounds = array<i64: 32, 1>}, {pipeline_mode = #tpu.pipeline_mode<synchronous>, transform_indices = @transform_28, window_bounds = array<i64: 32, 1>}]} {
    %c0 = arith.constant 0 : index
    %c0_0 = arith.constant 0 : index
    %0 = vector.load %arg1[%c0, %c0_0] : memref<32x9xf32, #tpu.memory_space<vmem>>, vector<32x9xf32>
    %c0_1 = arith.constant 0 : index
    %c0_2 = arith.constant 0 : index
    %1 = vector.load %arg2[%c0_1, %c0_2] : memref<32x3xf32, #tpu.memory_space<vmem>>, vector<32x3xf32>
    %c0_3 = arith.constant 0 : index
    %c0_4 = arith.constant 0 : index
    %2 = vector.load %arg3[%c0_3, %c0_4] : memref<9x8xf32, #tpu.memory_space<vmem>>, vector<9x8xf32>
    %c0_5 = arith.constant 0 : index
    %c0_6 = arith.constant 0 : index
    %3 = vector.load %arg22[%c0_5, %c0_6] : memref<43x8xf32, #tpu.memory_space<vmem>>, vector<43x8xf32>
    %c0_7 = arith.constant 0 : index
    %c0_8 = arith.constant 0 : index
    %4 = vector.load %arg23[%c0_7, %c0_8] : memref<1x8xf32, #tpu.memory_space<vmem>>, vector<1x8xf32>
    %c0_9 = arith.constant 0 : index
    %c0_10 = arith.constant 0 : index
    %5 = vector.load %arg24[%c0_9, %c0_10] : memref<1x8xf32, #tpu.memory_space<vmem>>, vector<1x8xf32>
    %c0_11 = arith.constant 0 : index
    %c0_12 = arith.constant 0 : index
    %6 = vector.load %arg25[%c0_11, %c0_12] : memref<1x8xf32, #tpu.memory_space<vmem>>, vector<1x8xf32>
    %c0_13 = arith.constant 0 : index
    %c0_14 = arith.constant 0 : index
    %7 = vector.load %arg26[%c0_13, %c0_14] : memref<8x2xf32, #tpu.memory_space<vmem>>, vector<8x2xf32>
    %c0_15 = arith.constant 0 : index
    %c0_16 = arith.constant 0 : index
    %8 = vector.load %arg27[%c0_15, %c0_16] : memref<1x2xf32, #tpu.memory_space<vmem>>, vector<1x2xf32>
    %9 = vector.extract_strided_slice %0 {offsets = [0, 1], sizes = [32, 4], strides = [1, 1]} : vector<32x9xf32> to vector<32x4xf32>
    %cst = arith.constant dense<0.000000e+00> : vector<32x8xf32>
    %10 = tpu.matmul %0, %2, %cst {dimension_numbers = #tpu.dot_dimension_numbers<[1], [0], [0], [1], [0, 0, 1, 1], [], []>} : vector<32x9xf32>, vector<9x8xf32>, vector<32x8xf32> -> vector<32x8xf32>
    %c0_17 = arith.constant 0 : index
    %c0_18 = arith.constant 0 : index
    %c0_19 = arith.constant 0 : index
    %11 = vector.load %arg4[%c0_17, %c0_18, %c0_19] : memref<3x8x12xf32, #tpu.memory_space<vmem>>, vector<3x8x12xf32>
    %c0_20 = arith.constant 0 : index
    %c0_21 = arith.constant 0 : index
    %12 = vector.load %arg5[%c0_20, %c0_21] : memref<1x12xf32, #tpu.memory_space<vmem>>, vector<1x12xf32>
    %c0_22 = arith.constant 0 : index
    %c0_23 = arith.constant 0 : index
    %c0_24 = arith.constant 0 : index
    %13 = vector.load %arg6[%c0_22, %c0_23, %c0_24] : memref<2x32x32xf32, #tpu.memory_space<vmem>>, vector<2x32x32xf32>
    %c0_25 = arith.constant 0 : index
    %c0_26 = arith.constant 0 : index
    %14 = vector.load %arg7[%c0_25, %c0_26] : memref<12x2xf32, #tpu.memory_space<vmem>>, vector<12x2xf32>
    %c0_27 = arith.constant 0 : index
    %c0_28 = arith.constant 0 : index
    %15 = vector.load %arg8[%c0_27, %c0_28] : memref<1x2xf32, #tpu.memory_space<vmem>>, vector<1x2xf32>
    %c0_29 = arith.constant 0 : index
    %c0_30 = arith.constant 0 : index
    %16 = vector.load %arg9[%c0_29, %c0_30] : memref<18x24xf32, #tpu.memory_space<vmem>>, vector<18x24xf32>
    %17 = vector.extract_strided_slice %11 {offsets = [2, 0, 0], sizes = [1, 8, 12], strides = [1, 1, 1]} : vector<3x8x12xf32> to vector<1x8x12xf32>
    %18 = vector.shape_cast %17 : vector<1x8x12xf32> to vector<8x12xf32>
    %cst_31 = arith.constant dense<0.000000e+00> : vector<32x12xf32>
    %19 = tpu.matmul %10, %18, %cst_31 {dimension_numbers = #tpu.dot_dimension_numbers<[1], [0], [0], [1], [0, 0, 1, 1], [], []>} : vector<32x8xf32>, vector<8x12xf32>, vector<32x12xf32> -> vector<32x12xf32>
    %20 = vector.broadcast %12 : vector<1x12xf32> to vector<32x12xf32>
    %21 = arith.addf %19, %20 : vector<32x12xf32>
    %22 = vector.extract_strided_slice %13 {offsets = [0, 0, 0], sizes = [1, 32, 32], strides = [1, 1, 1]} : vector<2x32x32xf32> to vector<1x32x32xf32>
    %23 = vector.shape_cast %22 : vector<1x32x32xf32> to vector<32x32xf32>
    %24 = vector.extract_strided_slice %11 {offsets = [0, 0, 0], sizes = [1, 8, 12], strides = [1, 1, 1]} : vector<3x8x12xf32> to vector<1x8x12xf32>
    %25 = vector.shape_cast %24 : vector<1x8x12xf32> to vector<8x12xf32>
    %cst_32 = arith.constant dense<0.000000e+00> : vector<32x12xf32>
    %26 = tpu.matmul %10, %25, %cst_32 {dimension_numbers = #tpu.dot_dimension_numbers<[1], [0], [0], [1], [0, 0, 1, 1], [], []>} : vector<32x8xf32>, vector<8x12xf32>, vector<32x12xf32> -> vector<32x12xf32>
    %cst_33 = arith.constant dense<0.000000e+00> : vector<32x12xf32>
    %27 = tpu.matmul %23, %26, %cst_33 {dimension_numbers = #tpu.dot_dimension_numbers<[1], [0], [0], [1], [0, 0, 1, 1], [], []>} : vector<32x32xf32>, vector<32x12xf32>, vector<32x12xf32> -> vector<32x12xf32>
    %28 = arith.addf %21, %27 : vector<32x12xf32>
    %29 = vector.extract_strided_slice %13 {offsets = [1, 0, 0], sizes = [1, 32, 32], strides = [1, 1, 1]} : vector<2x32x32xf32> to vector<1x32x32xf32>
    %30 = vector.shape_cast %29 : vector<1x32x32xf32> to vector<32x32xf32>
    %31 = vector.extract_strided_slice %11 {offsets = [1, 0, 0], sizes = [1, 8, 12], strides = [1, 1, 1]} : vector<3x8x12xf32> to vector<1x8x12xf32>
    %32 = vector.shape_cast %31 : vector<1x8x12xf32> to vector<8x12xf32>
    %cst_34 = arith.constant dense<0.000000e+00> : vector<32x12xf32>
    %33 = tpu.matmul %10, %32, %cst_34 {dimension_numbers = #tpu.dot_dimension_numbers<[1], [0], [0], [1], [0, 0, 1, 1], [], []>} : vector<32x8xf32>, vector<8x12xf32>, vector<32x12xf32> -> vector<32x12xf32>
    %cst_35 = arith.constant dense<0.000000e+00> : vector<32x12xf32>
    %34 = tpu.matmul %30, %33, %cst_35 {dimension_numbers = #tpu.dot_dimension_numbers<[1], [0], [0], [1], [0, 0, 1, 1], [], []>} : vector<32x32xf32>, vector<32x12xf32>, vector<32x12xf32> -> vector<32x12xf32>
    %35 = arith.addf %28, %34 : vector<32x12xf32>
    %36 = vector.extract_strided_slice %14 {offsets = [0, 0], sizes = [9, 2], strides = [1, 1]} : vector<12x2xf32> to vector<9x2xf32>
    %cst_36 = arith.constant dense<0.000000e+00> : vector<32x2xf32>
    %37 = tpu.matmul %0, %36, %cst_36 {dimension_numbers = #tpu.dot_dimension_numbers<[1], [0], [0], [1], [0, 0, 1, 1], [], []>} : vector<32x9xf32>, vector<9x2xf32>, vector<32x2xf32> -> vector<32x2xf32>
    %38 = vector.broadcast %15 : vector<1x2xf32> to vector<32x2xf32>
    %39 = arith.addf %38, %37 : vector<32x2xf32>
    %40 = vector.extract_strided_slice %14 {offsets = [9, 0], sizes = [3, 2], strides = [1, 1]} : vector<12x2xf32> to vector<3x2xf32>
    %cst_37 = arith.constant dense<0.000000e+00> : vector<32x2xf32>
    %41 = tpu.matmul %1, %40, %cst_37 {dimension_numbers = #tpu.dot_dimension_numbers<[1], [0], [0], [1], [0, 0, 1, 1], [], []>} : vector<32x3xf32>, vector<3x2xf32>, vector<32x2xf32> -> vector<32x2xf32>
    %42 = arith.addf %39, %41 : vector<32x2xf32>
    %43 = vector.extract_strided_slice %16 {offsets = [0, 0], sizes = [4, 24], strides = [1, 1]} : vector<18x24xf32> to vector<4x24xf32>
    %cst_38 = arith.constant dense<0.000000e+00> : vector<32x24xf32>
    %44 = tpu.matmul %9, %43, %cst_38 {dimension_numbers = #tpu.dot_dimension_numbers<[1], [0], [0], [1], [0, 0, 1, 1], [], []>} : vector<32x4xf32>, vector<4x24xf32>, vector<32x24xf32> -> vector<32x24xf32>
    %45 = vector.extract_strided_slice %16 {offsets = [4, 0], sizes = [12, 24], strides = [1, 1]} : vector<18x24xf32> to vector<12x24xf32>
    %cst_39 = arith.constant dense<0.000000e+00> : vector<32x24xf32>
    %46 = tpu.matmul %35, %45, %cst_39 {dimension_numbers = #tpu.dot_dimension_numbers<[1], [0], [0], [1], [0, 0, 1, 1], [], []>} : vector<32x12xf32>, vector<12x24xf32>, vector<32x24xf32> -> vector<32x24xf32>
    %47 = arith.addf %44, %46 : vector<32x24xf32>
    %48 = vector.extract_strided_slice %16 {offsets = [16, 0], sizes = [2, 24], strides = [1, 1]} : vector<18x24xf32> to vector<2x24xf32>
    %cst_40 = arith.constant dense<0.000000e+00> : vector<32x24xf32>
    %49 = tpu.matmul %42, %48, %cst_40 {dimension_numbers = #tpu.dot_dimension_numbers<[1], [0], [0], [1], [0, 0, 1, 1], [], []>} : vector<32x2xf32>, vector<2x24xf32>, vector<32x24xf32> -> vector<32x24xf32>
    %50 = arith.addf %47, %49 : vector<32x24xf32>
    %cst_41 = arith.constant 0.000000e+00 : f32
    %51 = vector.broadcast %cst_41 : f32 to vector<32x24xf32>
    %52 = arith.maximumf %50, %51 : vector<32x24xf32>
    %c0_42 = arith.constant 0 : index
    %c0_43 = arith.constant 0 : index
    %c0_44 = arith.constant 0 : index
    %53 = vector.load %arg10[%c0_42, %c0_43, %c0_44] : memref<3x24x18xf32, #tpu.memory_space<vmem>>, vector<3x24x18xf32>
    %c0_45 = arith.constant 0 : index
    %c0_46 = arith.constant 0 : index
    %54 = vector.load %arg11[%c0_45, %c0_46] : memref<1x18xf32, #tpu.memory_space<vmem>>, vector<1x18xf32>
    %c0_47 = arith.constant 0 : index
    %c0_48 = arith.constant 0 : index
    %c0_49 = arith.constant 0 : index
    %55 = vector.load %arg12[%c0_47, %c0_48, %c0_49] : memref<2x32x32xf32, #tpu.memory_space<vmem>>, vector<2x32x32xf32>
    %c0_50 = arith.constant 0 : index
    %c0_51 = arith.constant 0 : index
    %56 = vector.load %arg13[%c0_50, %c0_51] : memref<26x2xf32, #tpu.memory_space<vmem>>, vector<26x2xf32>
    %c0_52 = arith.constant 0 : index
    %c0_53 = arith.constant 0 : index
    %57 = vector.load %arg14[%c0_52, %c0_53] : memref<1x2xf32, #tpu.memory_space<vmem>>, vector<1x2xf32>
    %c0_54 = arith.constant 0 : index
    %c0_55 = arith.constant 0 : index
    %58 = vector.load %arg15[%c0_54, %c0_55] : memref<26x32xf32, #tpu.memory_space<vmem>>, vector<26x32xf32>
    %59 = vector.extract_strided_slice %53 {offsets = [2, 0, 0], sizes = [1, 24, 18], strides = [1, 1, 1]} : vector<3x24x18xf32> to vector<1x24x18xf32>
    %60 = vector.shape_cast %59 : vector<1x24x18xf32> to vector<24x18xf32>
    %cst_56 = arith.constant dense<0.000000e+00> : vector<32x18xf32>
    %61 = tpu.matmul %52, %60, %cst_56 {dimension_numbers = #tpu.dot_dimension_numbers<[1], [0], [0], [1], [0, 0, 1, 1], [], []>} : vector<32x24xf32>, vector<24x18xf32>, vector<32x18xf32> -> vector<32x18xf32>
    %62 = vector.broadcast %54 : vector<1x18xf32> to vector<32x18xf32>
    %63 = arith.addf %61, %62 : vector<32x18xf32>
    %64 = vector.extract_strided_slice %55 {offsets = [0, 0, 0], sizes = [1, 32, 32], strides = [1, 1, 1]} : vector<2x32x32xf32> to vector<1x32x32xf32>
    %65 = vector.shape_cast %64 : vector<1x32x32xf32> to vector<32x32xf32>
    %66 = vector.extract_strided_slice %53 {offsets = [0, 0, 0], sizes = [1, 24, 18], strides = [1, 1, 1]} : vector<3x24x18xf32> to vector<1x24x18xf32>
    %67 = vector.shape_cast %66 : vector<1x24x18xf32> to vector<24x18xf32>
    %cst_57 = arith.constant dense<0.000000e+00> : vector<32x18xf32>
    %68 = tpu.matmul %52, %67, %cst_57 {dimension_numbers = #tpu.dot_dimension_numbers<[1], [0], [0], [1], [0, 0, 1, 1], [], []>} : vector<32x24xf32>, vector<24x18xf32>, vector<32x18xf32> -> vector<32x18xf32>
    %cst_58 = arith.constant dense<0.000000e+00> : vector<32x18xf32>
    %69 = tpu.matmul %65, %68, %cst_58 {dimension_numbers = #tpu.dot_dimension_numbers<[1], [0], [0], [1], [0, 0, 1, 1], [], []>} : vector<32x32xf32>, vector<32x18xf32>, vector<32x18xf32> -> vector<32x18xf32>
    %70 = arith.addf %63, %69 : vector<32x18xf32>
    %71 = vector.extract_strided_slice %55 {offsets = [1, 0, 0], sizes = [1, 32, 32], strides = [1, 1, 1]} : vector<2x32x32xf32> to vector<1x32x32xf32>
    %72 = vector.shape_cast %71 : vector<1x32x32xf32> to vector<32x32xf32>
    %73 = vector.extract_strided_slice %53 {offsets = [1, 0, 0], sizes = [1, 24, 18], strides = [1, 1, 1]} : vector<3x24x18xf32> to vector<1x24x18xf32>
    %74 = vector.shape_cast %73 : vector<1x24x18xf32> to vector<24x18xf32>
    %cst_59 = arith.constant dense<0.000000e+00> : vector<32x18xf32>
    %75 = tpu.matmul %52, %74, %cst_59 {dimension_numbers = #tpu.dot_dimension_numbers<[1], [0], [0], [1], [0, 0, 1, 1], [], []>} : vector<32x24xf32>, vector<24x18xf32>, vector<32x18xf32> -> vector<32x18xf32>
    %cst_60 = arith.constant dense<0.000000e+00> : vector<32x18xf32>
    %76 = tpu.matmul %72, %75, %cst_60 {dimension_numbers = #tpu.dot_dimension_numbers<[1], [0], [0], [1], [0, 0, 1, 1], [], []>} : vector<32x32xf32>, vector<32x18xf32>, vector<32x18xf32> -> vector<32x18xf32>
    %77 = arith.addf %70, %76 : vector<32x18xf32>
    %78 = vector.extract_strided_slice %56 {offsets = [0, 0], sizes = [12, 2], strides = [1, 1]} : vector<26x2xf32> to vector<12x2xf32>
    %cst_61 = arith.constant dense<0.000000e+00> : vector<32x2xf32>
    %79 = tpu.matmul %35, %78, %cst_61 {dimension_numbers = #tpu.dot_dimension_numbers<[1], [0], [0], [1], [0, 0, 1, 1], [], []>} : vector<32x12xf32>, vector<12x2xf32>, vector<32x2xf32> -> vector<32x2xf32>
    %80 = vector.broadcast %57 : vector<1x2xf32> to vector<32x2xf32>
    %81 = arith.addf %80, %79 : vector<32x2xf32>
    %82 = vector.extract_strided_slice %56 {offsets = [12, 0], sizes = [2, 2], strides = [1, 1]} : vector<26x2xf32> to vector<2x2xf32>
    %cst_62 = arith.constant dense<0.000000e+00> : vector<32x2xf32>
    %83 = tpu.matmul %42, %82, %cst_62 {dimension_numbers = #tpu.dot_dimension_numbers<[1], [0], [0], [1], [0, 0, 1, 1], [], []>} : vector<32x2xf32>, vector<2x2xf32>, vector<32x2xf32> -> vector<32x2xf32>
    %84 = arith.addf %81, %83 : vector<32x2xf32>
    %85 = vector.extract_strided_slice %56 {offsets = [14, 0], sizes = [9, 2], strides = [1, 1]} : vector<26x2xf32> to vector<9x2xf32>
    %cst_63 = arith.constant dense<0.000000e+00> : vector<32x2xf32>
    %86 = tpu.matmul %0, %85, %cst_63 {dimension_numbers = #tpu.dot_dimension_numbers<[1], [0], [0], [1], [0, 0, 1, 1], [], []>} : vector<32x9xf32>, vector<9x2xf32>, vector<32x2xf32> -> vector<32x2xf32>
    %87 = arith.addf %84, %86 : vector<32x2xf32>
    %88 = vector.extract_strided_slice %56 {offsets = [23, 0], sizes = [3, 2], strides = [1, 1]} : vector<26x2xf32> to vector<3x2xf32>
    %cst_64 = arith.constant dense<0.000000e+00> : vector<32x2xf32>
    %89 = tpu.matmul %1, %88, %cst_64 {dimension_numbers = #tpu.dot_dimension_numbers<[1], [0], [0], [1], [0, 0, 1, 1], [], []>} : vector<32x3xf32>, vector<3x2xf32>, vector<32x2xf32> -> vector<32x2xf32>
    %90 = arith.addf %87, %89 : vector<32x2xf32>
    %91 = vector.extract_strided_slice %58 {offsets = [0, 0], sizes = [4, 32], strides = [1, 1]} : vector<26x32xf32> to vector<4x32xf32>
    %cst_65 = arith.constant dense<0.000000e+00> : vector<32x32xf32>
    %92 = tpu.matmul %9, %91, %cst_65 {dimension_numbers = #tpu.dot_dimension_numbers<[1], [0], [0], [1], [0, 0, 1, 1], [], []>} : vector<32x4xf32>, vector<4x32xf32>, vector<32x32xf32> -> vector<32x32xf32>
    %93 = vector.extract_strided_slice %58 {offsets = [4, 0], sizes = [2, 32], strides = [1, 1]} : vector<26x32xf32> to vector<2x32xf32>
    %cst_66 = arith.constant dense<0.000000e+00> : vector<32x32xf32>
    %94 = tpu.matmul %42, %93, %cst_66 {dimension_numbers = #tpu.dot_dimension_numbers<[1], [0], [0], [1], [0, 0, 1, 1], [], []>} : vector<32x2xf32>, vector<2x32xf32>, vector<32x32xf32> -> vector<32x32xf32>
    %95 = arith.addf %92, %94 : vector<32x32xf32>
    %96 = vector.extract_strided_slice %58 {offsets = [6, 0], sizes = [18, 32], strides = [1, 1]} : vector<26x32xf32> to vector<18x32xf32>
    %cst_67 = arith.constant dense<0.000000e+00> : vector<32x32xf32>
    %97 = tpu.matmul %77, %96, %cst_67 {dimension_numbers = #tpu.dot_dimension_numbers<[1], [0], [0], [1], [0, 0, 1, 1], [], []>} : vector<32x18xf32>, vector<18x32xf32>, vector<32x32xf32> -> vector<32x32xf32>
    %98 = arith.addf %95, %97 : vector<32x32xf32>
    %99 = vector.extract_strided_slice %58 {offsets = [24, 0], sizes = [2, 32], strides = [1, 1]} : vector<26x32xf32> to vector<2x32xf32>
    %cst_68 = arith.constant dense<0.000000e+00> : vector<32x32xf32>
    %100 = tpu.matmul %90, %99, %cst_68 {dimension_numbers = #tpu.dot_dimension_numbers<[1], [0], [0], [1], [0, 0, 1, 1], [], []>} : vector<32x2xf32>, vector<2x32xf32>, vector<32x32xf32> -> vector<32x32xf32>
    %101 = arith.addf %98, %100 : vector<32x32xf32>
    %cst_69 = arith.constant 0.000000e+00 : f32
    %102 = vector.broadcast %cst_69 : f32 to vector<32x32xf32>
    %103 = arith.maximumf %101, %102 : vector<32x32xf32>
    %c0_70 = arith.constant 0 : index
    %c0_71 = arith.constant 0 : index
    %c0_72 = arith.constant 0 : index
    %104 = vector.load %arg16[%c0_70, %c0_71, %c0_72] : memref<3x32x24xf32, #tpu.memory_space<vmem>>, vector<3x32x24xf32>
    %c0_73 = arith.constant 0 : index
    %c0_74 = arith.constant 0 : index
    %105 = vector.load %arg17[%c0_73, %c0_74] : memref<1x24xf32, #tpu.memory_space<vmem>>, vector<1x24xf32>
    %c0_75 = arith.constant 0 : index
    %c0_76 = arith.constant 0 : index
    %c0_77 = arith.constant 0 : index
    %106 = vector.load %arg18[%c0_75, %c0_76, %c0_77] : memref<2x32x32xf32, #tpu.memory_space<vmem>>, vector<2x32x32xf32>
    %c0_78 = arith.constant 0 : index
    %c0_79 = arith.constant 0 : index
    %107 = vector.load %arg19[%c0_78, %c0_79] : memref<32x2xf32, #tpu.memory_space<vmem>>, vector<32x2xf32>
    %c0_80 = arith.constant 0 : index
    %c0_81 = arith.constant 0 : index
    %108 = vector.load %arg20[%c0_80, %c0_81] : memref<1x2xf32, #tpu.memory_space<vmem>>, vector<1x2xf32>
    %c0_82 = arith.constant 0 : index
    %c0_83 = arith.constant 0 : index
    %109 = vector.load %arg21[%c0_82, %c0_83] : memref<34x40xf32, #tpu.memory_space<vmem>>, vector<34x40xf32>
    %110 = vector.extract_strided_slice %104 {offsets = [2, 0, 0], sizes = [1, 32, 24], strides = [1, 1, 1]} : vector<3x32x24xf32> to vector<1x32x24xf32>
    %111 = vector.shape_cast %110 : vector<1x32x24xf32> to vector<32x24xf32>
    %cst_84 = arith.constant dense<0.000000e+00> : vector<32x24xf32>
    %112 = tpu.matmul %103, %111, %cst_84 {dimension_numbers = #tpu.dot_dimension_numbers<[1], [0], [0], [1], [0, 0, 1, 1], [], []>} : vector<32x32xf32>, vector<32x24xf32>, vector<32x24xf32> -> vector<32x24xf32>
    %113 = vector.broadcast %105 : vector<1x24xf32> to vector<32x24xf32>
    %114 = arith.addf %112, %113 : vector<32x24xf32>
    %115 = vector.extract_strided_slice %106 {offsets = [0, 0, 0], sizes = [1, 32, 32], strides = [1, 1, 1]} : vector<2x32x32xf32> to vector<1x32x32xf32>
    %116 = vector.shape_cast %115 : vector<1x32x32xf32> to vector<32x32xf32>
    %117 = vector.extract_strided_slice %104 {offsets = [0, 0, 0], sizes = [1, 32, 24], strides = [1, 1, 1]} : vector<3x32x24xf32> to vector<1x32x24xf32>
    %118 = vector.shape_cast %117 : vector<1x32x24xf32> to vector<32x24xf32>
    %cst_85 = arith.constant dense<0.000000e+00> : vector<32x24xf32>
    %119 = tpu.matmul %103, %118, %cst_85 {dimension_numbers = #tpu.dot_dimension_numbers<[1], [0], [0], [1], [0, 0, 1, 1], [], []>} : vector<32x32xf32>, vector<32x24xf32>, vector<32x24xf32> -> vector<32x24xf32>
    %cst_86 = arith.constant dense<0.000000e+00> : vector<32x24xf32>
    %120 = tpu.matmul %116, %119, %cst_86 {dimension_numbers = #tpu.dot_dimension_numbers<[1], [0], [0], [1], [0, 0, 1, 1], [], []>} : vector<32x32xf32>, vector<32x24xf32>, vector<32x24xf32> -> vector<32x24xf32>
    %121 = arith.addf %114, %120 : vector<32x24xf32>
    %122 = vector.extract_strided_slice %106 {offsets = [1, 0, 0], sizes = [1, 32, 32], strides = [1, 1, 1]} : vector<2x32x32xf32> to vector<1x32x32xf32>
    %123 = vector.shape_cast %122 : vector<1x32x32xf32> to vector<32x32xf32>
    %124 = vector.extract_strided_slice %104 {offsets = [1, 0, 0], sizes = [1, 32, 24], strides = [1, 1, 1]} : vector<3x32x24xf32> to vector<1x32x24xf32>
    %125 = vector.shape_cast %124 : vector<1x32x24xf32> to vector<32x24xf32>
    %cst_87 = arith.constant dense<0.000000e+00> : vector<32x24xf32>
    %126 = tpu.matmul %103, %125, %cst_87 {dimension_numbers = #tpu.dot_dimension_numbers<[1], [0], [0], [1], [0, 0, 1, 1], [], []>} : vector<32x32xf32>, vector<32x24xf32>, vector<32x24xf32> -> vector<32x24xf32>
    %cst_88 = arith.constant dense<0.000000e+00> : vector<32x24xf32>
    %127 = tpu.matmul %123, %126, %cst_88 {dimension_numbers = #tpu.dot_dimension_numbers<[1], [0], [0], [1], [0, 0, 1, 1], [], []>} : vector<32x32xf32>, vector<32x24xf32>, vector<32x24xf32> -> vector<32x24xf32>
    %128 = arith.addf %121, %127 : vector<32x24xf32>
    %129 = vector.extract_strided_slice %107 {offsets = [0, 0], sizes = [18, 2], strides = [1, 1]} : vector<32x2xf32> to vector<18x2xf32>
    %cst_89 = arith.constant dense<0.000000e+00> : vector<32x2xf32>
    %130 = tpu.matmul %77, %129, %cst_89 {dimension_numbers = #tpu.dot_dimension_numbers<[1], [0], [0], [1], [0, 0, 1, 1], [], []>} : vector<32x18xf32>, vector<18x2xf32>, vector<32x2xf32> -> vector<32x2xf32>
    %131 = vector.broadcast %108 : vector<1x2xf32> to vector<32x2xf32>
    %132 = arith.addf %131, %130 : vector<32x2xf32>
    %133 = vector.extract_strided_slice %107 {offsets = [18, 0], sizes = [2, 2], strides = [1, 1]} : vector<32x2xf32> to vector<2x2xf32>
    %cst_90 = arith.constant dense<0.000000e+00> : vector<32x2xf32>
    %134 = tpu.matmul %90, %133, %cst_90 {dimension_numbers = #tpu.dot_dimension_numbers<[1], [0], [0], [1], [0, 0, 1, 1], [], []>} : vector<32x2xf32>, vector<2x2xf32>, vector<32x2xf32> -> vector<32x2xf32>
    %135 = arith.addf %132, %134 : vector<32x2xf32>
    %136 = vector.extract_strided_slice %107 {offsets = [20, 0], sizes = [9, 2], strides = [1, 1]} : vector<32x2xf32> to vector<9x2xf32>
    %cst_91 = arith.constant dense<0.000000e+00> : vector<32x2xf32>
    %137 = tpu.matmul %0, %136, %cst_91 {dimension_numbers = #tpu.dot_dimension_numbers<[1], [0], [0], [1], [0, 0, 1, 1], [], []>} : vector<32x9xf32>, vector<9x2xf32>, vector<32x2xf32> -> vector<32x2xf32>
    %138 = arith.addf %135, %137 : vector<32x2xf32>
    %139 = vector.extract_strided_slice %107 {offsets = [29, 0], sizes = [3, 2], strides = [1, 1]} : vector<32x2xf32> to vector<3x2xf32>
    %cst_92 = arith.constant dense<0.000000e+00> : vector<32x2xf32>
    %140 = tpu.matmul %1, %139, %cst_92 {dimension_numbers = #tpu.dot_dimension_numbers<[1], [0], [0], [1], [0, 0, 1, 1], [], []>} : vector<32x3xf32>, vector<3x2xf32>, vector<32x2xf32> -> vector<32x2xf32>
    %141 = arith.addf %138, %140 : vector<32x2xf32>
    %142 = vector.extract_strided_slice %109 {offsets = [0, 0], sizes = [4, 40], strides = [1, 1]} : vector<34x40xf32> to vector<4x40xf32>
    %cst_93 = arith.constant dense<0.000000e+00> : vector<32x40xf32>
    %143 = tpu.matmul %9, %142, %cst_93 {dimension_numbers = #tpu.dot_dimension_numbers<[1], [0], [0], [1], [0, 0, 1, 1], [], []>} : vector<32x4xf32>, vector<4x40xf32>, vector<32x40xf32> -> vector<32x40xf32>
    %144 = vector.extract_strided_slice %109 {offsets = [4, 0], sizes = [2, 40], strides = [1, 1]} : vector<34x40xf32> to vector<2x40xf32>
    %cst_94 = arith.constant dense<0.000000e+00> : vector<32x40xf32>
    %145 = tpu.matmul %42, %144, %cst_94 {dimension_numbers = #tpu.dot_dimension_numbers<[1], [0], [0], [1], [0, 0, 1, 1], [], []>} : vector<32x2xf32>, vector<2x40xf32>, vector<32x40xf32> -> vector<32x40xf32>
    %146 = arith.addf %143, %145 : vector<32x40xf32>
    %147 = vector.extract_strided_slice %109 {offsets = [6, 0], sizes = [2, 40], strides = [1, 1]} : vector<34x40xf32> to vector<2x40xf32>
    %cst_95 = arith.constant dense<0.000000e+00> : vector<32x40xf32>
    %148 = tpu.matmul %90, %147, %cst_95 {dimension_numbers = #tpu.dot_dimension_numbers<[1], [0], [0], [1], [0, 0, 1, 1], [], []>} : vector<32x2xf32>, vector<2x40xf32>, vector<32x40xf32> -> vector<32x40xf32>
    %149 = arith.addf %146, %148 : vector<32x40xf32>
    %150 = vector.extract_strided_slice %109 {offsets = [8, 0], sizes = [24, 40], strides = [1, 1]} : vector<34x40xf32> to vector<24x40xf32>
    %cst_96 = arith.constant dense<0.000000e+00> : vector<32x40xf32>
    %151 = tpu.matmul %128, %150, %cst_96 {dimension_numbers = #tpu.dot_dimension_numbers<[1], [0], [0], [1], [0, 0, 1, 1], [], []>} : vector<32x24xf32>, vector<24x40xf32>, vector<32x40xf32> -> vector<32x40xf32>
    %152 = arith.addf %149, %151 : vector<32x40xf32>
    %153 = vector.extract_strided_slice %109 {offsets = [32, 0], sizes = [2, 40], strides = [1, 1]} : vector<34x40xf32> to vector<2x40xf32>
    %cst_97 = arith.constant dense<0.000000e+00> : vector<32x40xf32>
    %154 = tpu.matmul %141, %153, %cst_97 {dimension_numbers = #tpu.dot_dimension_numbers<[1], [0], [0], [1], [0, 0, 1, 1], [], []>} : vector<32x2xf32>, vector<2x40xf32>, vector<32x40xf32> -> vector<32x40xf32>
    %155 = arith.addf %152, %154 : vector<32x40xf32>
    %cst_98 = arith.constant 0.000000e+00 : f32
    %156 = vector.broadcast %cst_98 : f32 to vector<32x40xf32>
    %157 = arith.maximumf %155, %156 : vector<32x40xf32>
    %158 = vector.extract_strided_slice %3 {offsets = [0, 0], sizes = [3, 8], strides = [1, 1]} : vector<43x8xf32> to vector<3x8xf32>
    %cst_99 = arith.constant dense<0.000000e+00> : vector<32x8xf32>
    %159 = tpu.matmul %1, %158, %cst_99 {dimension_numbers = #tpu.dot_dimension_numbers<[1], [0], [0], [1], [0, 0, 1, 1], [], []>} : vector<32x3xf32>, vector<3x8xf32>, vector<32x8xf32> -> vector<32x8xf32>
    %160 = vector.extract_strided_slice %3 {offsets = [3, 0], sizes = [40, 8], strides = [1, 1]} : vector<43x8xf32> to vector<40x8xf32>
    %cst_100 = arith.constant dense<0.000000e+00> : vector<32x8xf32>
    %161 = tpu.matmul %157, %160, %cst_100 {dimension_numbers = #tpu.dot_dimension_numbers<[1], [0], [0], [1], [0, 0, 1, 1], [], []>} : vector<32x40xf32>, vector<40x8xf32>, vector<32x8xf32> -> vector<32x8xf32>
    %162 = arith.addf %159, %161 : vector<32x8xf32>
    %163 = vector.broadcast %4 : vector<1x8xf32> to vector<32x8xf32>
    %164 = arith.addf %162, %163 : vector<32x8xf32>
    %165 = vector.broadcast %5 : vector<1x8xf32> to vector<32x8xf32>
    %166 = arith.mulf %164, %165 : vector<32x8xf32>
    %167 = vector.broadcast %6 : vector<1x8xf32> to vector<32x8xf32>
    %168 = arith.addf %166, %167 : vector<32x8xf32>
    %cst_101 = arith.constant 0.000000e+00 : f32
    %169 = vector.broadcast %cst_101 : f32 to vector<32x8xf32>
    %170 = arith.maximumf %168, %169 : vector<32x8xf32>
    %cst_102 = arith.constant dense<0.000000e+00> : vector<32x2xf32>
    %171 = tpu.matmul %170, %7, %cst_102 {dimension_numbers = #tpu.dot_dimension_numbers<[1], [0], [0], [1], [0, 0, 1, 1], [], []>} : vector<32x8xf32>, vector<8x2xf32>, vector<32x2xf32> -> vector<32x2xf32>
    %172 = vector.broadcast %8 : vector<1x2xf32> to vector<32x2xf32>
    %173 = arith.addf %171, %172 : vector<32x2xf32>
    %174 = vector.extract_strided_slice %173 {offsets = [0, 0], sizes = [32, 1], strides = [1, 1]} : vector<32x2xf32> to vector<32x1xf32>
    %cst_103 = arith.constant 5.000000e+00 : f32
    %175 = vector.broadcast %cst_103 : f32 to vector<32x1xf32>
    %176 = arith.minimumf %174, %175 : vector<32x1xf32>
    %177 = math.exp %176 : vector<32x1xf32>
    %cst_104 = arith.constant 0.020833334 : f32
    %cst_105 = arith.constant 1.000000e+02 : f32
    %178 = vector.broadcast %cst_104 : f32 to vector<32x1xf32>
    %179 = arith.maximumf %178, %177 : vector<32x1xf32>
    %180 = vector.broadcast %cst_105 : f32 to vector<32x1xf32>
    %181 = arith.minimumf %180, %179 : vector<32x1xf32>
    %c0_106 = arith.constant 0 : index
    %c0_107 = arith.constant 0 : index
    %182 = vector.load %arg28[%c0_106, %c0_107] : memref<32x1xf32, #tpu.memory_space<vmem>>, vector<32x1xf32>
    tpu.vector_store %arg28[%c0_106, %c0_107], %181 {strides = array<i32>} : memref<32x1xf32, #tpu.memory_space<vmem>>, vector<32x1xf32>,
    %183 = vector.extract_strided_slice %173 {offsets = [0, 1], sizes = [32, 1], strides = [1, 1]} : vector<32x2xf32> to vector<32x1xf32>
    %cst_108 = arith.constant 0.000000e+00 : f32
    %184 = vector.broadcast %cst_108 : f32 to vector<32x1xf32>
    %185 = arith.subf %184, %183 : vector<32x1xf32>
    %186 = math.exp %185 : vector<32x1xf32>
    %cst_109 = arith.constant 1.000000e+00 : f32
    %187 = vector.broadcast %cst_109 : f32 to vector<32x1xf32>
    %188 = arith.addf %187, %186 : vector<32x1xf32>
    %cst_110 = arith.constant 1.000000e+00 : f32
    %189 = vector.broadcast %cst_110 : f32 to vector<32x1xf32>
    %190 = arith.divf %189, %188 : vector<32x1xf32>
    %c0_111 = arith.constant 0 : index
    %c0_112 = arith.constant 0 : index
    %191 = vector.load %arg29[%c0_111, %c0_112] : memref<32x1xf32, #tpu.memory_space<vmem>>, vector<32x1xf32>
    tpu.vector_store %arg29[%c0_111, %c0_112], %190 {strides = array<i32>} : memref<32x1xf32, #tpu.memory_space<vmem>>, vector<32x1xf32>,
    return
  }
  func.func @transform_0(%arg0: i32) -> (i32, i32) {
    %c0_i32 = arith.constant 0 : i32
    %c0_i32_0 = arith.constant 0 : i32
    %c0_i32_1 = arith.constant 0 : i32
    return %c0_i32, %c0_i32_0 : i32, i32
  }
  func.func @transform_1(%arg0: i32) -> (i32, i32) {
    %c0_i32 = arith.constant 0 : i32
    %c0_i32_0 = arith.constant 0 : i32
    %c0_i32_1 = arith.constant 0 : i32
    return %c0_i32, %c0_i32_0 : i32, i32
  }
  func.func @transform_2(%arg0: i32) -> (i32, i32) {
    %c0_i32 = arith.constant 0 : i32
    %c0_i32_0 = arith.constant 0 : i32
    %c0_i32_1 = arith.constant 0 : i32
    return %c0_i32, %c0_i32_0 : i32, i32
  }
  func.func @transform_3(%arg0: i32) -> (i32, i32, i32) {
    %c0_i32 = arith.constant 0 : i32
    %c0_i32_0 = arith.constant 0 : i32
    %c0_i32_1 = arith.constant 0 : i32
    %c0_i32_2 = arith.constant 0 : i32
    return %c0_i32, %c0_i32_0, %c0_i32_1 : i32, i32, i32
  }
  func.func @transform_4(%arg0: i32) -> (i32, i32) {
    %c0_i32 = arith.constant 0 : i32
    %c0_i32_0 = arith.constant 0 : i32
    %c0_i32_1 = arith.constant 0 : i32
    return %c0_i32, %c0_i32_0 : i32, i32
  }
  func.func @transform_5(%arg0: i32) -> (i32, i32, i32) {
    %c0_i32 = arith.constant 0 : i32
    %c0_i32_0 = arith.constant 0 : i32
    %c0_i32_1 = arith.constant 0 : i32
    %c0_i32_2 = arith.constant 0 : i32
    return %c0_i32, %c0_i32_0, %c0_i32_1 : i32, i32, i32
  }
  func.func @transform_6(%arg0: i32) -> (i32, i32) {
    %c0_i32 = arith.constant 0 : i32
    %c0_i32_0 = arith.constant 0 : i32
    %c0_i32_1 = arith.constant 0 : i32
    return %c0_i32, %c0_i32_0 : i32, i32
  }
  func.func @transform_7(%arg0: i32) -> (i32, i32) {
    %c0_i32 = arith.constant 0 : i32
    %c0_i32_0 = arith.constant 0 : i32
    %c0_i32_1 = arith.constant 0 : i32
    return %c0_i32, %c0_i32_0 : i32, i32
  }
  func.func @transform_8(%arg0: i32) -> (i32, i32) {
    %c0_i32 = arith.constant 0 : i32
    %c0_i32_0 = arith.constant 0 : i32
    %c0_i32_1 = arith.constant 0 : i32
    return %c0_i32, %c0_i32_0 : i32, i32
  }
  func.func @transform_9(%arg0: i32) -> (i32, i32, i32) {
    %c0_i32 = arith.constant 0 : i32
    %c0_i32_0 = arith.constant 0 : i32
    %c0_i32_1 = arith.constant 0 : i32
    %c0_i32_2 = arith.constant 0 : i32
    return %c0_i32, %c0_i32_0, %c0_i32_1 : i32, i32, i32
  }
  func.func @transform_10(%arg0: i32) -> (i32, i32) {
    %c0_i32 = arith.constant 0 : i32
    %c0_i32_0 = arith.constant 0 : i32
    %c0_i32_1 = arith.constant 0 : i32
    return %c0_i32, %c0_i32_0 : i32, i32
  }
  func.func @transform_11(%arg0: i32) -> (i32, i32, i32) {
    %c0_i32 = arith.constant 0 : i32
    %c0_i32_0 = arith.constant 0 : i32
    %c0_i32_1 = arith.constant 0 : i32
    %c0_i32_2 = arith.constant 0 : i32
    return %c0_i32, %c0_i32_0, %c0_i32_1 : i32, i32, i32
  }
  func.func @transform_12(%arg0: i32) -> (i32, i32) {
    %c0_i32 = arith.constant 0 : i32
    %c0_i32_0 = arith.constant 0 : i32
    %c0_i32_1 = arith.constant 0 : i32
    return %c0_i32, %c0_i32_0 : i32, i32
  }
  func.func @transform_13(%arg0: i32) -> (i32, i32) {
    %c0_i32 = arith.constant 0 : i32
    %c0_i32_0 = arith.constant 0 : i32
    %c0_i32_1 = arith.constant 0 : i32
    return %c0_i32, %c0_i32_0 : i32, i32
  }
  func.func @transform_14(%arg0: i32) -> (i32, i32) {
    %c0_i32 = arith.constant 0 : i32
    %c0_i32_0 = arith.constant 0 : i32
    %c0_i32_1 = arith.constant 0 : i32
    return %c0_i32, %c0_i32_0 : i32, i32
  }
  func.func @transform_15(%arg0: i32) -> (i32, i32, i32) {
    %c0_i32 = arith.constant 0 : i32
    %c0_i32_0 = arith.constant 0 : i32
    %c0_i32_1 = arith.constant 0 : i32
    %c0_i32_2 = arith.constant 0 : i32
    return %c0_i32, %c0_i32_0, %c0_i32_1 : i32, i32, i32
  }
  func.func @transform_16(%arg0: i32) -> (i32, i32) {
    %c0_i32 = arith.constant 0 : i32
    %c0_i32_0 = arith.constant 0 : i32
    %c0_i32_1 = arith.constant 0 : i32
    return %c0_i32, %c0_i32_0 : i32, i32
  }
  func.func @transform_17(%arg0: i32) -> (i32, i32, i32) {
    %c0_i32 = arith.constant 0 : i32
    %c0_i32_0 = arith.constant 0 : i32
    %c0_i32_1 = arith.constant 0 : i32
    %c0_i32_2 = arith.constant 0 : i32
    return %c0_i32, %c0_i32_0, %c0_i32_1 : i32, i32, i32
  }
  func.func @transform_18(%arg0: i32) -> (i32, i32) {
    %c0_i32 = arith.constant 0 : i32
    %c0_i32_0 = arith.constant 0 : i32
    %c0_i32_1 = arith.constant 0 : i32
    return %c0_i32, %c0_i32_0 : i32, i32
  }
  func.func @transform_19(%arg0: i32) -> (i32, i32) {
    %c0_i32 = arith.constant 0 : i32
    %c0_i32_0 = arith.constant 0 : i32
    %c0_i32_1 = arith.constant 0 : i32
    return %c0_i32, %c0_i32_0 : i32, i32
  }
  func.func @transform_20(%arg0: i32) -> (i32, i32) {
    %c0_i32 = arith.constant 0 : i32
    %c0_i32_0 = arith.constant 0 : i32
    %c0_i32_1 = arith.constant 0 : i32
    return %c0_i32, %c0_i32_0 : i32, i32
  }
  func.func @transform_21(%arg0: i32) -> (i32, i32) {
    %c0_i32 = arith.constant 0 : i32
    %c0_i32_0 = arith.constant 0 : i32
    %c0_i32_1 = arith.constant 0 : i32
    return %c0_i32, %c0_i32_0 : i32, i32
  }
  func.func @transform_22(%arg0: i32) -> (i32, i32) {
    %c0_i32 = arith.constant 0 : i32
    %c0_i32_0 = arith.constant 0 : i32
    %c0_i32_1 = arith.constant 0 : i32
    return %c0_i32, %c0_i32_0 : i32, i32
  }
  func.func @transform_23(%arg0: i32) -> (i32, i32) {
    %c0_i32 = arith.constant 0 : i32
    %c0_i32_0 = arith.constant 0 : i32
    %c0_i32_1 = arith.constant 0 : i32
    return %c0_i32, %c0_i32_0 : i32, i32
  }
  func.func @transform_24(%arg0: i32) -> (i32, i32) {
    %c0_i32 = arith.constant 0 : i32
    %c0_i32_0 = arith.constant 0 : i32
    %c0_i32_1 = arith.constant 0 : i32
    return %c0_i32, %c0_i32_0 : i32, i32
  }
  func.func @transform_25(%arg0: i32) -> (i32, i32) {
    %c0_i32 = arith.constant 0 : i32
    %c0_i32_0 = arith.constant 0 : i32
    %c0_i32_1 = arith.constant 0 : i32
    return %c0_i32, %c0_i32_0 : i32, i32
  }
  func.func @transform_26(%arg0: i32) -> (i32, i32) {
    %c0_i32 = arith.constant 0 : i32
    %c0_i32_0 = arith.constant 0 : i32
    %c0_i32_1 = arith.constant 0 : i32
    return %c0_i32, %c0_i32_0 : i32, i32
  }
  func.func @transform_27(%arg0: i32) -> (i32, i32) {
    %c0_i32 = arith.constant 0 : i32
    %c0_i32_0 = arith.constant 0 : i32
    %c0_i32_1 = arith.constant 0 : i32
    return %c0_i32, %c0_i32_0 : i32, i32
  }
  func.func @transform_28(%arg0: i32) -> (i32, i32) {
    %c0_i32 = arith.constant 0 : i32
    %c0_i32_0 = arith.constant 0 : i32
    %c0_i32_1 = arith.constant 0 : i32
    return %c0_i32, %c0_i32_0 : i32, i32
  }
}

</mosaic_0001>

<llo_original>
// kernel: tpc_forward.1
$region0: #{tpc_forward.1}
  #allocation0 [shape = 'u32[]', space=smem, size = 0x4, offset = 0x4, fixed_abs, tag = 'smem constant byte address 0x4 - core index']
  #allocation1 [shape = 'u32[72,128]{1,0:T(1,128)}', space=vmem, size = 0x9000, scoped, tag = 'internal scratch']
  %s0 = inlined_call_operand.vmem [shape: f32[32,9], index: 0, kind: input, shape index: {}]
  %s1 = inlined_call_operand.vmem [shape: f32[32,3], index: 1, kind: input, shape index: {}]
  %s2 = inlined_call_operand.hbm [shape: f32[9,8], index: 2, kind: input, shape index: {}]
  %s3 = inlined_call_operand.hbm [shape: f32[3,8,12], index: 3, kind: input, shape index: {}]
  %s4 = inlined_call_operand.hbm [shape: f32[1,12], index: 4, kind: input, shape index: {}]
  %s5 = inlined_call_operand.hbm [shape: f32[2,32,32], index: 5, kind: input, shape index: {}]
  %s6 = inlined_call_operand.hbm [shape: f32[12,2], index: 6, kind: input, shape index: {}]
  %s7 = inlined_call_operand.hbm [shape: f32[1,2], index: 7, kind: input, shape index: {}]
  %s8 = inlined_call_operand.hbm [shape: f32[18,24], index: 8, kind: input, shape index: {}]
  %s9 = inlined_call_operand.vmem [shape: f32[3,24,18], index: 9, kind: input, shape index: {}]
  %s10 = inlined_call_operand.hbm [shape: f32[1,18], index: 10, kind: input, shape index: {}]
  %s11 = inlined_call_operand.hbm [shape: f32[2,32,32], index: 11, kind: input, shape index: {}]
  %s12 = inlined_call_operand.hbm [shape: f32[26,2], index: 12, kind: input, shape index: {}]
  %s13 = inlined_call_operand.hbm [shape: f32[1,2], index: 13, kind: input, shape index: {}]
  %s14 = inlined_call_operand.hbm [shape: f32[26,32], index: 14, kind: input, shape index: {}]
  %s15 = inlined_call_operand.hbm [shape: f32[3,32,24], index: 15, kind: input, shape index: {}]
  %s16 = inlined_call_operand.hbm [shape: f32[1,24], index: 16, kind: input, shape index: {}]
  %s17 = inlined_call_operand.hbm [shape: f32[2,32,32], index: 17, kind: input, shape index: {}]
  %s18 = inlined_call_operand.vmem [shape: f32[32,2], index: 18, kind: input, shape index: {}]
  %s19 = inlined_call_operand.hbm [shape: f32[1,2], index: 19, kind: input, shape index: {}]
  %s20 = inlined_call_operand.hbm [shape: f32[34,40], index: 20, kind: input, shape index: {}]
  %s21 = inlined_call_operand.hbm [shape: f32[43,8], index: 21, kind: input, shape index: {}]
  %s22 = inlined_call_operand.hbm [shape: f32[1,8], index: 22, kind: input, shape index: {}]
  %s23 = inlined_call_operand.hbm [shape: f32[1,8], index: 23, kind: input, shape index: {}]
  %s24 = inlined_call_operand.hbm [shape: f32[1,8], index: 24, kind: input, shape index: {}]
  %s25 = inlined_call_operand.vmem [shape: f32[8,2], index: 25, kind: input, shape index: {}]
  %s26 = inlined_call_operand.vmem [shape: f32[1,2], index: 26, kind: input, shape index: {}]
  %s27 = inlined_call_operand.vmem [shape: f32[32,1], index: 27, kind: output, shape index: {0}]
  %s28 = inlined_call_operand.vmem [shape: f32[32,1], index: 28, kind: output, shape index: {1}]
  %29 = xla_tuple %s27, %s28
  %s30 = sld [smem:[#allocation0]]
  $region210: #{tpc_forward.1} parent=0
    _
  %s32 = ssub.s32 1, %s30
  %s33 = scalar_select 0, %s32, %s30
  $region1: #{tpc_forward.1} parent=0
    #allocation2 [shape = 'u8[8192]{0}', space=vmem, size = 0x2000, scoped, tag = 'input window, operand 2, single buffered']
    #allocation3 [shape = 's32[1]{0}', space=sflag, size = 0x4, scoped, tag = 'scoped memory for tpc_forward.1']
    #allocation4 [shape = 'u8[12288]{0}', space=vmem, size = 0x3000, scoped, tag = 'input window, operand 3, single buffered']
    #allocation5 [shape = 's32[1]{0}', space=sflag, size = 0x4, scoped, tag = 'scoped memory for tpc_forward.1']
    #allocation6 [shape = 'u8[512]{0}', space=vmem, size = 0x400, scoped, tag = 'input window, operand 4, single buffered']
    #allocation7 [shape = 'u8[32768]{0}', space=vmem, size = 0x8000, scoped, tag = 'input window, operand 5, single buffered']
    #allocation8 [shape = 's32[1]{0}', space=sflag, size = 0x4, scoped, tag = 'scoped memory for tpc_forward.1']
    #allocation9 [shape = 'u8[8192]{0}', space=vmem, size = 0x2000, scoped, tag = 'input window, operand 6, single buffered']
    #allocation10 [shape = 'u8[512]{0}', space=vmem, size = 0x400, scoped, tag = 'input window, operand 7, single buffered']
    #allocation11 [shape = 's32[1]{0}', space=sflag, size = 0x4, scoped, tag = 'scoped memory for tpc_forward.1']
    #allocation12 [shape = 'u8[12288]{0}', space=vmem, size = 0x3000, scoped, tag = 'input window, operand 8, single buffered']
    #allocation13 [shape = 'u8[512]{0}', space=vmem, size = 0x400, scoped, tag = 'input window, operand 10, single buffered']
    #allocation14 [shape = 's32[1]{0}', space=sflag, size = 0x4, scoped, tag = 'scoped memory for tpc_forward.1']
    #allocation15 [shape = 'u8[32768]{0}', space=vmem, size = 0x8000, scoped, tag = 'input window, operand 11, single buffered']
    #allocation16 [shape = 'u8[16384]{0}', space=vmem, size = 0x4000, scoped, tag = 'input window, operand 12, single buffered']
    #allocation17 [shape = 's32[1]{0}', space=sflag, size = 0x4, scoped, tag = 'scoped memory for tpc_forward.1']
    #allocation18 [shape = 'u8[512]{0}', space=vmem, size = 0x400, scoped, tag = 'input window, operand 13, single buffered']
    #allocation19 [shape = 'u8[16384]{0}', space=vmem, size = 0x4000, scoped, tag = 'input window, operand 14, single buffered']
    #allocation20 [shape = 's32[1]{0}', space=sflag, size = 0x4, scoped, tag = 'scoped memory for tpc_forward.1']
    #allocation21 [shape = 'u8[49152]{0}', space=vmem, size = 0xc000, scoped, tag = 'input window, operand 15, single buffered']
    #allocation22 [shape = 'u8[512]{0}', space=vmem, size = 0x400, scoped, tag = 'input window, operand 16, single buffered']
    #allocation23 [shape = 's32[1]{0}', space=sflag, size = 0x4, scoped, tag = 'scoped memory for tpc_forward.1']
    #allocation24 [shape = 'u8[32768]{0}', space=vmem, size = 0x8000, scoped, tag = 'input window, operand 17, single buffered']
    #allocation25 [shape = 'u8[512]{0}', space=vmem, size = 0x400, scoped, tag = 'input window, operand 19, single buffered']
    #allocation26 [shape = 's32[1]{0}', space=sflag, size = 0x4, scoped, tag = 'scoped memory for tpc_forward.1']
    #allocation27 [shape = 'u8[20480]{0}', space=vmem, size = 0x5000, scoped, tag = 'input window, operand 20, single buffered']
    #allocation28 [shape = 'u8[24576]{0}', space=vmem, size = 0x6000, scoped, tag = 'input window, operand 21, single buffered']
    #allocation29 [shape = 's32[1]{0}', space=sflag, size = 0x4, scoped, tag = 'scoped memory for tpc_forward.1']
    #allocation30 [shape = 'u8[512]{0}', space=vmem, size = 0x400, scoped, tag = 'input window, operand 22, single buffered']
    #allocation31 [shape = 'u8[512]{0}', space=vmem, size = 0x400, scoped, tag = 'input window, operand 23, single buffered']
    #allocation32 [shape = 's32[1]{0}', space=sflag, size = 0x4, scoped, tag = 'scoped memory for tpc_forward.1']
    #allocation33 [shape = 'u8[512]{0}', space=vmem, size = 0x400, scoped, tag = 'input window, operand 24, single buffered']
    %34 = vsyncpa [#allocation3], 0
    %35 = vsyncpa [#allocation5], 0
    %36 = vsyncpa [#allocation8], 0
    %37 = vsyncpa [#allocation11], 0
    %38 = vsyncpa [#allocation14], 0
    %39 = vsyncpa [#allocation17], 0
    %40 = vsyncpa [#allocation20], 0
    %41 = vsyncpa [#allocation23], 0
    %42 = vsyncpa [#allocation26], 0
    %43 = vsyncpa [#allocation29], 0
    %44 = vsyncpa [#allocation32], 0
    // Predicated region
    $region2: #{tpc_forward.1} parent=1 // pred_check
      _
    $region3: #{tpc_forward.1} parent=1 // pred_check_branch
      %46 = sbr.rel (0) target = $region5
    $region4: #{tpc_forward.1} parent=1 // pred_region
      _
    $region5: #{tpc_forward.1} parent=1 // pred_fallthru
      _
    // Predicated region
    $region6: #{tpc_forward.1} parent=1 // pred_check
      _
    $region7: #{tpc_forward.1} parent=1 // pred_check_branch
      %48 = sbr.rel (0) target = $region9
    $region8: #{tpc_forward.1} parent=1 // pred_region
      _
    $region9: #{tpc_forward.1} parent=1 // pred_fallthru
      _
    // Predicated region
    $region10: #{tpc_forward.1} parent=1 // pred_check
      _
    $region11: #{tpc_forward.1} parent=1 // pred_check_branch
      %50 = sbr.rel (0) target = $region13
    $region12: #{tpc_forward.1} parent=1 // pred_region
      %52 = vsyncadd [#allocation3], 0
      %s53 = sshll.u32 %s2, 4
      %s54 = int_to_ptr.hbm [resolvable:$true] %s53
      %s55 = sshll.u32 [#allocation2], 4
      %s56 = int_to_ptr.vmem [resolvable:$true] %s55
      %61 = dma.hbm_to_vmem [thread:$0]  %s54, 256, %s56, [#allocation3], 128, 128, 8
    $region13: #{tpc_forward.1} parent=1 // pred_fallthru
      _
    // Predicated region
    $region14: #{tpc_forward.1} parent=1 // pred_check
      _
    $region15: #{tpc_forward.1} parent=1 // pred_check_branch
      %63 = sbr.rel (0) target = $region17
    $region16: #{tpc_forward.1} parent=1 // pred_region
      %65 = vsyncadd [#allocation5], 0
      %s66 = sshll.u32 %s3, 4
      %s67 = int_to_ptr.hbm [resolvable:$true] %s66
      %s68 = sshll.u32 [#allocation4], 4
      %s69 = int_to_ptr.vmem [resolvable:$true] %s68
      %74 = dma.hbm_to_vmem [thread:$0]  %s67, 384, %s69, [#allocation5], 128, 128, 8
    $region17: #{tpc_forward.1} parent=1 // pred_fallthru
      _
    // Predicated region
    $region18: #{tpc_forward.1} parent=1 // pred_check
      _
    $region19: #{tpc_forward.1} parent=1 // pred_check_branch
      %76 = sbr.rel (0) target = $region21
    $region20: #{tpc_forward.1} parent=1 // pred_region
      %78 = vsyncadd [#allocation5], 0
      %s80 = sshll.u32 %s4, 4
      %s81 = int_to_ptr.hbm [resolvable:$true] %s80
      %s82 = sshll.u32 [#allocation6], 4
      %s83 = int_to_ptr.vmem [resolvable:$true] %s82
      %85 = dma.hbm_to_vmem [thread:$0]  %s81, 16, %s83, [#allocation5]
    $region21: #{tpc_forward.1} parent=1 // pred_fallthru
      _
    // Predicated region
    $region22: #{tpc_forward.1} parent=1 // pred_check
      _
    $region23: #{tpc_forward.1} parent=1 // pred_check_branch
      %87 = sbr.rel (0) target = $region25
    $region24: #{tpc_forward.1} parent=1 // pred_region
      %89 = vsyncadd [#allocation8], 0
      %s90 = sshll.u32 %s5, 4
      %s91 = int_to_ptr.hbm [resolvable:$true] %s90
      %s92 = sshll.u32 [#allocation7], 4
      %s93 = int_to_ptr.vmem [resolvable:$true] %s92
      %98 = dma.hbm_to_vmem [thread:$0]  %s91, 1024, %s93, [#allocation8], 128, 128, 8
    $region25: #{tpc_forward.1} parent=1 // pred_fallthru
      _
    // Predicated region
    $region26: #{tpc_forward.1} parent=1 // pred_check
      _
    $region27: #{tpc_forward.1} parent=1 // pred_check_branch
      %100 = sbr.rel (0) target = $region29
    $region28: #{tpc_forward.1} parent=1 // pred_region
      %102 = vsyncadd [#allocation8], 0
      %s103 = sshll.u32 %s6, 4
      %s104 = int_to_ptr.hbm [resolvable:$true] %s103
      %s105 = sshll.u32 [#allocation9], 4
      %s106 = int_to_ptr.vmem [resolvable:$true] %s105
      %111 = dma.hbm_to_vmem [thread:$0]  %s104, 256, %s106, [#allocation8], 128, 128, 8
    $region29: #{tpc_forward.1} parent=1 // pred_fallthru
      _
    // Predicated region
    $region30: #{tpc_forward.1} parent=1 // pred_check
      _
    $region31: #{tpc_forward.1} parent=1 // pred_check_branch
      %113 = sbr.rel (0) target = $region33
    $region32: #{tpc_forward.1} parent=1 // pred_region
      %115 = vsyncadd [#allocation11], 0
      %s117 = sshll.u32 %s7, 4
      %s118 = int_to_ptr.hbm [resolvable:$true] %s117
      %s119 = sshll.u32 [#allocation10], 4
      %s120 = int_to_ptr.vmem [resolvable:$true] %s119
      %122 = dma.hbm_to_vmem [thread:$0]  %s118, 16, %s120, [#allocation11]
    $region33: #{tpc_forward.1} parent=1 // pred_fallthru
      _
    // Predicated region
    $region34: #{tpc_forward.1} parent=1 // pred_check
      _
    $region35: #{tpc_forward.1} parent=1 // pred_check_branch
      %124 = sbr.rel (0) target = $region37
    $region36: #{tpc_forward.1} parent=1 // pred_region
      %126 = vsyncadd [#allocation11], 0
      %s127 = sshll.u32 %s8, 4
      %s128 = int_to_ptr.hbm [resolvable:$true] %s127
      %s129 = sshll.u32 [#allocation12], 4
      %s130 = int_to_ptr.vmem [resolvable:$true] %s129
      %135 = dma.hbm_to_vmem [thread:$0]  %s128, 384, %s130, [#allocation11], 128, 128, 8
    $region37: #{tpc_forward.1} parent=1 // pred_fallthru
      _
    // Predicated region
    $region38: #{tpc_forward.1} parent=1 // pred_check
      _
    $region39: #{tpc_forward.1} parent=1 // pred_check_branch
      %137 = sbr.rel (0) target = $region41
    $region40: #{tpc_forward.1} parent=1 // pred_region
      _
    $region41: #{tpc_forward.1} parent=1 // pred_fallthru
      _
    // Predicated region
    $region42: #{tpc_forward.1} parent=1 // pred_check
      _
    $region43: #{tpc_forward.1} parent=1 // pred_check_branch
      %139 = sbr.rel (0) target = $region45
    $region44: #{tpc_forward.1} parent=1 // pred_region
      %141 = vsyncadd [#allocation14], 0
      %s143 = sshll.u32 %s10, 4
      %s144 = int_to_ptr.hbm [resolvable:$true] %s143
      %s145 = sshll.u32 [#allocation13], 4
      %s146 = int_to_ptr.vmem [resolvable:$true] %s145
      %148 = dma.hbm_to_vmem [thread:$0]  %s144, 16, %s146, [#allocation14]
    $region45: #{tpc_forward.1} parent=1 // pred_fallthru
      _
    // Predicated region
    $region46: #{tpc_forward.1} parent=1 // pred_check
      _
    $region47: #{tpc_forward.1} parent=1 // pred_check_branch
      %150 = sbr.rel (0) target = $region49
    $region48: #{tpc_forward.1} parent=1 // pred_region
      %152 = vsyncadd [#allocation14], 0
      %s153 = sshll.u32 %s11, 4
      %s154 = int_to_ptr.hbm [resolvable:$true] %s153
      %s155 = sshll.u32 [#allocation15], 4
      %s156 = int_to_ptr.vmem [resolvable:$true] %s155
      %161 = dma.hbm_to_vmem [thread:$0]  %s154, 1024, %s156, [#allocation14], 128, 128, 8
    $region49: #{tpc_forward.1} parent=1 // pred_fallthru
      _
    // Predicated region
    $region50: #{tpc_forward.1} parent=1 // pred_check
      _
    $region51: #{tpc_forward.1} parent=1 // pred_check_branch
      %163 = sbr.rel (0) target = $region53
    $region52: #{tpc_forward.1} parent=1 // pred_region
      %165 = vsyncadd [#allocation17], 0
      %s166 = sshll.u32 %s12, 4
      %s167 = int_to_ptr.hbm [resolvable:$true] %s166
      %s168 = sshll.u32 [#allocation16], 4
      %s169 = int_to_ptr.vmem [resolvable:$true] %s168
      %174 = dma.hbm_to_vmem [thread:$0]  %s167, 512, %s169, [#allocation17], 128, 128, 8
    $region53: #{tpc_forward.1} parent=1 // pred_fallthru
      _
    // Predicated region
    $region54: #{tpc_forward.1} parent=1 // pred_check
      _
    $region55: #{tpc_forward.1} parent=1 // pred_check_branch
      %176 = sbr.rel (0) target = $region57
    $region56: #{tpc_forward.1} parent=1 // pred_region
      %178 = vsyncadd [#allocation17], 0
      %s180 = sshll.u32 %s13, 4
      %s181 = int_to_ptr.hbm [resolvable:$true] %s180
      %s182 = sshll.u32 [#allocation18], 4
      %s183 = int_to_ptr.vmem [resolvable:$true] %s182
      %185 = dma.hbm_to_vmem [thread:$0]  %s181, 16, %s183, [#allocation17]
    $region57: #{tpc_forward.1} parent=1 // pred_fallthru
      _
    // Predicated region
    $region58: #{tpc_forward.1} parent=1 // pred_check
      _
    $region59: #{tpc_forward.1} parent=1 // pred_check_branch
      %187 = sbr.rel (0) target = $region61
    $region60: #{tpc_forward.1} parent=1 // pred_region
      %189 = vsyncadd [#allocation20], 0
      %s190 = sshll.u32 %s14, 4
      %s191 = int_to_ptr.hbm [resolvable:$true] %s190
      %s192 = sshll.u32 [#allocation19], 4
      %s193 = int_to_ptr.vmem [resolvable:$true] %s192
      %198 = dma.hbm_to_vmem [thread:$0]  %s191, 512, %s193, [#allocation20], 128, 128, 8
    $region61: #{tpc_forward.1} parent=1 // pred_fallthru
      _
    // Predicated region
    $region62: #{tpc_forward.1} parent=1 // pred_check
      _
    $region63: #{tpc_forward.1} parent=1 // pred_check_branch
      %200 = sbr.rel (0) target = $region65
    $region64: #{tpc_forward.1} parent=1 // pred_region
      %202 = vsyncadd [#allocation20], 0
      %s203 = sshll.u32 %s15, 4
      %s204 = int_to_ptr.hbm [resolvable:$true] %s203
      %s205 = sshll.u32 [#allocation21], 4
      %s206 = int_to_ptr.vmem [resolvable:$true] %s205
      %211 = dma.hbm_to_vmem [thread:$0]  %s204, 1536, %s206, [#allocation20], 128, 128, 8
    $region65: #{tpc_forward.1} parent=1 // pred_fallthru
      _
    // Predicated region
    $region66: #{tpc_forward.1} parent=1 // pred_check
      _
    $region67: #{tpc_forward.1} parent=1 // pred_check_branch
      %213 = sbr.rel (0) target = $region69
    $region68: #{tpc_forward.1} parent=1 // pred_region
      %215 = vsyncadd [#allocation23], 0
      %s217 = sshll.u32 %s16, 4
      %s218 = int_to_ptr.hbm [resolvable:$true] %s217
      %s219 = sshll.u32 [#allocation22], 4
      %s220 = int_to_ptr.vmem [resolvable:$true] %s219
      %222 = dma.hbm_to_vmem [thread:$0]  %s218, 16, %s220, [#allocation23]
    $region69: #{tpc_forward.1} parent=1 // pred_fallthru
      _
    // Predicated region
    $region70: #{tpc_forward.1} parent=1 // pred_check
      _
    $region71: #{tpc_forward.1} parent=1 // pred_check_branch
      %224 = sbr.rel (0) target = $region73
    $region72: #{tpc_forward.1} parent=1 // pred_region
      %226 = vsyncadd [#allocation23], 0
      %s227 = sshll.u32 %s17, 4
      %s228 = int_to_ptr.hbm [resolvable:$true] %s227
      %s229 = sshll.u32 [#allocation24], 4
      %s230 = int_to_ptr.vmem [resolvable:$true] %s229
      %235 = dma.hbm_to_vmem [thread:$0]  %s228, 1024, %s230, [#allocation23], 128, 128, 8
    $region73: #{tpc_forward.1} parent=1 // pred_fallthru
      _
    // Predicated region
    $region74: #{tpc_forward.1} parent=1 // pred_check
      _
    $region75: #{tpc_forward.1} parent=1 // pred_check_branch
      %237 = sbr.rel (0) target = $region77
    $region76: #{tpc_forward.1} parent=1 // pred_region
      _
    $region77: #{tpc_forward.1} parent=1 // pred_fallthru
      _
    // Predicated region
    $region78: #{tpc_forward.1} parent=1 // pred_check
      _
    $region79: #{tpc_forward.1} parent=1 // pred_check_branch
      %239 = sbr.rel (0) target = $region81
    $region80: #{tpc_forward.1} parent=1 // pred_region
      %241 = vsyncadd [#allocation26], 0
      %s243 = sshll.u32 %s19, 4
      %s244 = int_to_ptr.hbm [resolvable:$true] %s243
      %s245 = sshll.u32 [#allocation25], 4
      %s246 = int_to_ptr.vmem [resolvable:$true] %s245
      %248 = dma.hbm_to_vmem [thread:$0]  %s244, 16, %s246, [#allocation26]
    $region81: #{tpc_forward.1} parent=1 // pred_fallthru
      _
    // Predicated region
    $region82: #{tpc_forward.1} parent=1 // pred_check
      _
    $region83: #{tpc_forward.1} parent=1 // pred_check_branch
      %250 = sbr.rel (0) target = $region85
    $region84: #{tpc_forward.1} parent=1 // pred_region
      %252 = vsyncadd [#allocation26], 0
      %s253 = sshll.u32 %s20, 4
      %s254 = int_to_ptr.hbm [resolvable:$true] %s253
      %s255 = sshll.u32 [#allocation27], 4
      %s256 = int_to_ptr.vmem [resolvable:$true] %s255
      %261 = dma.hbm_to_vmem [thread:$0]  %s254, 640, %s256, [#allocation26], 128, 128, 8
    $region85: #{tpc_forward.1} parent=1 // pred_fallthru
      _
    // Predicated region
    $region86: #{tpc_forward.1} parent=1 // pred_check
      _
    $region87: #{tpc_forward.1} parent=1 // pred_check_branch
      %263 = sbr.rel (0) target = $region89
    $region88: #{tpc_forward.1} parent=1 // pred_region
      %265 = vsyncadd [#allocation29], 0
      %s266 = sshll.u32 %s21, 4
      %s267 = int_to_ptr.hbm [resolvable:$true] %s266
      %s268 = sshll.u32 [#allocation28], 4
      %s269 = int_to_ptr.vmem [resolvable:$true] %s268
      %274 = dma.hbm_to_vmem [thread:$0]  %s267, 768, %s269, [#allocation29], 128, 128, 8
    $region89: #{tpc_forward.1} parent=1 // pred_fallthru
      _
    // Predicated region
    $region90: #{tpc_forward.1} parent=1 // pred_check
      _
    $region91: #{tpc_forward.1} parent=1 // pred_check_branch
      %276 = sbr.rel (0) target = $region93
    $region92: #{tpc_forward.1} parent=1 // pred_region
      %278 = vsyncadd [#allocation29], 0
      %s280 = sshll.u32 %s22, 4
      %s281 = int_to_ptr.hbm [resolvable:$true] %s280
      %s282 = sshll.u32 [#allocation30], 4
      %s283 = int_to_ptr.vmem [resolvable:$true] %s282
      %285 = dma.hbm_to_vmem [thread:$0]  %s281, 16, %s283, [#allocation29]
    $region93: #{tpc_forward.1} parent=1 // pred_fallthru
      _
    // Predicated region
    $region94: #{tpc_forward.1} parent=1 // pred_check
      _
    $region95: #{tpc_forward.1} parent=1 // pred_check_branch
      %287 = sbr.rel (0) target = $region97
    $region96: #{tpc_forward.1} parent=1 // pred_region
      %289 = vsyncadd [#allocation32], 0
      %s291 = sshll.u32 %s23, 4
      %s292 = int_to_ptr.hbm [resolvable:$true] %s291
      %s293 = sshll.u32 [#allocation31], 4
      %s294 = int_to_ptr.vmem [resolvable:$true] %s293
      %296 = dma.hbm_to_vmem [thread:$0]  %s292, 16, %s294, [#allocation32]
    $region97: #{tpc_forward.1} parent=1 // pred_fallthru
      _
    // Predicated region
    $region98: #{tpc_forward.1} parent=1 // pred_check
      _
    $region99: #{tpc_forward.1} parent=1 // pred_check_branch
      %298 = sbr.rel (0) target = $region101
    $region100: #{tpc_forward.1} parent=1 // pred_region
      %300 = vsyncadd [#allocation32], 0
      %s302 = sshll.u32 %s24, 4
      %s303 = int_to_ptr.hbm [resolvable:$true] %s302
      %s304 = sshll.u32 [#allocation33], 4
      %s305 = int_to_ptr.vmem [resolvable:$true] %s304
      %307 = dma.hbm_to_vmem [thread:$0]  %s303, 16, %s305, [#allocation32]
    $region101: #{tpc_forward.1} parent=1 // pred_fallthru
      _
    // Predicated region
    $region102: #{tpc_forward.1} parent=1 // pred_check
      _
    $region103: #{tpc_forward.1} parent=1 // pred_check_branch
      %309 = sbr.rel (0) target = $region105
    $region104: #{tpc_forward.1} parent=1 // pred_region
      _
    $region105: #{tpc_forward.1} parent=1 // pred_fallthru
      _
    // Predicated region
    $region106: #{tpc_forward.1} parent=1 // pred_check
      _
    $region107: #{tpc_forward.1} parent=1 // pred_check_branch
      %311 = sbr.rel (0) target = $region109
    $region108: #{tpc_forward.1} parent=1 // pred_region
      _
    $region109: #{tpc_forward.1} parent=1 // pred_fallthru
      _
    // Predicated region
    $region110: #{tpc_forward.1} parent=1 // pred_check
      _
    $region111: #{tpc_forward.1} parent=1 // pred_check_branch
      %313 = sbr.rel (0) target = $region113
    $region112: #{tpc_forward.1} parent=1 // pred_region
      %315 = dma.done [#allocation3], 256
    $region113: #{tpc_forward.1} parent=1 // pred_fallthru
      _
    // Predicated region
    $region114: #{tpc_forward.1} parent=1 // pred_check
      _
    $region115: #{tpc_forward.1} parent=1 // pred_check_branch
      %317 = sbr.rel (0) target = $region117
    $region116: #{tpc_forward.1} parent=1 // pred_region
      %319 = dma.done [#allocation5], 384
    $region117: #{tpc_forward.1} parent=1 // pred_fallthru
      _
    // Predicated region
    $region118: #{tpc_forward.1} parent=1 // pred_check
      _
    $region119: #{tpc_forward.1} parent=1 // pred_check_branch
      %321 = sbr.rel (0) target = $region121
    $region120: #{tpc_forward.1} parent=1 // pred_region
      %323 = dma.done [#allocation5], 16
    $region121: #{tpc_forward.1} parent=1 // pred_fallthru
      _
    // Predicated region
    $region122: #{tpc_forward.1} parent=1 // pred_check
      _
    $region123: #{tpc_forward.1} parent=1 // pred_check_branch
      %325 = sbr.rel (0) target = $region125
    $region124: #{tpc_forward.1} parent=1 // pred_region
      %327 = dma.done [#allocation8], 1024
    $region125: #{tpc_forward.1} parent=1 // pred_fallthru
      _
    // Predicated region
    $region126: #{tpc_forward.1} parent=1 // pred_check
      _
    $region127: #{tpc_forward.1} parent=1 // pred_check_branch
      %329 = sbr.rel (0) target = $region129
    $region128: #{tpc_forward.1} parent=1 // pred_region
      %331 = dma.done [#allocation8], 256
    $region129: #{tpc_forward.1} parent=1 // pred_fallthru
      _
    // Predicated region
    $region130: #{tpc_forward.1} parent=1 // pred_check
      _
    $region131: #{tpc_forward.1} parent=1 // pred_check_branch
      %333 = sbr.rel (0) target = $region133
    $region132: #{tpc_forward.1} parent=1 // pred_region
      %335 = dma.done [#allocation11], 16
    $region133: #{tpc_forward.1} parent=1 // pred_fallthru
      _
    // Predicated region
    $region134: #{tpc_forward.1} parent=1 // pred_check
      _
    $region135: #{tpc_forward.1} parent=1 // pred_check_branch
      %337 = sbr.rel (0) target = $region137
    $region136: #{tpc_forward.1} parent=1 // pred_region
      %339 = dma.done [#allocation11], 384
    $region137: #{tpc_forward.1} parent=1 // pred_fallthru
      _
    // Predicated region
    $region138: #{tpc_forward.1} parent=1 // pred_check
      _
    $region139: #{tpc_forward.1} parent=1 // pred_check_branch
      %341 = sbr.rel (0) target = $region141
    $region140: #{tpc_forward.1} parent=1 // pred_region
      %343 = dma.done [#allocation14], 16
    $region141: #{tpc_forward.1} parent=1 // pred_fallthru
      _
    // Predicated region
    $region142: #{tpc_forward.1} parent=1 // pred_check
      _
    $region143: #{tpc_forward.1} parent=1 // pred_check_branch
      %345 = sbr.rel (0) target = $region145
    $region144: #{tpc_forward.1} parent=1 // pred_region
      %347 = dma.done [#allocation14], 1024
    $region145: #{tpc_forward.1} parent=1 // pred_fallthru
      _
    // Predicated region
    $region146: #{tpc_forward.1} parent=1 // pred_check
      _
    $region147: #{tpc_forward.1} parent=1 // pred_check_branch
      %349 = sbr.rel (0) target = $region149
    $region148: #{tpc_forward.1} parent=1 // pred_region
      %351 = dma.done [#allocation17], 512
    $region149: #{tpc_forward.1} parent=1 // pred_fallthru
      _
    // Predicated region
    $region150: #{tpc_forward.1} parent=1 // pred_check
      _
    $region151: #{tpc_forward.1} parent=1 // pred_check_branch
      %353 = sbr.rel (0) target = $region153
    $region152: #{tpc_forward.1} parent=1 // pred_region
      %355 = dma.done [#allocation17], 16
    $region153: #{tpc_forward.1} parent=1 // pred_fallthru
      _
    // Predicated region
    $region154: #{tpc_forward.1} parent=1 // pred_check
      _
    $region155: #{tpc_forward.1} parent=1 // pred_check_branch
      %357 = sbr.rel (0) target = $region157
    $region156: #{tpc_forward.1} parent=1 // pred_region
      %359 = dma.done [#allocation20], 512
    $region157: #{tpc_forward.1} parent=1 // pred_fallthru
      _
    // Predicated region
    $region158: #{tpc_forward.1} parent=1 // pred_check
      _
    $region159: #{tpc_forward.1} parent=1 // pred_check_branch
      %361 = sbr.rel (0) target = $region161
    $region160: #{tpc_forward.1} parent=1 // pred_region
      %363 = dma.done [#allocation20], 1536
    $region161: #{tpc_forward.1} parent=1 // pred_fallthru
      _
    // Predicated region
    $region162: #{tpc_forward.1} parent=1 // pred_check
      _
    $region163: #{tpc_forward.1} parent=1 // pred_check_branch
      %365 = sbr.rel (0) target = $region165
    $region164: #{tpc_forward.1} parent=1 // pred_region
      %367 = dma.done [#allocation23], 16
    $region165: #{tpc_forward.1} parent=1 // pred_fallthru
      _
    // Predicated region
    $region166: #{tpc_forward.1} parent=1 // pred_check
      _
    $region167: #{tpc_forward.1} parent=1 // pred_check_branch
      %369 = sbr.rel (0) target = $region169
    $region168: #{tpc_forward.1} parent=1 // pred_region
      %371 = dma.done [#allocation23], 1024
    $region169: #{tpc_forward.1} parent=1 // pred_fallthru
      _
    // Predicated region
    $region170: #{tpc_forward.1} parent=1 // pred_check
      _
    $region171: #{tpc_forward.1} parent=1 // pred_check_branch
      %373 = sbr.rel (0) target = $region173
    $region172: #{tpc_forward.1} parent=1 // pred_region
      %375 = dma.done [#allocation26], 16
    $region173: #{tpc_forward.1} parent=1 // pred_fallthru
      _
    // Predicated region
    $region174: #{tpc_forward.1} parent=1 // pred_check
      _
    $region175: #{tpc_forward.1} parent=1 // pred_check_branch
      %377 = sbr.rel (0) target = $region177
    $region176: #{tpc_forward.1} parent=1 // pred_region
      %379 = dma.done [#allocation26], 640
    $region177: #{tpc_forward.1} parent=1 // pred_fallthru
      _
    // Predicated region
    $region178: #{tpc_forward.1} parent=1 // pred_check
      _
    $region179: #{tpc_forward.1} parent=1 // pred_check_branch
      %381 = sbr.rel (0) target = $region181
    $region180: #{tpc_forward.1} parent=1 // pred_region
      %383 = dma.done [#allocation29], 768
    $region181: #{tpc_forward.1} parent=1 // pred_fallthru
      _
    // Predicated region
    $region182: #{tpc_forward.1} parent=1 // pred_check
      _
    $region183: #{tpc_forward.1} parent=1 // pred_check_branch
      %385 = sbr.rel (0) target = $region185
    $region184: #{tpc_forward.1} parent=1 // pred_region
      %387 = dma.done [#allocation29], 16
    $region185: #{tpc_forward.1} parent=1 // pred_fallthru
      _
    // Predicated region
    $region186: #{tpc_forward.1} parent=1 // pred_check
      _
    $region187: #{tpc_forward.1} parent=1 // pred_check_branch
      %389 = sbr.rel (0) target = $region189
    $region188: #{tpc_forward.1} parent=1 // pred_region
      %391 = dma.done [#allocation32], 16
    $region189: #{tpc_forward.1} parent=1 // pred_fallthru
      _
    // Predicated region
    $region190: #{tpc_forward.1} parent=1 // pred_check
      _
    $region191: #{tpc_forward.1} parent=1 // pred_check_branch
      %393 = sbr.rel (0) target = $region193
    $region192: #{tpc_forward.1} parent=1 // pred_region
      %395 = dma.done [#allocation32], 16
    $region193: #{tpc_forward.1} parent=1 // pred_fallthru
      _
    %v396 = vld [vmem:[%s0] sm:$0xff]
    %v397 = vld [vmem:[%s0 + $0x8] sm:$0xff]
    %v398 = vld [vmem:[%s0 + $0x10] sm:$0xff]
    %v399 = vld [vmem:[%s0 + $0x18] sm:$0xff]
    %v400 = vld [vmem:[%s1] sm:$0xff]
    %v401 = vld [vmem:[%s1 + $0x8] sm:$0xff]
    %v402 = vld [vmem:[%s1 + $0x10] sm:$0xff]
    %v403 = vld [vmem:[%s1 + $0x18] sm:$0xff]
    %v404 = vld [vmem:[#allocation2] sm:$0xff]
    %v405 = vld [vmem:[#allocation2 + $0x8] sm:$0x1]
    %v406 = vld [vmem:[#allocation28] sm:$0xff]
    %v407 = vld [vmem:[#allocation28 + $0x8] sm:$0xff]
    %v408 = vld [vmem:[#allocation28 + $0x10] sm:$0xff]
    %v409 = vld [vmem:[#allocation28 + $0x18] sm:$0xff]
    %v410 = vld [vmem:[#allocation28 + $0x20] sm:$0xff]
    %v411 = vld [vmem:[#allocation28 + $0x28] sm:$0x7]
    %v412 = vld [vmem:[#allocation30] sm:$0x1]
    %v413 = vld [vmem:[#allocation31] sm:$0x1]
    %v414 = vld [vmem:[#allocation33] sm:$0x1]
    %v415 = vld [vmem:[%s25] sm:$0xff]
    %v416 = vld [vmem:[%s26] sm:$0x1]
    %vm417 = vcmask 72704
    %v419 = vsel %vm417, %v396, 0
    %v422 = vsel %vm417, %v397, 0
    %v425 = vsel %vm417, %v398, 0
    %v428 = vsel %vm417, %v399, 0
    %vm430 = vcmask 1040384
    %v432 = vsel %vm430, %v405, 0
    %434 = vmatpush.msra.mxu0 0.0
    %435 = vmatpush.msra.mxu0 0.0
    %436 = vmatpush.msra.mxu0 0.0
    %437 = vmatpush.msra.mxu0 0.0
    %438 = vmatpush.msra.mxu0 0.0
    %439 = vmatpush.msra.mxu0 0.0
    %440 = vmatpush.msra.mxu0 0.0
    %441 = vmatpush.msra.mxu0 0.0
    %442 = vmatpush.msra.mxu0 0.0
    %443 = vmatpush.msra.mxu0 0.0
    %444 = vmatpush.msra.mxu0 0.0
    %445 = vmatpush.msra.mxu0 0.0
    %446 = vmatpush.msra.mxu0 0.0
    %447 = vmatpush.msra.mxu0 0.0
    %448 = vmatpush.msra.mxu0 %v432
    %449 = vmatpush.msra.mxu0 %v404
    %450 = vmatmul.f32.gmra.mxu0 %v419
    %v451 = vpop.f32.mrf.mxu0
    %v452 = vadd.f32 0.0, %v451
    %453 = vmatmul.f32.gmra.mxu0 %v422
    %v454 = vpop.f32.mrf.mxu0
    %v455 = vadd.f32 0.0, %v454
    %456 = vmatmul.f32.gmra.mxu0 %v425
    %v457 = vpop.f32.mrf.mxu0
    %v458 = vadd.f32 0.0, %v457
    %459 = vmatmul.f32.gmra.mxu0 %v428
    %v460 = vpop.f32.mrf.mxu0
    %v461 = vadd.f32 0.0, %v460
    %462 = vdwg.mxu0
    %v463 = vld [vmem:[#allocation4] sm:$0xff]
    %v464 = vld [vmem:[#allocation4 + $0x8] sm:$0xff]
    %v465 = vld [vmem:[#allocation4 + $0x10] sm:$0xff]
    %v466 = vld [vmem:[#allocation6] sm:$0x1]
    %v467 = vld [vmem:[#allocation7] sm:$0xff]
    %v468 = vld [vmem:[#allocation7 + $0x8] sm:$0xff]
    %v469 = vld [vmem:[#allocation7 + $0x10] sm:$0xff]
    %v470 = vld [vmem:[#allocation7 + $0x18] sm:$0xff]
    %v471 = vld [vmem:[#allocation7 + $0x20] sm:$0xff]
    %v472 = vld [vmem:[#allocation7 + $0x28] sm:$0xff]
    %v473 = vld [vmem:[#allocation7 + $0x30] sm:$0xff]
    %v474 = vld [vmem:[#allocation7 + $0x38] sm:$0xff]
    %v475 = vld [vmem:[#allocation9] sm:$0xff]
    %v476 = vld [vmem:[#allocation9 + $0x8] sm:$0xf]
    %v477 = vld [vmem:[#allocation10] sm:$0x1]
    %v478 = vld [vmem:[#allocation12] sm:$0xff]
    %v479 = vld [vmem:[#allocation12 + $0x8] sm:$0xff]
    %v480 = vld [vmem:[#allocation12 + $0x10] sm:$0x3]
    %v482 = vperm.slane %v466, 0
    %vm484 = vcmask 64512
    %v486 = vsel %vm484, %v452, 0
    %v489 = vsel %vm484, %v455, 0
    %v492 = vsel %vm484, %v458, 0
    %v495 = vsel %vm484, %v461, 0
    %497 = vmatpush.msra.mxu0 0.0
    %498 = vmatpush.msra.mxu0 0.0
    %499 = vmatpush.msra.mxu0 0.0
    %500 = vmatpush.msra.mxu0 0.0
    %501 = vmatpush.msra.mxu0 0.0
    %502 = vmatpush.msra.mxu0 0.0
    %503 = vmatpush.msra.mxu0 0.0
    %504 = vmatpush.msra.mxu0 0.0
    %505 = vmatpush.msra.mxu0 0.0
    %506 = vmatpush.msra.mxu0 0.0
    %507 = vmatpush.msra.mxu0 0.0
    %508 = vmatpush.msra.mxu0 0.0
    %509 = vmatpush.msra.mxu0 0.0
    %510 = vmatpush.msra.mxu0 0.0
    %511 = vmatpush.msra.mxu0 0.0
    %512 = vmatpush.msra.mxu0 %v465
    %513 = vmatmul.f32.gmra.mxu0 %v486
    %v514 = vpop.f32.mrf.mxu0
    %v515 = vadd.f32 %v482, %v514
    %516 = vmatmul.f32.gmra.mxu0 %v489
    %v517 = vpop.f32.mrf.mxu0
    %v518 = vadd.f32 %v482, %v517
    %519 = vmatmul.f32.gmra.mxu0 %v492
    %v520 = vpop.f32.mrf.mxu0
    %v521 = vadd.f32 %v482, %v520
    %522 = vmatmul.f32.gmra.mxu0 %v495
    %v523 = vpop.f32.mrf.mxu0
    %v524 = vadd.f32 %v482, %v523
    %525 = vdwg.mxu0
    %526 = vmatpush.msra.mxu0 0.0
    %527 = vmatpush.msra.mxu0 0.0
    %528 = vmatpush.msra.mxu0 0.0
    %529 = vmatpush.msra.mxu0 0.0
    %530 = vmatpush.msra.mxu0 0.0
    %531 = vmatpush.msra.mxu0 0.0
    %532 = vmatpush.msra.mxu0 0.0
    %533 = vmatpush.msra.mxu0 0.0
    %534 = vmatpush.msra.mxu0 0.0
    %535 = vmatpush.msra.mxu0 0.0
    %536 = vmatpush.msra.mxu0 0.0
    %537 = vmatpush.msra.mxu0 0.0
    %538 = vmatpush.msra.mxu0 0.0
    %539 = vmatpush.msra.mxu0 0.0
    %540 = vmatpush.msra.mxu0 0.0
    %541 = vmatpush.msra.mxu0 %v463
    %542 = vmatmul.f32.gmra.mxu0 %v486
    %v543 = vpop.f32.mrf.mxu0
    %v544 = vadd.f32 0.0, %v543
    %545 = vmatmul.f32.gmra.mxu0 %v489
    %v546 = vpop.f32.mrf.mxu0
    %v547 = vadd.f32 0.0, %v546
    %548 = vmatmul.f32.gmra.mxu0 %v492
    %v549 = vpop.f32.mrf.mxu0
    %v550 = vadd.f32 0.0, %v549
    %551 = vmatmul.f32.gmra.mxu0 %v495
    %v552 = vpop.f32.mrf.mxu0
    %v553 = vadd.f32 0.0, %v552
    %554 = vdwg.mxu0
    %vm555 = vcmask 261120
    %v557 = vsel %vm555, %v467, 0
    %v560 = vsel %vm555, %v468, 0
    %v563 = vsel %vm555, %v469, 0
    %v566 = vsel %vm555, %v470, 0
    %568 = vmatpush.msra.mxu0 0.0
    %569 = vmatpush.msra.mxu0 0.0
    %570 = vmatpush.msra.mxu0 0.0
    %571 = vmatpush.msra.mxu0 0.0
    %572 = vmatpush.msra.mxu0 0.0
    %573 = vmatpush.msra.mxu0 0.0
    %574 = vmatpush.msra.mxu0 0.0
    %575 = vmatpush.msra.mxu0 0.0
    %576 = vmatpush.msra.mxu0 0.0
    %577 = vmatpush.msra.mxu0 0.0
    %578 = vmatpush.msra.mxu0 0.0
    %579 = vmatpush.msra.mxu0 0.0
    %580 = vmatpush.msra.mxu0 %v553
    %581 = vmatpush.msra.mxu0 %v550
    %582 = vmatpush.msra.mxu0 %v547
    %583 = vmatpush.msra.mxu0 %v544
    %584 = vmatmul.f32.gmra.mxu0 %v557
    %v585 = vpop.f32.mrf.mxu0
    %v586 = vadd.f32 0.0, %v585
    %587 = vmatmul.f32.gmra.mxu0 %v560
    %v588 = vpop.f32.mrf.mxu0
    %v589 = vadd.f32 0.0, %v588
    %590 = vmatmul.f32.gmra.mxu0 %v563
    %v591 = vpop.f32.mrf.mxu0
    %v592 = vadd.f32 0.0, %v591
    %593 = vmatmul.f32.gmra.mxu0 %v566
    %v594 = vpop.f32.mrf.mxu0
    %v595 = vadd.f32 0.0, %v594
    %596 = vdwg.mxu0
    %v597 = vadd.f32 %v515, %v586
    %v598 = vadd.f32 %v518, %v589
    %v599 = vadd.f32 %v521, %v592
    %v600 = vadd.f32 %v524, %v595
    %601 = vmatpush.msra.mxu0 0.0
    %602 = vmatpush.msra.mxu0 0.0
    %603 = vmatpush.msra.mxu0 0.0
    %604 = vmatpush.msra.mxu0 0.0
    %605 = vmatpush.msra.mxu0 0.0
    %606 = vmatpush.msra.mxu0 0.0
    %607 = vmatpush.msra.mxu0 0.0
    %608 = vmatpush.msra.mxu0 0.0
    %609 = vmatpush.msra.mxu0 0.0
    %610 = vmatpush.msra.mxu0 0.0
    %611 = vmatpush.msra.mxu0 0.0
    %612 = vmatpush.msra.mxu0 0.0
    %613 = vmatpush.msra.mxu0 0.0
    %614 = vmatpush.msra.mxu0 0.0
    %615 = vmatpush.msra.mxu0 0.0
    %616 = vmatpush.msra.mxu0 %v464
    %617 = vmatmul.f32.gmra.mxu0 %v486
    %v618 = vpop.f32.mrf.mxu0
    %v619 = vadd.f32 0.0, %v618
    %620 = vmatmul.f32.gmra.mxu0 %v489
    %v621 = vpop.f32.mrf.mxu0
    %v622 = vadd.f32 0.0, %v621
    %623 = vmatmul.f32.gmra.mxu0 %v492
    %v624 = vpop.f32.mrf.mxu0
    %v625 = vadd.f32 0.0, %v624
    %626 = vmatmul.f32.gmra.mxu0 %v495
    %v627 = vpop.f32.mrf.mxu0
    %v628 = vadd.f32 0.0, %v627
    %629 = vdwg.mxu0
    %v631 = vsel %vm555, %v471, 0
    %v634 = vsel %vm555, %v472, 0
    %v637 = vsel %vm555, %v473, 0
    %v640 = vsel %vm555, %v474, 0
    %642 = vmatpush.msra.mxu0 0.0
    %643 = vmatpush.msra.mxu0 0.0
    %644 = vmatpush.msra.mxu0 0.0
    %645 = vmatpush.msra.mxu0 0.0
    %646 = vmatpush.msra.mxu0 0.0
    %647 = vmatpush.msra.mxu0 0.0
    %648 = vmatpush.msra.mxu0 0.0
    %649 = vmatpush.msra.mxu0 0.0
    %650 = vmatpush.msra.mxu0 0.0
    %651 = vmatpush.msra.mxu0 0.0
    %652 = vmatpush.msra.mxu0 0.0
    %653 = vmatpush.msra.mxu0 0.0
    %654 = vmatpush.msra.mxu0 %v628
    %655 = vmatpush.msra.mxu0 %v625
    %656 = vmatpush.msra.mxu0 %v622
    %657 = vmatpush.msra.mxu0 %v619
    %658 = vmatmul.f32.gmra.mxu0 %v631
    %v659 = vpop.f32.mrf.mxu0
    %v660 = vadd.f32 0.0, %v659
    %661 = vmatmul.f32.gmra.mxu0 %v634
    %v662 = vpop.f32.mrf.mxu0
    %v663 = vadd.f32 0.0, %v662
    %664 = vmatmul.f32.gmra.mxu0 %v637
    %v665 = vpop.f32.mrf.mxu0
    %v666 = vadd.f32 0.0, %v665
    %667 = vmatmul.f32.gmra.mxu0 %v640
    %v668 = vpop.f32.mrf.mxu0
    %v669 = vadd.f32 0.0, %v668
    %670 = vdwg.mxu0
    %v671 = vadd.f32 %v597, %v660
    %v672 = vadd.f32 %v598, %v663
    %v673 = vadd.f32 %v599, %v666
    %v674 = vadd.f32 %v600, %v669
    %v676 = vsel %vm430, %v476, 0
    %678 = vmatpush.msra.mxu0 0.0
    %679 = vmatpush.msra.mxu0 0.0
    %680 = vmatpush.msra.mxu0 0.0
    %681 = vmatpush.msra.mxu0 0.0
    %682 = vmatpush.msra.mxu0 0.0
    %683 = vmatpush.msra.mxu0 0.0
    %684 = vmatpush.msra.mxu0 0.0
    %685 = vmatpush.msra.mxu0 0.0
    %686 = vmatpush.msra.mxu0 0.0
    %687 = vmatpush.msra.mxu0 0.0
    %688 = vmatpush.msra.mxu0 0.0
    %689 = vmatpush.msra.mxu0 0.0
    %690 = vmatpush.msra.mxu0 0.0
    %691 = vmatpush.msra.mxu0 0.0
    %692 = vmatpush.msra.mxu0 %v676
    %693 = vmatpush.msra.mxu0 %v475
    %694 = vmatmul.f32.gmra.mxu0 %v419
    %v695 = vpop.f32.mrf.mxu0
    %v696 = vadd.f32 0.0, %v695
    %697 = vmatmul.f32.gmra.mxu0 %v422
    %v698 = vpop.f32.mrf.mxu0
    %v699 = vadd.f32 0.0, %v698
    %700 = vmatmul.f32.gmra.mxu0 %v425
    %v701 = vpop.f32.mrf.mxu0
    %v702 = vadd.f32 0.0, %v701
    %703 = vmatmul.f32.gmra.mxu0 %v428
    %v704 = vpop.f32.mrf.mxu0
    %v705 = vadd.f32 0.0, %v704
    %706 = vdwg.mxu0
    %v708 = vperm.slane %v477, 0
    %v710 = vadd.f32 %v708, %v696
    %v711 = vadd.f32 %v708, %v699
    %v712 = vadd.f32 %v708, %v702
    %v713 = vadd.f32 %v708, %v705
    %v714 = vrot.slane %v476, 1
    %vm715 = vcmask 23552
    %v717 = vsel %vm715, %v400, 0
    %v720 = vsel %vm715, %v401, 0
    %v723 = vsel %vm715, %v402, 0
    %v726 = vsel %vm715, %v403, 0
    %vm728 = vcmask 1042432
    %v729 = vsel %vm728, %v714, 0
    %731 = vmatpush.msra.mxu0 0.0
    %732 = vmatpush.msra.mxu0 0.0
    %733 = vmatpush.msra.mxu0 0.0
    %734 = vmatpush.msra.mxu0 0.0
    %735 = vmatpush.msra.mxu0 0.0
    %736 = vmatpush.msra.mxu0 0.0
    %737 = vmatpush.msra.mxu0 0.0
    %738 = vmatpush.msra.mxu0 0.0
    %739 = vmatpush.msra.mxu0 0.0
    %740 = vmatpush.msra.mxu0 0.0
    %741 = vmatpush.msra.mxu0 0.0
    %742 = vmatpush.msra.mxu0 0.0
    %743 = vmatpush.msra.mxu0 0.0
    %744 = vmatpush.msra.mxu0 0.0
    %745 = vmatpush.msra.mxu0 0.0
    %746 = vmatpush.msra.mxu0 %v729
    %747 = vmatmul.f32.gmra.mxu0 %v717
    %v748 = vpop.f32.mrf.mxu0
    %v749 = vadd.f32 0.0, %v748
    %750 = vmatmul.f32.gmra.mxu0 %v720
    %v751 = vpop.f32.mrf.mxu0
    %v752 = vadd.f32 0.0, %v751
    %753 = vmatmul.f32.gmra.mxu0 %v723
    %v754 = vpop.f32.mrf.mxu0
    %v755 = vadd.f32 0.0, %v754
    %756 = vmatmul.f32.gmra.mxu0 %v726
    %v757 = vpop.f32.mrf.mxu0
    %v758 = vadd.f32 0.0, %v757
    %759 = vdwg.mxu0
    %v760 = vadd.f32 %v710, %v749
    %v761 = vadd.f32 %v711, %v752
    %v762 = vadd.f32 %v712, %v755
    %v763 = vadd.f32 %v713, %v758
    %vm766 = vcmask 1043456
    %v767 = vrot.slane %v478, 4
    %v768 = vrot.slane %v479, 4
    %v769 = vsel %vm766, %v767, %v768
    %vm771 = vcmask 97280
    %v773 = vsel %vm771, %v671, 0
    %v776 = vsel %vm771, %v672, 0
    %v779 = vsel %vm771, %v673, 0
    %v782 = vsel %vm771, %v674, 0
    %v784 = vsel %vm766, %v768, 0
    %786 = vmatpush.msra.mxu0 0.0
    %787 = vmatpush.msra.mxu0 0.0
    %788 = vmatpush.msra.mxu0 0.0
    %789 = vmatpush.msra.mxu0 0.0
    %790 = vmatpush.msra.mxu0 0.0
    %791 = vmatpush.msra.mxu0 0.0
    %792 = vmatpush.msra.mxu0 0.0
    %793 = vmatpush.msra.mxu0 0.0
    %794 = vmatpush.msra.mxu0 0.0
    %795 = vmatpush.msra.mxu0 0.0
    %796 = vmatpush.msra.mxu0 0.0
    %797 = vmatpush.msra.mxu0 0.0
    %798 = vmatpush.msra.mxu0 0.0
    %799 = vmatpush.msra.mxu0 0.0
    %800 = vmatpush.msra.mxu0 %v784
    %801 = vmatpush.msra.mxu0 %v769
    %802 = vmatmul.f32.gmra.mxu0 %v773
    %v803 = vpop.f32.mrf.mxu0
    %v804 = vadd.f32 0.0, %v803
    %805 = vmatmul.f32.gmra.mxu0 %v776
    %v806 = vpop.f32.mrf.mxu0
    %v807 = vadd.f32 0.0, %v806
    %808 = vmatmul.f32.gmra.mxu0 %v779
    %v809 = vpop.f32.mrf.mxu0
    %v810 = vadd.f32 0.0, %v809
    %811 = vmatmul.f32.gmra.mxu0 %v782
    %v812 = vpop.f32.mrf.mxu0
    %v813 = vadd.f32 0.0, %v812
    %814 = vdwg.mxu0
    %815 = vrot.lane.b32.xlu0 %v396, 127
    %v816 = vpop.permute.xlu0 %815
    %817 = vrot.lane.b32.xlu0 %v397, 127
    %v818 = vpop.permute.xlu0 %817
    %819 = vrot.lane.b32.xlu0 %v398, 127
    %v820 = vpop.permute.xlu0 %819
    %821 = vrot.lane.b32.xlu0 %v399, 127
    %v822 = vpop.permute.xlu0 %821
    %vm823 = vcmask 31744
    %v824 = vsel %vm823, %v816, 0
    %v826 = vsel %vm823, %v818, 0
    %v828 = vsel %vm823, %v820, 0
    %v830 = vsel %vm823, %v822, 0
    %v832 = vsel %vm766, %v478, 0
    %834 = vmatpush.msra.mxu0 0.0
    %835 = vmatpush.msra.mxu0 0.0
    %836 = vmatpush.msra.mxu0 0.0
    %837 = vmatpush.msra.mxu0 0.0
    %838 = vmatpush.msra.mxu0 0.0
    %839 = vmatpush.msra.mxu0 0.0
    %840 = vmatpush.msra.mxu0 0.0
    %841 = vmatpush.msra.mxu0 0.0
    %842 = vmatpush.msra.mxu0 0.0
    %843 = vmatpush.msra.mxu0 0.0
    %844 = vmatpush.msra.mxu0 0.0
    %845 = vmatpush.msra.mxu0 0.0
    %846 = vmatpush.msra.mxu0 0.0
    %847 = vmatpush.msra.mxu0 0.0
    %848 = vmatpush.msra.mxu0 0.0
    %849 = vmatpush.msra.mxu0 %v832
    %850 = vmatmul.f32.gmra.mxu0 %v824
    %v851 = vpop.f32.mrf.mxu0
    %v852 = vadd.f32 %v804, %v851
    %853 = vmatmul.f32.gmra.mxu0 %v826
    %v854 = vpop.f32.mrf.mxu0
    %v855 = vadd.f32 %v807, %v854
    %856 = vmatmul.f32.gmra.mxu0 %v828
    %v857 = vpop.f32.mrf.mxu0
    %v858 = vadd.f32 %v810, %v857
    %859 = vmatmul.f32.gmra.mxu0 %v830
    %v860 = vpop.f32.mrf.mxu0
    %v861 = vadd.f32 %v813, %v860
    %862 = vdwg.mxu0
    %vm863 = vcmask 15360
    %v865 = vsel %vm863, %v760, 0
    %v868 = vsel %vm863, %v761, 0
    %v871 = vsel %vm863, %v762, 0
    %v874 = vsel %vm863, %v763, 0
    %vm876 = vcmask 1041408
    %v878 = vsel %vm876, %v480, 0
    %880 = vmatpush.msra.mxu0 0.0
    %881 = vmatpush.msra.mxu0 0.0
    %882 = vmatpush.msra.mxu0 0.0
    %883 = vmatpush.msra.mxu0 0.0
    %884 = vmatpush.msra.mxu0 0.0
    %885 = vmatpush.msra.mxu0 0.0
    %886 = vmatpush.msra.mxu0 0.0
    %887 = vmatpush.msra.mxu0 0.0
    %888 = vmatpush.msra.mxu0 0.0
    %889 = vmatpush.msra.mxu0 0.0
    %890 = vmatpush.msra.mxu0 0.0
    %891 = vmatpush.msra.mxu0 0.0
    %892 = vmatpush.msra.mxu0 0.0
    %893 = vmatpush.msra.mxu0 0.0
    %894 = vmatpush.msra.mxu0 0.0
    %895 = vmatpush.msra.mxu0 %v878
    %896 = vmatmul.f32.gmra.mxu0 %v865
    %v897 = vpop.f32.mrf.mxu0
    %v898 = vadd.f32 0.0, %v897
    %899 = vmatmul.f32.gmra.mxu0 %v868
    %v900 = vpop.f32.mrf.mxu0
    %v901 = vadd.f32 0.0, %v900
    %902 = vmatmul.f32.gmra.mxu0 %v871
    %v903 = vpop.f32.mrf.mxu0
    %v904 = vadd.f32 0.0, %v903
    %905 = vmatmul.f32.gmra.mxu0 %v874
    %v906 = vpop.f32.mrf.mxu0
    %v907 = vadd.f32 0.0, %v906
    %908 = vdwg.mxu0
    %v909 = vadd.f32 %v852, %v898
    %v910 = vadd.f32 %v855, %v901
    %v911 = vadd.f32 %v858, %v904
    %v912 = vadd.f32 %v861, %v907
    %v913 = vmax.f32 %v909, 0.0
    %v914 = vmax.f32 %v910, 0.0
    %v915 = vmax.f32 %v911, 0.0
    %v916 = vmax.f32 %v912, 0.0
    %v917 = vld [vmem:[%s9] sm:$0xff]
    %v918 = vld [vmem:[%s9 + $0x8] sm:$0xff]
    %v919 = vld [vmem:[%s9 + $0x10] sm:$0xff]
    %v920 = vld [vmem:[%s9 + $0x18] sm:$0xff]
    %v921 = vld [vmem:[%s9 + $0x20] sm:$0xff]
    %v922 = vld [vmem:[%s9 + $0x28] sm:$0xff]
    %v923 = vld [vmem:[%s9 + $0x30] sm:$0xff]
    %v924 = vld [vmem:[%s9 + $0x38] sm:$0xff]
    %v925 = vld [vmem:[%s9 + $0x40] sm:$0xff]
    %v926 = vld [vmem:[#allocation13] sm:$0x1]
    %v927 = vld [vmem:[#allocation15] sm:$0xff]
    %v928 = vld [vmem:[#allocation15 + $0x8] sm:$0xff]
    %v929 = vld [vmem:[#allocation15 + $0x10] sm:$0xff]
    %v930 = vld [vmem:[#allocation15 + $0x18] sm:$0xff]
    %v931 = vld [vmem:[#allocation15 + $0x20] sm:$0xff]
    %v932 = vld [vmem:[#allocation15 + $0x28] sm:$0xff]
    %v933 = vld [vmem:[#allocation15 + $0x30] sm:$0xff]
    %v934 = vld [vmem:[#allocation15 + $0x38] sm:$0xff]
    %v935 = vld [vmem:[#allocation16] sm:$0xff]
    %v936 = vld [vmem:[#allocation16 + $0x8] sm:$0xff]
    %v937 = vld [vmem:[#allocation16 + $0x10] sm:$0xff]
    %v938 = vld [vmem:[#allocation16 + $0x18] sm:$0x3]
    %v939 = vld [vmem:[#allocation18] sm:$0x1]
    %v940 = vld [vmem:[#allocation19] sm:$0xff]
    %v941 = vld [vmem:[#allocation19 + $0x8] sm:$0xff]
    %v942 = vld [vmem:[#allocation19 + $0x10] sm:$0xff]
    %v943 = vld [vmem:[#allocation19 + $0x18] sm:$0x3]
    %v945 = vperm.slane %v926, 0
    %vm947 = vcmask 195584
    %v949 = vsel %vm947, %v913, 0
    %v952 = vsel %vm947, %v914, 0
    %v955 = vsel %vm947, %v915, 0
    %v958 = vsel %vm947, %v916, 0
    %960 = vmatpush.msra.mxu0 0.0
    %961 = vmatpush.msra.mxu0 0.0
    %962 = vmatpush.msra.mxu0 0.0
    %963 = vmatpush.msra.mxu0 0.0
    %964 = vmatpush.msra.mxu0 0.0
    %965 = vmatpush.msra.mxu0 0.0
    %966 = vmatpush.msra.mxu0 0.0
    %967 = vmatpush.msra.mxu0 0.0
    %968 = vmatpush.msra.mxu0 0.0
    %969 = vmatpush.msra.mxu0 0.0
    %970 = vmatpush.msra.mxu0 0.0
    %971 = vmatpush.msra.mxu0 0.0
    %972 = vmatpush.msra.mxu0 0.0
    %973 = vmatpush.msra.mxu0 %v925
    %974 = vmatpush.msra.mxu0 %v924
    %975 = vmatpush.msra.mxu0 %v923
    %976 = vmatmul.f32.gmra.mxu0 %v949
    %v977 = vpop.f32.mrf.mxu0
    %v978 = vadd.f32 %v945, %v977
    %979 = vmatmul.f32.gmra.mxu0 %v952
    %v980 = vpop.f32.mrf.mxu0
    %v981 = vadd.f32 %v945, %v980
    %982 = vmatmul.f32.gmra.mxu0 %v955
    %v983 = vpop.f32.mrf.mxu0
    %v984 = vadd.f32 %v945, %v983
    %985 = vmatmul.f32.gmra.mxu0 %v958
    %v986 = vpop.f32.mrf.mxu0
    %v987 = vadd.f32 %v945, %v986
    %988 = vdwg.mxu0
    %989 = vmatpush.msra.mxu0 0.0
    %990 = vmatpush.msra.mxu0 0.0
    %991 = vmatpush.msra.mxu0 0.0
    %992 = vmatpush.msra.mxu0 0.0
    %993 = vmatpush.msra.mxu0 0.0
    %994 = vmatpush.msra.mxu0 0.0
    %995 = vmatpush.msra.mxu0 0.0
    %996 = vmatpush.msra.mxu0 0.0
    %997 = vmatpush.msra.mxu0 0.0
    %998 = vmatpush.msra.mxu0 0.0
    %999 = vmatpush.msra.mxu0 0.0
    %1000 = vmatpush.msra.mxu0 0.0
    %1001 = vmatpush.msra.mxu0 0.0
    %1002 = vmatpush.msra.mxu0 %v919
    %1003 = vmatpush.msra.mxu0 %v918
    %1004 = vmatpush.msra.mxu0 %v917
    %1005 = vmatmul.f32.gmra.mxu0 %v949
    %v1006 = vpop.f32.mrf.mxu0
    %v1007 = vadd.f32 0.0, %v1006
    %1008 = vmatmul.f32.gmra.mxu0 %v952
    %v1009 = vpop.f32.mrf.mxu0
    %v1010 = vadd.f32 0.0, %v1009
    %1011 = vmatmul.f32.gmra.mxu0 %v955
    %v1012 = vpop.f32.mrf.mxu0
    %v1013 = vadd.f32 0.0, %v1012
    %1014 = vmatmul.f32.gmra.mxu0 %v958
    %v1015 = vpop.f32.mrf.mxu0
    %v1016 = vadd.f32 0.0, %v1015
    %1017 = vdwg.mxu0
    %v1019 = vsel %vm555, %v927, 0
    %v1022 = vsel %vm555, %v928, 0
    %v1025 = vsel %vm555, %v929, 0
    %v1028 = vsel %vm555, %v930, 0
    %1030 = vmatpush.msra.mxu0 0.0
    %1031 = vmatpush.msra.mxu0 0.0
    %1032 = vmatpush.msra.mxu0 0.0
    %1033 = vmatpush.msra.mxu0 0.0
    %1034 = vmatpush.msra.mxu0 0.0
    %1035 = vmatpush.msra.mxu0 0.0
    %1036 = vmatpush.msra.mxu0 0.0
    %1037 = vmatpush.msra.mxu0 0.0
    %1038 = vmatpush.msra.mxu0 0.0
    %1039 = vmatpush.msra.mxu0 0.0
    %1040 = vmatpush.msra.mxu0 0.0
    %1041 = vmatpush.msra.mxu0 0.0
    %1042 = vmatpush.msra.mxu0 %v1016
    %1043 = vmatpush.msra.mxu0 %v1013
    %1044 = vmatpush.msra.mxu0 %v1010
    %1045 = vmatpush.msra.mxu0 %v1007
    %1046 = vmatmul.f32.gmra.mxu0 %v1019
    %v1047 = vpop.f32.mrf.mxu0
    %v1048 = vadd.f32 0.0, %v1047
    %1049 = vmatmul.f32.gmra.mxu0 %v1022
    %v1050 = vpop.f32.mrf.mxu0
    %v1051 = vadd.f32 0.0, %v1050
    %1052 = vmatmul.f32.gmra.mxu0 %v1025
    %v1053 = vpop.f32.mrf.mxu0
    %v1054 = vadd.f32 0.0, %v1053
    %1055 = vmatmul.f32.gmra.mxu0 %v1028
    %v1056 = vpop.f32.mrf.mxu0
    %v1057 = vadd.f32 0.0, %v1056
    %1058 = vdwg.mxu0
    %v1059 = vadd.f32 %v978, %v1048
    %v1060 = vadd.f32 %v981, %v1051
    %v1061 = vadd.f32 %v984, %v1054
    %v1062 = vadd.f32 %v987, %v1057
    %1063 = vmatpush.msra.mxu0 0.0
    %1064 = vmatpush.msra.mxu0 0.0
    %1065 = vmatpush.msra.mxu0 0.0
    %1066 = vmatpush.msra.mxu0 0.0
    %1067 = vmatpush.msra.mxu0 0.0
    %1068 = vmatpush.msra.mxu0 0.0
    %1069 = vmatpush.msra.mxu0 0.0
    %1070 = vmatpush.msra.mxu0 0.0
    %1071 = vmatpush.msra.mxu0 0.0
    %1072 = vmatpush.msra.mxu0 0.0
    %1073 = vmatpush.msra.mxu0 0.0
    %1074 = vmatpush.msra.mxu0 0.0
    %1075 = vmatpush.msra.mxu0 0.0
    %1076 = vmatpush.msra.mxu0 %v922
    %1077 = vmatpush.msra.mxu0 %v921
    %1078 = vmatpush.msra.mxu0 %v920
    %1079 = vmatmul.f32.gmra.mxu0 %v949
    %v1080 = vpop.f32.mrf.mxu0
    %v1081 = vadd.f32 0.0, %v1080
    %1082 = vmatmul.f32.gmra.mxu0 %v952
    %v1083 = vpop.f32.mrf.mxu0
    %v1084 = vadd.f32 0.0, %v1083
    %1085 = vmatmul.f32.gmra.mxu0 %v955
    %v1086 = vpop.f32.mrf.mxu0
    %v1087 = vadd.f32 0.0, %v1086
    %1088 = vmatmul.f32.gmra.mxu0 %v958
    %v1089 = vpop.f32.mrf.mxu0
    %v1090 = vadd.f32 0.0, %v1089
    %1091 = vdwg.mxu0
    %v1093 = vsel %vm555, %v931, 0
    %v1096 = vsel %vm555, %v932, 0
    %v1099 = vsel %vm555, %v933, 0
    %v1102 = vsel %vm555, %v934, 0
    %1104 = vmatpush.msra.mxu0 0.0
    %1105 = vmatpush.msra.mxu0 0.0
    %1106 = vmatpush.msra.mxu0 0.0
    %1107 = vmatpush.msra.mxu0 0.0
    %1108 = vmatpush.msra.mxu0 0.0
    %1109 = vmatpush.msra.mxu0 0.0
    %1110 = vmatpush.msra.mxu0 0.0
    %1111 = vmatpush.msra.mxu0 0.0
    %1112 = vmatpush.msra.mxu0 0.0
    %1113 = vmatpush.msra.mxu0 0.0
    %1114 = vmatpush.msra.mxu0 0.0
    %1115 = vmatpush.msra.mxu0 0.0
    %1116 = vmatpush.msra.mxu0 %v1090
    %1117 = vmatpush.msra.mxu0 %v1087
    %1118 = vmatpush.msra.mxu0 %v1084
    %1119 = vmatpush.msra.mxu0 %v1081
    %1120 = vmatmul.f32.gmra.mxu0 %v1093
    %v1121 = vpop.f32.mrf.mxu0
    %v1122 = vadd.f32 0.0, %v1121
    %1123 = vmatmul.f32.gmra.mxu0 %v1096
    %v1124 = vpop.f32.mrf.mxu0
    %v1125 = vadd.f32 0.0, %v1124
    %1126 = vmatmul.f32.gmra.mxu0 %v1099
    %v1127 = vpop.f32.mrf.mxu0
    %v1128 = vadd.f32 0.0, %v1127
    %1129 = vmatmul.f32.gmra.mxu0 %v1102
    %v1130 = vpop.f32.mrf.mxu0
    %v1131 = vadd.f32 0.0, %v1130
    %1132 = vdwg.mxu0
    %v1133 = vadd.f32 %v1059, %v1122
    %v1134 = vadd.f32 %v1060, %v1125
    %v1135 = vadd.f32 %v1061, %v1128
    %v1136 = vadd.f32 %v1062, %v1131
    %v1138 = vsel %vm766, %v936, 0
    %1140 = vmatpush.msra.mxu0 0.0
    %1141 = vmatpush.msra.mxu0 0.0
    %1142 = vmatpush.msra.mxu0 0.0
    %1143 = vmatpush.msra.mxu0 0.0
    %1144 = vmatpush.msra.mxu0 0.0
    %1145 = vmatpush.msra.mxu0 0.0
    %1146 = vmatpush.msra.mxu0 0.0
    %1147 = vmatpush.msra.mxu0 0.0
    %1148 = vmatpush.msra.mxu0 0.0
    %1149 = vmatpush.msra.mxu0 0.0
    %1150 = vmatpush.msra.mxu0 0.0
    %1151 = vmatpush.msra.mxu0 0.0
    %1152 = vmatpush.msra.mxu0 0.0
    %1153 = vmatpush.msra.mxu0 0.0
    %1154 = vmatpush.msra.mxu0 %v1138
    %1155 = vmatpush.msra.mxu0 %v935
    %1156 = vmatmul.f32.gmra.mxu0 %v773
    %v1157 = vpop.f32.mrf.mxu0
    %v1158 = vadd.f32 0.0, %v1157
    %1159 = vmatmul.f32.gmra.mxu0 %v776
    %v1160 = vpop.f32.mrf.mxu0
    %v1161 = vadd.f32 0.0, %v1160
    %1162 = vmatmul.f32.gmra.mxu0 %v779
    %v1163 = vpop.f32.mrf.mxu0
    %v1164 = vadd.f32 0.0, %v1163
    %1165 = vmatmul.f32.gmra.mxu0 %v782
    %v1166 = vpop.f32.mrf.mxu0
    %v1167 = vadd.f32 0.0, %v1166
    %1168 = vdwg.mxu0
    %v1170 = vperm.slane %v939, 0
    %v1172 = vadd.f32 %v1170, %v1158
    %v1173 = vadd.f32 %v1170, %v1161
    %v1174 = vadd.f32 %v1170, %v1164
    %v1175 = vadd.f32 %v1170, %v1167
    %v1176 = vrot.slane %v936, 4
    %v1177 = vsel %vm876, %v1176, 0
    %1179 = vmatpush.msra.mxu0 0.0
    %1180 = vmatpush.msra.mxu0 0.0
    %1181 = vmatpush.msra.mxu0 0.0
    %1182 = vmatpush.msra.mxu0 0.0
    %1183 = vmatpush.msra.mxu0 0.0
    %1184 = vmatpush.msra.mxu0 0.0
    %1185 = vmatpush.msra.mxu0 0.0
    %1186 = vmatpush.msra.mxu0 0.0
    %1187 = vmatpush.msra.mxu0 0.0
    %1188 = vmatpush.msra.mxu0 0.0
    %1189 = vmatpush.msra.mxu0 0.0
    %1190 = vmatpush.msra.mxu0 0.0
    %1191 = vmatpush.msra.mxu0 0.0
    %1192 = vmatpush.msra.mxu0 0.0
    %1193 = vmatpush.msra.mxu0 0.0
    %1194 = vmatpush.msra.mxu0 %v1177
    %1195 = vmatmul.f32.gmra.mxu0 %v865
    %v1196 = vpop.f32.mrf.mxu0
    %v1197 = vadd.f32 0.0, %v1196
    %1198 = vmatmul.f32.gmra.mxu0 %v868
    %v1199 = vpop.f32.mrf.mxu0
    %v1200 = vadd.f32 0.0, %v1199
    %1201 = vmatmul.f32.gmra.mxu0 %v871
    %v1202 = vpop.f32.mrf.mxu0
    %v1203 = vadd.f32 0.0, %v1202
    %1204 = vmatmul.f32.gmra.mxu0 %v874
    %v1205 = vpop.f32.mrf.mxu0
    %v1206 = vadd.f32 0.0, %v1205
    %1207 = vdwg.mxu0
    %v1208 = vadd.f32 %v1172, %v1197
    %v1209 = vadd.f32 %v1173, %v1200
    %v1210 = vadd.f32 %v1174, %v1203
    %v1211 = vadd.f32 %v1175, %v1206
    %v1213 = vrot.slane %v936, 6
    %v1214 = vrot.slane %v937, 6
    %v1215 = vsel %vm876, %v1213, %v1214
    %v1217 = vsel %vm430, %v1214, 0
    %1219 = vmatpush.msra.mxu0 0.0
    %1220 = vmatpush.msra.mxu0 0.0
    %1221 = vmatpush.msra.mxu0 0.0
    %1222 = vmatpush.msra.mxu0 0.0
    %1223 = vmatpush.msra.mxu0 0.0
    %1224 = vmatpush.msra.mxu0 0.0
    %1225 = vmatpush.msra.mxu0 0.0
    %1226 = vmatpush.msra.mxu0 0.0
    %1227 = vmatpush.msra.mxu0 0.0
    %1228 = vmatpush.msra.mxu0 0.0
    %1229 = vmatpush.msra.mxu0 0.0
    %1230 = vmatpush.msra.mxu0 0.0
    %1231 = vmatpush.msra.mxu0 0.0
    %1232 = vmatpush.msra.mxu0 0.0
    %1233 = vmatpush.msra.mxu0 %v1217
    %1234 = vmatpush.msra.mxu0 %v1215
    %1235 = vmatmul.f32.gmra.mxu0 %v419
    %v1236 = vpop.f32.mrf.mxu0
    %v1237 = vadd.f32 0.0, %v1236
    %1238 = vmatmul.f32.gmra.mxu0 %v422
    %v1239 = vpop.f32.mrf.mxu0
    %v1240 = vadd.f32 0.0, %v1239
    %1241 = vmatmul.f32.gmra.mxu0 %v425
    %v1242 = vpop.f32.mrf.mxu0
    %v1243 = vadd.f32 0.0, %v1242
    %1244 = vmatmul.f32.gmra.mxu0 %v428
    %v1245 = vpop.f32.mrf.mxu0
    %v1246 = vadd.f32 0.0, %v1245
    %1247 = vdwg.mxu0
    %v1248 = vadd.f32 %v1208, %v1237
    %v1249 = vadd.f32 %v1209, %v1240
    %v1250 = vadd.f32 %v1210, %v1243
    %v1251 = vadd.f32 %v1211, %v1246
    %v1253 = vrot.slane %v937, 7
    %v1254 = vrot.slane %v938, 7
    %v1255 = vsel %vm430, %v1253, %v1254
    %v1256 = vsel %vm728, %v1255, 0
    %1258 = vmatpush.msra.mxu0 0.0
    %1259 = vmatpush.msra.mxu0 0.0
    %1260 = vmatpush.msra.mxu0 0.0
    %1261 = vmatpush.msra.mxu0 0.0
    %1262 = vmatpush.msra.mxu0 0.0
    %1263 = vmatpush.msra.mxu0 0.0
    %1264 = vmatpush.msra.mxu0 0.0
    %1265 = vmatpush.msra.mxu0 0.0
    %1266 = vmatpush.msra.mxu0 0.0
    %1267 = vmatpush.msra.mxu0 0.0
    %1268 = vmatpush.msra.mxu0 0.0
    %1269 = vmatpush.msra.mxu0 0.0
    %1270 = vmatpush.msra.mxu0 0.0
    %1271 = vmatpush.msra.mxu0 0.0
    %1272 = vmatpush.msra.mxu0 0.0
    %1273 = vmatpush.msra.mxu0 %v1256
    %1274 = vmatmul.f32.gmra.mxu0 %v717
    %v1275 = vpop.f32.mrf.mxu0
    %v1276 = vadd.f32 0.0, %v1275
    %1277 = vmatmul.f32.gmra.mxu0 %v720
    %v1278 = vpop.f32.mrf.mxu0
    %v1279 = vadd.f32 0.0, %v1278
    %1280 = vmatmul.f32.gmra.mxu0 %v723
    %v1281 = vpop.f32.mrf.mxu0
    %v1282 = vadd.f32 0.0, %v1281
    %1283 = vmatmul.f32.gmra.mxu0 %v726
    %v1284 = vpop.f32.mrf.mxu0
    %v1285 = vadd.f32 0.0, %v1284
    %1286 = vdwg.mxu0
    %v1287 = vadd.f32 %v1248, %v1276
    %v1288 = vadd.f32 %v1249, %v1279
    %v1289 = vadd.f32 %v1250, %v1282
    %v1290 = vadd.f32 %v1251, %v1285
    %v1292 = vrot.slane %v940, 4
    %v1293 = vsel %vm876, %v1292, 0
    %1295 = vmatpush.msra.mxu0 0.0
    %1296 = vmatpush.msra.mxu0 0.0
    %1297 = vmatpush.msra.mxu0 0.0
    %1298 = vmatpush.msra.mxu0 0.0
    %1299 = vmatpush.msra.mxu0 0.0
    %1300 = vmatpush.msra.mxu0 0.0
    %1301 = vmatpush.msra.mxu0 0.0
    %1302 = vmatpush.msra.mxu0 0.0
    %1303 = vmatpush.msra.mxu0 0.0
    %1304 = vmatpush.msra.mxu0 0.0
    %1305 = vmatpush.msra.mxu0 0.0
    %1306 = vmatpush.msra.mxu0 0.0
    %1307 = vmatpush.msra.mxu0 0.0
    %1308 = vmatpush.msra.mxu0 0.0
    %1309 = vmatpush.msra.mxu0 0.0
    %1310 = vmatpush.msra.mxu0 %v1293
    %1311 = vmatmul.f32.gmra.mxu0 %v865
    %v1312 = vpop.f32.mrf.mxu0
    %v1313 = vadd.f32 0.0, %v1312
    %1314 = vmatmul.f32.gmra.mxu0 %v868
    %v1315 = vpop.f32.mrf.mxu0
    %v1316 = vadd.f32 0.0, %v1315
    %1317 = vmatmul.f32.gmra.mxu0 %v871
    %v1318 = vpop.f32.mrf.mxu0
    %v1319 = vadd.f32 0.0, %v1318
    %1320 = vmatmul.f32.gmra.mxu0 %v874
    %v1321 = vpop.f32.mrf.mxu0
    %v1322 = vadd.f32 0.0, %v1321
    %1323 = vdwg.mxu0
    %v1324 = vsel %vm766, %v940, 0
    %1326 = vmatpush.msra.mxu0 0.0
    %1327 = vmatpush.msra.mxu0 0.0
    %1328 = vmatpush.msra.mxu0 0.0
    %1329 = vmatpush.msra.mxu0 0.0
    %1330 = vmatpush.msra.mxu0 0.0
    %1331 = vmatpush.msra.mxu0 0.0
    %1332 = vmatpush.msra.mxu0 0.0
    %1333 = vmatpush.msra.mxu0 0.0
    %1334 = vmatpush.msra.mxu0 0.0
    %1335 = vmatpush.msra.mxu0 0.0
    %1336 = vmatpush.msra.mxu0 0.0
    %1337 = vmatpush.msra.mxu0 0.0
    %1338 = vmatpush.msra.mxu0 0.0
    %1339 = vmatpush.msra.mxu0 0.0
    %1340 = vmatpush.msra.mxu0 0.0
    %1341 = vmatpush.msra.mxu0 %v1324
    %1342 = vmatmul.f32.gmra.mxu0 %v824
    %v1343 = vpop.f32.mrf.mxu0
    %v1344 = vadd.f32 %v1313, %v1343
    %1345 = vmatmul.f32.gmra.mxu0 %v826
    %v1346 = vpop.f32.mrf.mxu0
    %v1347 = vadd.f32 %v1316, %v1346
    %1348 = vmatmul.f32.gmra.mxu0 %v828
    %v1349 = vpop.f32.mrf.mxu0
    %v1350 = vadd.f32 %v1319, %v1349
    %1351 = vmatmul.f32.gmra.mxu0 %v830
    %v1352 = vpop.f32.mrf.mxu0
    %v1353 = vadd.f32 %v1322, %v1352
    %1354 = vdwg.mxu0
    %v1357 = vrot.slane %v940, 6
    %v1358 = vrot.slane %v941, 6
    %v1359 = vsel %vm876, %v1357, %v1358
    %v1360 = vrot.slane %v942, 6
    %v1361 = vsel %vm876, %v1358, %v1360
    %vm1364 = vcmask 146432
    %v1366 = vsel %vm1364, %v1133, 0
    %v1369 = vsel %vm1364, %v1134, 0
    %v1372 = vsel %vm1364, %v1135, 0
    %v1375 = vsel %vm1364, %v1136, 0
    %v1377 = vsel %vm876, %v1360, 0
    %1379 = vmatpush.msra.mxu0 0.0
    %1380 = vmatpush.msra.mxu0 0.0
    %1381 = vmatpush.msra.mxu0 0.0
    %1382 = vmatpush.msra.mxu0 0.0
    %1383 = vmatpush.msra.mxu0 0.0
    %1384 = vmatpush.msra.mxu0 0.0
    %1385 = vmatpush.msra.mxu0 0.0
    %1386 = vmatpush.msra.mxu0 0.0
    %1387 = vmatpush.msra.mxu0 0.0
    %1388 = vmatpush.msra.mxu0 0.0
    %1389 = vmatpush.msra.mxu0 0.0
    %1390 = vmatpush.msra.mxu0 0.0
    %1391 = vmatpush.msra.mxu0 0.0
    %1392 = vmatpush.msra.mxu0 %v1377
    %1393 = vmatpush.msra.mxu0 %v1361
    %1394 = vmatpush.msra.mxu0 %v1359
    %1395 = vmatmul.f32.gmra.mxu0 %v1366
    %v1396 = vpop.f32.mrf.mxu0
    %v1397 = vadd.f32 0.0, %v1396
    %1398 = vmatmul.f32.gmra.mxu0 %v1369
    %v1399 = vpop.f32.mrf.mxu0
    %v1400 = vadd.f32 0.0, %v1399
    %1401 = vmatmul.f32.gmra.mxu0 %v1372
    %v1402 = vpop.f32.mrf.mxu0
    %v1403 = vadd.f32 0.0, %v1402
    %1404 = vmatmul.f32.gmra.mxu0 %v1375
    %v1405 = vpop.f32.mrf.mxu0
    %v1406 = vadd.f32 0.0, %v1405
    %1407 = vdwg.mxu0
    %v1408 = vadd.f32 %v1344, %v1397
    %v1409 = vadd.f32 %v1347, %v1400
    %v1410 = vadd.f32 %v1350, %v1403
    %v1411 = vadd.f32 %v1353, %v1406
    %v1413 = vsel %vm863, %v1287, 0
    %v1416 = vsel %vm863, %v1288, 0
    %v1419 = vsel %vm863, %v1289, 0
    %v1422 = vsel %vm863, %v1290, 0
    %v1425 = vsel %vm876, %v943, 0
    %1427 = vmatpush.msra.mxu0 0.0
    %1428 = vmatpush.msra.mxu0 0.0
    %1429 = vmatpush.msra.mxu0 0.0
    %1430 = vmatpush.msra.mxu0 0.0
    %1431 = vmatpush.msra.mxu0 0.0
    %1432 = vmatpush.msra.mxu0 0.0
    %1433 = vmatpush.msra.mxu0 0.0
    %1434 = vmatpush.msra.mxu0 0.0
    %1435 = vmatpush.msra.mxu0 0.0
    %1436 = vmatpush.msra.mxu0 0.0
    %1437 = vmatpush.msra.mxu0 0.0
    %1438 = vmatpush.msra.mxu0 0.0
    %1439 = vmatpush.msra.mxu0 0.0
    %1440 = vmatpush.msra.mxu0 0.0
    %1441 = vmatpush.msra.mxu0 0.0
    %1442 = vmatpush.msra.mxu0 %v1425
    %1443 = vmatmul.f32.gmra.mxu0 %v1413
    %v1444 = vpop.f32.mrf.mxu0
    %v1445 = vadd.f32 0.0, %v1444
    %1446 = vmatmul.f32.gmra.mxu0 %v1416
    %v1447 = vpop.f32.mrf.mxu0
    %v1448 = vadd.f32 0.0, %v1447
    %1449 = vmatmul.f32.gmra.mxu0 %v1419
    %v1450 = vpop.f32.mrf.mxu0
    %v1451 = vadd.f32 0.0, %v1450
    %1452 = vmatmul.f32.gmra.mxu0 %v1422
    %v1453 = vpop.f32.mrf.mxu0
    %v1454 = vadd.f32 0.0, %v1453
    %1455 = vdwg.mxu0
    %v1456 = vadd.f32 %v1408, %v1445
    %v1457 = vadd.f32 %v1409, %v1448
    %v1458 = vadd.f32 %v1410, %v1451
    %v1459 = vadd.f32 %v1411, %v1454
    %v1460 = vmax.f32 %v1456, 0.0
    %v1461 = vmax.f32 %v1457, 0.0
    %v1462 = vmax.f32 %v1458, 0.0
    %v1463 = vmax.f32 %v1459, 0.0
    %v1464 = vld [vmem:[#allocation21] sm:$0xff]
    %v1465 = vld [vmem:[#allocation21 + $0x8] sm:$0xff]
    %v1466 = vld [vmem:[#allocation21 + $0x10] sm:$0xff]
    %v1467 = vld [vmem:[#allocation21 + $0x18] sm:$0xff]
    %v1468 = vld [vmem:[#allocation21 + $0x20] sm:$0xff]
    %v1469 = vld [vmem:[#allocation21 + $0x28] sm:$0xff]
    %v1470 = vld [vmem:[#allocation21 + $0x30] sm:$0xff]
    %v1471 = vld [vmem:[#allocation21 + $0x38] sm:$0xff]
    %v1472 = vld [vmem:[#allocation21 + $0x40] sm:$0xff]
    %v1473 = vld [vmem:[#allocation21 + $0x48] sm:$0xff]
    %v1474 = vld [vmem:[#allocation21 + $0x50] sm:$0xff]
    %v1475 = vld [vmem:[#allocation21 + $0x58] sm:$0xff]
    %v1476 = vld [vmem:[#allocation22] sm:$0x1]
    %v1477 = vld [vmem:[#allocation24] sm:$0xff]
    %v1478 = vld [vmem:[#allocation24 + $0x8] sm:$0xff]
    %v1479 = vld [vmem:[#allocation24 + $0x10] sm:$0xff]
    %v1480 = vld [vmem:[#allocation24 + $0x18] sm:$0xff]
    %v1481 = vld [vmem:[#allocation24 + $0x20] sm:$0xff]
    %v1482 = vld [vmem:[#allocation24 + $0x28] sm:$0xff]
    %v1483 = vld [vmem:[#allocation24 + $0x30] sm:$0xff]
    %v1484 = vld [vmem:[#allocation24 + $0x38] sm:$0xff]
    %v1485 = vld [vmem:[%s18] sm:$0xff]
    %v1486 = vld [vmem:[%s18 + $0x8] sm:$0xff]
    %v1487 = vld [vmem:[%s18 + $0x10] sm:$0xff]
    %v1488 = vld [vmem:[%s18 + $0x18] sm:$0xff]
    %v1489 = vld [vmem:[#allocation25] sm:$0x1]
    %v1490 = vld [vmem:[#allocation27] sm:$0xff]
    %v1491 = vld [vmem:[#allocation27 + $0x8] sm:$0xff]
    %v1492 = vld [vmem:[#allocation27 + $0x10] sm:$0xff]
    %v1493 = vld [vmem:[#allocation27 + $0x18] sm:$0xff]
    %v1494 = vld [vmem:[#allocation27 + $0x20] sm:$0x3]
    %v1496 = vperm.slane %v1476, 0
    %v1499 = vsel %vm555, %v1460, 0
    %v1502 = vsel %vm555, %v1461, 0
    %v1505 = vsel %vm555, %v1462, 0
    %v1508 = vsel %vm555, %v1463, 0
    %1510 = vmatpush.msra.mxu0 0.0
    %1511 = vmatpush.msra.mxu0 0.0
    %1512 = vmatpush.msra.mxu0 0.0
    %1513 = vmatpush.msra.mxu0 0.0
    %1514 = vmatpush.msra.mxu0 0.0
    %1515 = vmatpush.msra.mxu0 0.0
    %1516 = vmatpush.msra.mxu0 0.0
    %1517 = vmatpush.msra.mxu0 0.0
    %1518 = vmatpush.msra.mxu0 0.0
    %1519 = vmatpush.msra.mxu0 0.0
    %1520 = vmatpush.msra.mxu0 0.0
    %1521 = vmatpush.msra.mxu0 0.0
    %1522 = vmatpush.msra.mxu0 %v1475
    %1523 = vmatpush.msra.mxu0 %v1474
    %1524 = vmatpush.msra.mxu0 %v1473
    %1525 = vmatpush.msra.mxu0 %v1472
    %1526 = vmatmul.f32.gmra.mxu0 %v1499
    %v1527 = vpop.f32.mrf.mxu0
    %v1528 = vadd.f32 %v1496, %v1527
    %1529 = vmatmul.f32.gmra.mxu0 %v1502
    %v1530 = vpop.f32.mrf.mxu0
    %v1531 = vadd.f32 %v1496, %v1530
    %1532 = vmatmul.f32.gmra.mxu0 %v1505
    %v1533 = vpop.f32.mrf.mxu0
    %v1534 = vadd.f32 %v1496, %v1533
    %1535 = vmatmul.f32.gmra.mxu0 %v1508
    %v1536 = vpop.f32.mrf.mxu0
    %v1537 = vadd.f32 %v1496, %v1536
    %1538 = vdwg.mxu0
    %1539 = vmatpush.msra.mxu0 0.0
    %1540 = vmatpush.msra.mxu0 0.0
    %1541 = vmatpush.msra.mxu0 0.0
    %1542 = vmatpush.msra.mxu0 0.0
    %1543 = vmatpush.msra.mxu0 0.0
    %1544 = vmatpush.msra.mxu0 0.0
    %1545 = vmatpush.msra.mxu0 0.0
    %1546 = vmatpush.msra.mxu0 0.0
    %1547 = vmatpush.msra.mxu0 0.0
    %1548 = vmatpush.msra.mxu0 0.0
    %1549 = vmatpush.msra.mxu0 0.0
    %1550 = vmatpush.msra.mxu0 0.0
    %1551 = vmatpush.msra.mxu0 %v1467
    %1552 = vmatpush.msra.mxu0 %v1466
    %1553 = vmatpush.msra.mxu0 %v1465
    %1554 = vmatpush.msra.mxu0 %v1464
    %1555 = vmatmul.f32.gmra.mxu0 %v1499
    %v1556 = vpop.f32.mrf.mxu0
    %v1557 = vadd.f32 0.0, %v1556
    %1558 = vmatmul.f32.gmra.mxu0 %v1502
    %v1559 = vpop.f32.mrf.mxu0
    %v1560 = vadd.f32 0.0, %v1559
    %1561 = vmatmul.f32.gmra.mxu0 %v1505
    %v1562 = vpop.f32.mrf.mxu0
    %v1563 = vadd.f32 0.0, %v1562
    %1564 = vmatmul.f32.gmra.mxu0 %v1508
    %v1565 = vpop.f32.mrf.mxu0
    %v1566 = vadd.f32 0.0, %v1565
    %1567 = vdwg.mxu0
    %v1569 = vsel %vm555, %v1477, 0
    %v1572 = vsel %vm555, %v1478, 0
    %v1575 = vsel %vm555, %v1479, 0
    %v1578 = vsel %vm555, %v1480, 0
    %1580 = vmatpush.msra.mxu0 0.0
    %1581 = vmatpush.msra.mxu0 0.0
    %1582 = vmatpush.msra.mxu0 0.0
    %1583 = vmatpush.msra.mxu0 0.0
    %1584 = vmatpush.msra.mxu0 0.0
    %1585 = vmatpush.msra.mxu0 0.0
    %1586 = vmatpush.msra.mxu0 0.0
    %1587 = vmatpush.msra.mxu0 0.0
    %1588 = vmatpush.msra.mxu0 0.0
    %1589 = vmatpush.msra.mxu0 0.0
    %1590 = vmatpush.msra.mxu0 0.0
    %1591 = vmatpush.msra.mxu0 0.0
    %1592 = vmatpush.msra.mxu0 %v1566
    %1593 = vmatpush.msra.mxu0 %v1563
    %1594 = vmatpush.msra.mxu0 %v1560
    %1595 = vmatpush.msra.mxu0 %v1557
    %1596 = vmatmul.f32.gmra.mxu0 %v1569
    %v1597 = vpop.f32.mrf.mxu0
    %v1598 = vadd.f32 0.0, %v1597
    %1599 = vmatmul.f32.gmra.mxu0 %v1572
    %v1600 = vpop.f32.mrf.mxu0
    %v1601 = vadd.f32 0.0, %v1600
    %1602 = vmatmul.f32.gmra.mxu0 %v1575
    %v1603 = vpop.f32.mrf.mxu0
    %v1604 = vadd.f32 0.0, %v1603
    %1605 = vmatmul.f32.gmra.mxu0 %v1578
    %v1606 = vpop.f32.mrf.mxu0
    %v1607 = vadd.f32 0.0, %v1606
    %1608 = vdwg.mxu0
    %v1609 = vadd.f32 %v1528, %v1598
    %v1610 = vadd.f32 %v1531, %v1601
    %v1611 = vadd.f32 %v1534, %v1604
    %v1612 = vadd.f32 %v1537, %v1607
    %1613 = vmatpush.msra.mxu0 0.0
    %1614 = vmatpush.msra.mxu0 0.0
    %1615 = vmatpush.msra.mxu0 0.0
    %1616 = vmatpush.msra.mxu0 0.0
    %1617 = vmatpush.msra.mxu0 0.0
    %1618 = vmatpush.msra.mxu0 0.0
    %1619 = vmatpush.msra.mxu0 0.0
    %1620 = vmatpush.msra.mxu0 0.0
    %1621 = vmatpush.msra.mxu0 0.0
    %1622 = vmatpush.msra.mxu0 0.0
    %1623 = vmatpush.msra.mxu0 0.0
    %1624 = vmatpush.msra.mxu0 0.0
    %1625 = vmatpush.msra.mxu0 %v1471
    %1626 = vmatpush.msra.mxu0 %v1470
    %1627 = vmatpush.msra.mxu0 %v1469
    %1628 = vmatpush.msra.mxu0 %v1468
    %1629 = vmatmul.f32.gmra.mxu0 %v1499
    %v1630 = vpop.f32.mrf.mxu0
    %v1631 = vadd.f32 0.0, %v1630
    %1632 = vmatmul.f32.gmra.mxu0 %v1502
    %v1633 = vpop.f32.mrf.mxu0
    %v1634 = vadd.f32 0.0, %v1633
    %1635 = vmatmul.f32.gmra.mxu0 %v1505
    %v1636 = vpop.f32.mrf.mxu0
    %v1637 = vadd.f32 0.0, %v1636
    %1638 = vmatmul.f32.gmra.mxu0 %v1508
    %v1639 = vpop.f32.mrf.mxu0
    %v1640 = vadd.f32 0.0, %v1639
    %1641 = vdwg.mxu0
    %v1643 = vsel %vm555, %v1481, 0
    %v1646 = vsel %vm555, %v1482, 0
    %v1649 = vsel %vm555, %v1483, 0
    %v1652 = vsel %vm555, %v1484, 0
    %1654 = vmatpush.msra.mxu0 0.0
    %1655 = vmatpush.msra.mxu0 0.0
    %1656 = vmatpush.msra.mxu0 0.0
    %1657 = vmatpush.msra.mxu0 0.0
    %1658 = vmatpush.msra.mxu0 0.0
    %1659 = vmatpush.msra.mxu0 0.0
    %1660 = vmatpush.msra.mxu0 0.0
    %1661 = vmatpush.msra.mxu0 0.0
    %1662 = vmatpush.msra.mxu0 0.0
    %1663 = vmatpush.msra.mxu0 0.0
    %1664 = vmatpush.msra.mxu0 0.0
    %1665 = vmatpush.msra.mxu0 0.0
    %1666 = vmatpush.msra.mxu0 %v1640
    %1667 = vmatpush.msra.mxu0 %v1637
    %1668 = vmatpush.msra.mxu0 %v1634
    %1669 = vmatpush.msra.mxu0 %v1631
    %1670 = vmatmul.f32.gmra.mxu0 %v1643
    %v1671 = vpop.f32.mrf.mxu0
    %v1672 = vadd.f32 0.0, %v1671
    %1673 = vmatmul.f32.gmra.mxu0 %v1646
    %v1674 = vpop.f32.mrf.mxu0
    %v1675 = vadd.f32 0.0, %v1674
    %1676 = vmatmul.f32.gmra.mxu0 %v1649
    %v1677 = vpop.f32.mrf.mxu0
    %v1678 = vadd.f32 0.0, %v1677
    %1679 = vmatmul.f32.gmra.mxu0 %v1652
    %v1680 = vpop.f32.mrf.mxu0
    %v1681 = vadd.f32 0.0, %v1680
    %1682 = vdwg.mxu0
    %v1683 = vadd.f32 %v1609, %v1672
    %v1684 = vadd.f32 %v1610, %v1675
    %v1685 = vadd.f32 %v1611, %v1678
    %v1686 = vadd.f32 %v1612, %v1681
    %v1688 = vsel %vm876, %v1487, 0
    %1690 = vmatpush.msra.mxu0 0.0
    %1691 = vmatpush.msra.mxu0 0.0
    %1692 = vmatpush.msra.mxu0 0.0
    %1693 = vmatpush.msra.mxu0 0.0
    %1694 = vmatpush.msra.mxu0 0.0
    %1695 = vmatpush.msra.mxu0 0.0
    %1696 = vmatpush.msra.mxu0 0.0
    %1697 = vmatpush.msra.mxu0 0.0
    %1698 = vmatpush.msra.mxu0 0.0
    %1699 = vmatpush.msra.mxu0 0.0
    %1700 = vmatpush.msra.mxu0 0.0
    %1701 = vmatpush.msra.mxu0 0.0
    %1702 = vmatpush.msra.mxu0 0.0
    %1703 = vmatpush.msra.mxu0 %v1688
    %1704 = vmatpush.msra.mxu0 %v1486
    %1705 = vmatpush.msra.mxu0 %v1485
    %1706 = vmatmul.f32.gmra.mxu0 %v1366
    %v1707 = vpop.f32.mrf.mxu0
    %v1708 = vadd.f32 0.0, %v1707
    %1709 = vmatmul.f32.gmra.mxu0 %v1369
    %v1710 = vpop.f32.mrf.mxu0
    %v1711 = vadd.f32 0.0, %v1710
    %1712 = vmatmul.f32.gmra.mxu0 %v1372
    %v1713 = vpop.f32.mrf.mxu0
    %v1714 = vadd.f32 0.0, %v1713
    %1715 = vmatmul.f32.gmra.mxu0 %v1375
    %v1716 = vpop.f32.mrf.mxu0
    %v1717 = vadd.f32 0.0, %v1716
    %1718 = vdwg.mxu0
    %v1720 = vperm.slane %v1489, 0
    %v1722 = vadd.f32 %v1720, %v1708
    %v1723 = vadd.f32 %v1720, %v1711
    %v1724 = vadd.f32 %v1720, %v1714
    %v1725 = vadd.f32 %v1720, %v1717
    %v1726 = vrot.slane %v1487, 2
    %v1727 = vsel %vm876, %v1726, 0
    %1729 = vmatpush.msra.mxu0 0.0
    %1730 = vmatpush.msra.mxu0 0.0
    %1731 = vmatpush.msra.mxu0 0.0
    %1732 = vmatpush.msra.mxu0 0.0
    %1733 = vmatpush.msra.mxu0 0.0
    %1734 = vmatpush.msra.mxu0 0.0
    %1735 = vmatpush.msra.mxu0 0.0
    %1736 = vmatpush.msra.mxu0 0.0
    %1737 = vmatpush.msra.mxu0 0.0
    %1738 = vmatpush.msra.mxu0 0.0
    %1739 = vmatpush.msra.mxu0 0.0
    %1740 = vmatpush.msra.mxu0 0.0
    %1741 = vmatpush.msra.mxu0 0.0
    %1742 = vmatpush.msra.mxu0 0.0
    %1743 = vmatpush.msra.mxu0 0.0
    %1744 = vmatpush.msra.mxu0 %v1727
    %1745 = vmatmul.f32.gmra.mxu0 %v1413
    %v1746 = vpop.f32.mrf.mxu0
    %v1747 = vadd.f32 0.0, %v1746
    %1748 = vmatmul.f32.gmra.mxu0 %v1416
    %v1749 = vpop.f32.mrf.mxu0
    %v1750 = vadd.f32 0.0, %v1749
    %1751 = vmatmul.f32.gmra.mxu0 %v1419
    %v1752 = vpop.f32.mrf.mxu0
    %v1753 = vadd.f32 0.0, %v1752
    %1754 = vmatmul.f32.gmra.mxu0 %v1422
    %v1755 = vpop.f32.mrf.mxu0
    %v1756 = vadd.f32 0.0, %v1755
    %1757 = vdwg.mxu0
    %v1758 = vadd.f32 %v1722, %v1747
    %v1759 = vadd.f32 %v1723, %v1750
    %v1760 = vadd.f32 %v1724, %v1753
    %v1761 = vadd.f32 %v1725, %v1756
    %v1763 = vrot.slane %v1487, 4
    %v1764 = vrot.slane %v1488, 4
    %v1765 = vsel %vm766, %v1763, %v1764
    %v1767 = vsel %vm430, %v1764, 0
    %1769 = vmatpush.msra.mxu0 0.0
    %1770 = vmatpush.msra.mxu0 0.0
    %1771 = vmatpush.msra.mxu0 0.0
    %1772 = vmatpush.msra.mxu0 0.0
    %1773 = vmatpush.msra.mxu0 0.0
    %1774 = vmatpush.msra.mxu0 0.0
    %1775 = vmatpush.msra.mxu0 0.0
    %1776 = vmatpush.msra.mxu0 0.0
    %1777 = vmatpush.msra.mxu0 0.0
    %1778 = vmatpush.msra.mxu0 0.0
    %1779 = vmatpush.msra.mxu0 0.0
    %1780 = vmatpush.msra.mxu0 0.0
    %1781 = vmatpush.msra.mxu0 0.0
    %1782 = vmatpush.msra.mxu0 0.0
    %1783 = vmatpush.msra.mxu0 %v1767
    %1784 = vmatpush.msra.mxu0 %v1765
    %1785 = vmatmul.f32.gmra.mxu0 %v419
    %v1786 = vpop.f32.mrf.mxu0
    %v1787 = vadd.f32 0.0, %v1786
    %1788 = vmatmul.f32.gmra.mxu0 %v422
    %v1789 = vpop.f32.mrf.mxu0
    %v1790 = vadd.f32 0.0, %v1789
    %1791 = vmatmul.f32.gmra.mxu0 %v425
    %v1792 = vpop.f32.mrf.mxu0
    %v1793 = vadd.f32 0.0, %v1792
    %1794 = vmatmul.f32.gmra.mxu0 %v428
    %v1795 = vpop.f32.mrf.mxu0
    %v1796 = vadd.f32 0.0, %v1795
    %1797 = vdwg.mxu0
    %v1798 = vadd.f32 %v1758, %v1787
    %v1799 = vadd.f32 %v1759, %v1790
    %v1800 = vadd.f32 %v1760, %v1793
    %v1801 = vadd.f32 %v1761, %v1796
    %v1802 = vrot.slane %v1488, 5
    %v1803 = vsel %vm728, %v1802, 0
    %1805 = vmatpush.msra.mxu0 0.0
    %1806 = vmatpush.msra.mxu0 0.0
    %1807 = vmatpush.msra.mxu0 0.0
    %1808 = vmatpush.msra.mxu0 0.0
    %1809 = vmatpush.msra.mxu0 0.0
    %1810 = vmatpush.msra.mxu0 0.0
    %1811 = vmatpush.msra.mxu0 0.0
    %1812 = vmatpush.msra.mxu0 0.0
    %1813 = vmatpush.msra.mxu0 0.0
    %1814 = vmatpush.msra.mxu0 0.0
    %1815 = vmatpush.msra.mxu0 0.0
    %1816 = vmatpush.msra.mxu0 0.0
    %1817 = vmatpush.msra.mxu0 0.0
    %1818 = vmatpush.msra.mxu0 0.0
    %1819 = vmatpush.msra.mxu0 0.0
    %1820 = vmatpush.msra.mxu0 %v1803
    %1821 = vmatmul.f32.gmra.mxu0 %v717
    %v1822 = vpop.f32.mrf.mxu0
    %v1823 = vadd.f32 0.0, %v1822
    %1824 = vmatmul.f32.gmra.mxu0 %v720
    %v1825 = vpop.f32.mrf.mxu0
    %v1826 = vadd.f32 0.0, %v1825
    %1827 = vmatmul.f32.gmra.mxu0 %v723
    %v1828 = vpop.f32.mrf.mxu0
    %v1829 = vadd.f32 0.0, %v1828
    %1830 = vmatmul.f32.gmra.mxu0 %v726
    %v1831 = vpop.f32.mrf.mxu0
    %v1832 = vadd.f32 0.0, %v1831
    %1833 = vdwg.mxu0
    %v1834 = vadd.f32 %v1798, %v1823
    %v1835 = vadd.f32 %v1799, %v1826
    %v1836 = vadd.f32 %v1800, %v1829
    %v1837 = vadd.f32 %v1801, %v1832
    %v1839 = vrot.slane %v1490, 4
    %v1840 = vsel %vm876, %v1839, 0
    %1842 = vmatpush.msra.mxu0 0.0
    %1843 = vmatpush.msra.mxu0 0.0
    %1844 = vmatpush.msra.mxu0 0.0
    %1845 = vmatpush.msra.mxu0 0.0
    %1846 = vmatpush.msra.mxu0 0.0
    %1847 = vmatpush.msra.mxu0 0.0
    %1848 = vmatpush.msra.mxu0 0.0
    %1849 = vmatpush.msra.mxu0 0.0
    %1850 = vmatpush.msra.mxu0 0.0
    %1851 = vmatpush.msra.mxu0 0.0
    %1852 = vmatpush.msra.mxu0 0.0
    %1853 = vmatpush.msra.mxu0 0.0
    %1854 = vmatpush.msra.mxu0 0.0
    %1855 = vmatpush.msra.mxu0 0.0
    %1856 = vmatpush.msra.mxu0 0.0
    %1857 = vmatpush.msra.mxu0 %v1840
    %1858 = vmatmul.f32.gmra.mxu0 %v865
    %v1859 = vpop.f32.mrf.mxu0
    %v1860 = vadd.f32 0.0, %v1859
    %1861 = vmatmul.f32.gmra.mxu0 %v868
    %v1862 = vpop.f32.mrf.mxu0
    %v1863 = vadd.f32 0.0, %v1862
    %1864 = vmatmul.f32.gmra.mxu0 %v871
    %v1865 = vpop.f32.mrf.mxu0
    %v1866 = vadd.f32 0.0, %v1865
    %1867 = vmatmul.f32.gmra.mxu0 %v874
    %v1868 = vpop.f32.mrf.mxu0
    %v1869 = vadd.f32 0.0, %v1868
    %1870 = vdwg.mxu0
    %v1871 = vsel %vm766, %v1490, 0
    %1873 = vmatpush.msra.mxu0 0.0
    %1874 = vmatpush.msra.mxu0 0.0
    %1875 = vmatpush.msra.mxu0 0.0
    %1876 = vmatpush.msra.mxu0 0.0
    %1877 = vmatpush.msra.mxu0 0.0
    %1878 = vmatpush.msra.mxu0 0.0
    %1879 = vmatpush.msra.mxu0 0.0
    %1880 = vmatpush.msra.mxu0 0.0
    %1881 = vmatpush.msra.mxu0 0.0
    %1882 = vmatpush.msra.mxu0 0.0
    %1883 = vmatpush.msra.mxu0 0.0
    %1884 = vmatpush.msra.mxu0 0.0
    %1885 = vmatpush.msra.mxu0 0.0
    %1886 = vmatpush.msra.mxu0 0.0
    %1887 = vmatpush.msra.mxu0 0.0
    %1888 = vmatpush.msra.mxu0 %v1871
    %1889 = vmatmul.f32.gmra.mxu0 %v824
    %v1890 = vpop.f32.mrf.mxu0
    %v1891 = vadd.f32 %v1860, %v1890
    %1892 = vmatmul.f32.gmra.mxu0 %v826
    %v1893 = vpop.f32.mrf.mxu0
    %v1894 = vadd.f32 %v1863, %v1893
    %1895 = vmatmul.f32.gmra.mxu0 %v828
    %v1896 = vpop.f32.mrf.mxu0
    %v1897 = vadd.f32 %v1866, %v1896
    %1898 = vmatmul.f32.gmra.mxu0 %v830
    %v1899 = vpop.f32.mrf.mxu0
    %v1900 = vadd.f32 %v1869, %v1899
    %1901 = vdwg.mxu0
    %v1902 = vrot.slane %v1490, 6
    %v1903 = vsel %vm876, %v1902, 0
    %1905 = vmatpush.msra.mxu0 0.0
    %1906 = vmatpush.msra.mxu0 0.0
    %1907 = vmatpush.msra.mxu0 0.0
    %1908 = vmatpush.msra.mxu0 0.0
    %1909 = vmatpush.msra.mxu0 0.0
    %1910 = vmatpush.msra.mxu0 0.0
    %1911 = vmatpush.msra.mxu0 0.0
    %1912 = vmatpush.msra.mxu0 0.0
    %1913 = vmatpush.msra.mxu0 0.0
    %1914 = vmatpush.msra.mxu0 0.0
    %1915 = vmatpush.msra.mxu0 0.0
    %1916 = vmatpush.msra.mxu0 0.0
    %1917 = vmatpush.msra.mxu0 0.0
    %1918 = vmatpush.msra.mxu0 0.0
    %1919 = vmatpush.msra.mxu0 0.0
    %1920 = vmatpush.msra.mxu0 %v1903
    %1921 = vmatmul.f32.gmra.mxu0 %v1413
    %v1922 = vpop.f32.mrf.mxu0
    %v1923 = vadd.f32 0.0, %v1922
    %1924 = vmatmul.f32.gmra.mxu0 %v1416
    %v1925 = vpop.f32.mrf.mxu0
    %v1926 = vadd.f32 0.0, %v1925
    %1927 = vmatmul.f32.gmra.mxu0 %v1419
    %v1928 = vpop.f32.mrf.mxu0
    %v1929 = vadd.f32 0.0, %v1928
    %1930 = vmatmul.f32.gmra.mxu0 %v1422
    %v1931 = vpop.f32.mrf.mxu0
    %v1932 = vadd.f32 0.0, %v1931
    %1933 = vdwg.mxu0
    %v1934 = vadd.f32 %v1891, %v1923
    %v1935 = vadd.f32 %v1894, %v1926
    %v1936 = vadd.f32 %v1897, %v1929
    %v1937 = vadd.f32 %v1900, %v1932
    %v1939 = vsel %vm947, %v1683, 0
    %v1942 = vsel %vm947, %v1684, 0
    %v1945 = vsel %vm947, %v1685, 0
    %v1948 = vsel %vm947, %v1686, 0
    %1950 = vmatpush.msra.mxu0 0.0
    %1951 = vmatpush.msra.mxu0 0.0
    %1952 = vmatpush.msra.mxu0 0.0
    %1953 = vmatpush.msra.mxu0 0.0
    %1954 = vmatpush.msra.mxu0 0.0
    %1955 = vmatpush.msra.mxu0 0.0
    %1956 = vmatpush.msra.mxu0 0.0
    %1957 = vmatpush.msra.mxu0 0.0
    %1958 = vmatpush.msra.mxu0 0.0
    %1959 = vmatpush.msra.mxu0 0.0
    %1960 = vmatpush.msra.mxu0 0.0
    %1961 = vmatpush.msra.mxu0 0.0
    %1962 = vmatpush.msra.mxu0 0.0
    %1963 = vmatpush.msra.mxu0 %v1493
    %1964 = vmatpush.msra.mxu0 %v1492
    %1965 = vmatpush.msra.mxu0 %v1491
    %1966 = vmatmul.f32.gmra.mxu0 %v1939
    %v1967 = vpop.f32.mrf.mxu0
    %v1968 = vadd.f32 0.0, %v1967
    %1969 = vmatmul.f32.gmra.mxu0 %v1942
    %v1970 = vpop.f32.mrf.mxu0
    %v1971 = vadd.f32 0.0, %v1970
    %1972 = vmatmul.f32.gmra.mxu0 %v1945
    %v1973 = vpop.f32.mrf.mxu0
    %v1974 = vadd.f32 0.0, %v1973
    %1975 = vmatmul.f32.gmra.mxu0 %v1948
    %v1976 = vpop.f32.mrf.mxu0
    %v1977 = vadd.f32 0.0, %v1976
    %1978 = vdwg.mxu0
    %v1979 = vadd.f32 %v1934, %v1968
    %v1980 = vadd.f32 %v1935, %v1971
    %v1981 = vadd.f32 %v1936, %v1974
    %v1982 = vadd.f32 %v1937, %v1977
    %v1984 = vsel %vm863, %v1834, 0
    %v1987 = vsel %vm863, %v1835, 0
    %v1990 = vsel %vm863, %v1836, 0
    %v1993 = vsel %vm863, %v1837, 0
    %v1996 = vsel %vm876, %v1494, 0
    %1998 = vmatpush.msra.mxu0 0.0
    %1999 = vmatpush.msra.mxu0 0.0
    %2000 = vmatpush.msra.mxu0 0.0
    %2001 = vmatpush.msra.mxu0 0.0
    %2002 = vmatpush.msra.mxu0 0.0
    %2003 = vmatpush.msra.mxu0 0.0
    %2004 = vmatpush.msra.mxu0 0.0
    %2005 = vmatpush.msra.mxu0 0.0
    %2006 = vmatpush.msra.mxu0 0.0
    %2007 = vmatpush.msra.mxu0 0.0
    %2008 = vmatpush.msra.mxu0 0.0
    %2009 = vmatpush.msra.mxu0 0.0
    %2010 = vmatpush.msra.mxu0 0.0
    %2011 = vmatpush.msra.mxu0 0.0
    %2012 = vmatpush.msra.mxu0 0.0
    %2013 = vmatpush.msra.mxu0 %v1996
    %2014 = vmatmul.f32.gmra.mxu0 %v1984
    %v2015 = vpop.f32.mrf.mxu0
    %v2016 = vadd.f32 0.0, %v2015
    %2017 = vmatmul.f32.gmra.mxu0 %v1987
    %v2018 = vpop.f32.mrf.mxu0
    %v2019 = vadd.f32 0.0, %v2018
    %2020 = vmatmul.f32.gmra.mxu0 %v1990
    %v2021 = vpop.f32.mrf.mxu0
    %v2022 = vadd.f32 0.0, %v2021
    %2023 = vmatmul.f32.gmra.mxu0 %v1993
    %v2024 = vpop.f32.mrf.mxu0
    %v2025 = vadd.f32 0.0, %v2024
    %2026 = vdwg.mxu0
    %v2027 = vadd.f32 %v1979, %v2016
    %v2028 = vadd.f32 %v1980, %v2019
    %v2029 = vadd.f32 %v1981, %v2022
    %v2030 = vadd.f32 %v1982, %v2025
    %v2031 = vmax.f32 %v2027, 0.0
    %v2032 = vmax.f32 %v2028, 0.0
    %v2033 = vmax.f32 %v2029, 0.0
    %v2034 = vmax.f32 %v2030, 0.0
    %vm2041 = vcmask 1044480
    %v2042 = vrot.slane %v406, 3
    %v2043 = vrot.slane %v407, 3
    %v2044 = vsel %vm2041, %v2042, %v2043
    %v2045 = vrot.slane %v408, 3
    %v2046 = vsel %vm2041, %v2043, %v2045
    %v2047 = vrot.slane %v409, 3
    %v2048 = vsel %vm2041, %v2045, %v2047
    %v2049 = vrot.slane %v410, 3
    %v2050 = vsel %vm2041, %v2047, %v2049
    %v2051 = vrot.slane %v411, 3
    %v2052 = vsel %vm2041, %v2049, %v2051
    %vm2058 = vcmask 326656
    %v2060 = vsel %vm2058, %v2031, 0
    %v2063 = vsel %vm2058, %v2032, 0
    %v2066 = vsel %vm2058, %v2033, 0
    %v2069 = vsel %vm2058, %v2034, 0
    %2071 = vmatpush.msra.mxu0 0.0
    %2072 = vmatpush.msra.mxu0 0.0
    %2073 = vmatpush.msra.mxu0 0.0
    %2074 = vmatpush.msra.mxu0 0.0
    %2075 = vmatpush.msra.mxu0 0.0
    %2076 = vmatpush.msra.mxu0 0.0
    %2077 = vmatpush.msra.mxu0 0.0
    %2078 = vmatpush.msra.mxu0 0.0
    %2079 = vmatpush.msra.mxu0 0.0
    %2080 = vmatpush.msra.mxu0 0.0
    %2081 = vmatpush.msra.mxu0 0.0
    %2082 = vmatpush.msra.mxu0 %v2052
    %2083 = vmatpush.msra.mxu0 %v2050
    %2084 = vmatpush.msra.mxu0 %v2048
    %2085 = vmatpush.msra.mxu0 %v2046
    %2086 = vmatpush.msra.mxu0 %v2044
    %2087 = vmatmul.f32.gmra.mxu0 %v2060
    %v2088 = vpop.f32.mrf.mxu0
    %v2089 = vadd.f32 0.0, %v2088
    %2090 = vmatmul.f32.gmra.mxu0 %v2063
    %v2091 = vpop.f32.mrf.mxu0
    %v2092 = vadd.f32 0.0, %v2091
    %2093 = vmatmul.f32.gmra.mxu0 %v2066
    %v2094 = vpop.f32.mrf.mxu0
    %v2095 = vadd.f32 0.0, %v2094
    %2096 = vmatmul.f32.gmra.mxu0 %v2069
    %v2097 = vpop.f32.mrf.mxu0
    %v2098 = vadd.f32 0.0, %v2097
    %2099 = vdwg.mxu0
    %v2100 = vsel %vm728, %v406, 0
    %2102 = vmatpush.msra.mxu0 0.0
    %2103 = vmatpush.msra.mxu0 0.0
    %2104 = vmatpush.msra.mxu0 0.0
    %2105 = vmatpush.msra.mxu0 0.0
    %2106 = vmatpush.msra.mxu0 0.0
    %2107 = vmatpush.msra.mxu0 0.0
    %2108 = vmatpush.msra.mxu0 0.0
    %2109 = vmatpush.msra.mxu0 0.0
    %2110 = vmatpush.msra.mxu0 0.0
    %2111 = vmatpush.msra.mxu0 0.0
    %2112 = vmatpush.msra.mxu0 0.0
    %2113 = vmatpush.msra.mxu0 0.0
    %2114 = vmatpush.msra.mxu0 0.0
    %2115 = vmatpush.msra.mxu0 0.0
    %2116 = vmatpush.msra.mxu0 0.0
    %2117 = vmatpush.msra.mxu0 %v2100
    %2118 = vmatmul.f32.gmra.mxu0 %v717
    %v2119 = vpop.f32.mrf.mxu0
    %v2120 = vadd.f32 %v2089, %v2119
    %2121 = vmatmul.f32.gmra.mxu0 %v720
    %v2122 = vpop.f32.mrf.mxu0
    %v2123 = vadd.f32 %v2092, %v2122
    %2124 = vmatmul.f32.gmra.mxu0 %v723
    %v2125 = vpop.f32.mrf.mxu0
    %v2126 = vadd.f32 %v2095, %v2125
    %2127 = vmatmul.f32.gmra.mxu0 %v726
    %v2128 = vpop.f32.mrf.mxu0
    %v2129 = vadd.f32 %v2098, %v2128
    %2130 = vdwg.mxu0
    %v2132 = vperm.slane %v412, 0
    %v2134 = vadd.f32 %v2120, %v2132
    %v2135 = vadd.f32 %v2123, %v2132
    %v2136 = vadd.f32 %v2126, %v2132
    %v2137 = vadd.f32 %v2129, %v2132
    %v2139 = vperm.slane %v413, 0
    %v2141 = vmul.f32 %v2134, %v2139
    %v2142 = vmul.f32 %v2135, %v2139
    %v2143 = vmul.f32 %v2136, %v2139
    %v2144 = vmul.f32 %v2137, %v2139
    %v2146 = vperm.slane %v414, 0
    %v2148 = vadd.f32 %v2141, %v2146
    %v2149 = vadd.f32 %v2142, %v2146
    %v2150 = vadd.f32 %v2143, %v2146
    %v2151 = vadd.f32 %v2144, %v2146
    %v2152 = vmax.f32 %v2148, 0.0
    %v2153 = vmax.f32 %v2149, 0.0
    %v2154 = vmax.f32 %v2150, 0.0
    %v2155 = vmax.f32 %v2151, 0.0
    %v2157 = vperm.slane %v416, 0
    %v2160 = vsel %vm484, %v2152, 0
    %v2163 = vsel %vm484, %v2153, 0
    %v2166 = vsel %vm484, %v2154, 0
    %v2169 = vsel %vm484, %v2155, 0
    %2171 = vmatpush.msra.mxu0 0.0
    %2172 = vmatpush.msra.mxu0 0.0
    %2173 = vmatpush.msra.mxu0 0.0
    %2174 = vmatpush.msra.mxu0 0.0
    %2175 = vmatpush.msra.mxu0 0.0
    %2176 = vmatpush.msra.mxu0 0.0
    %2177 = vmatpush.msra.mxu0 0.0
    %2178 = vmatpush.msra.mxu0 0.0
    %2179 = vmatpush.msra.mxu0 0.0
    %2180 = vmatpush.msra.mxu0 0.0
    %2181 = vmatpush.msra.mxu0 0.0
    %2182 = vmatpush.msra.mxu0 0.0
    %2183 = vmatpush.msra.mxu0 0.0
    %2184 = vmatpush.msra.mxu0 0.0
    %2185 = vmatpush.msra.mxu0 0.0
    %2186 = vmatpush.msra.mxu0 %v415
    %2187 = vmatmul.f32.gmra.mxu0 %v2160
    %v2188 = vpop.f32.mrf.mxu0
    %v2189 = vadd.f32 %v2157, %v2188
    %2190 = vmatmul.f32.gmra.mxu0 %v2163
    %v2191 = vpop.f32.mrf.mxu0
    %v2192 = vadd.f32 %v2157, %v2191
    %2193 = vmatmul.f32.gmra.mxu0 %v2166
    %v2194 = vpop.f32.mrf.mxu0
    %v2195 = vadd.f32 %v2157, %v2194
    %2196 = vmatmul.f32.gmra.mxu0 %v2169
    %v2197 = vpop.f32.mrf.mxu0
    %v2198 = vadd.f32 %v2157, %v2197
    %2199 = vdwg.mxu0
    %v2200 = vmin.f32 %v2189, 5.0
    %v2201 = vmin.f32 %v2192, 5.0
    %v2202 = vmin.f32 %v2195, 5.0
    %v2203 = vmin.f32 %v2198, 5.0
    %v2204 = vmul.f32 %v2200, 1.442695
    %v2205 = vpow.pop %v2204
    %v2206 = vmul.f32 %v2201, 1.442695
    %v2207 = vpow.pop %v2206
    %v2208 = vmul.f32 %v2202, 1.442695
    %v2209 = vpow.pop %v2208
    %v2210 = vmul.f32 %v2203, 1.442695
    %v2211 = vpow.pop %v2210
    %v2212 = vmax.f32 %v2205, 0.020833334
    %v2213 = vmax.f32 %v2207, 0.020833334
    %v2214 = vmax.f32 %v2209, 0.020833334
    %v2215 = vmax.f32 %v2211, 0.020833334
    %v2216 = vmin.f32 %v2212, 100.0
    %v2217 = vmin.f32 %v2213, 100.0
    %v2218 = vmin.f32 %v2214, 100.0
    %v2219 = vmin.f32 %v2215, 100.0
    %vm2220 = vcmask 7168
    %2221 = vst.msk [vmem:[%s27] sm:$0xff] %vm2220, %v2216
    %2222 = vst.msk [vmem:[%s27 + $0x8] sm:$0xff] %vm2220, %v2217
    %2223 = vst.msk [vmem:[%s27 + $0x10] sm:$0xff] %vm2220, %v2218
    %2224 = vst.msk [vmem:[%s27 + $0x18] sm:$0xff] %vm2220, %v2219
    %v2225 = vsub.f32 0.0, %v2189
    %v2226 = vsub.f32 0.0, %v2192
    %v2227 = vsub.f32 0.0, %v2195
    %v2228 = vsub.f32 0.0, %v2198
    %v2229 = vmul.f32 %v2225, 1.442695
    %v2230 = vpow.pop %v2229
    %v2231 = vmul.f32 %v2226, 1.442695
    %v2232 = vpow.pop %v2231
    %v2233 = vmul.f32 %v2227, 1.442695
    %v2234 = vpow.pop %v2233
    %v2235 = vmul.f32 %v2228, 1.442695
    %v2236 = vpow.pop %v2235
    %v2237 = vadd.f32 %v2230, 1.0
    %v2238 = vadd.f32 %v2232, 1.0
    %v2239 = vadd.f32 %v2234, 1.0
    %v2240 = vadd.f32 %v2236, 1.0
    %v2241 = vrcp.pop %v2237
    %v2242 = vmul.f32 %v2237, %v2241
    %v2243 = vsub.f32 1.0, %v2242
    %v2244 = vmul.f32 %v2241, %v2243
    %v2245 = vadd.f32 %v2241, %v2244
    %vm2246 = vweird.f32 %v2237
    %vm2247 = vweird.f32 %v2241
    %vm2248 = vmor %vm2246, %vm2247
    %v2249 = vsel %vm2248, %v2241, %v2245
    %v2250 = vand.u32 2147483647, %v2237
    %vm2251 = vcmp.eq.f32.partialorder %v2250, 8.507059e+37
    %v2252 = vand.u32 %v2237, 2147483648
    %v2253 = vor.u32 1.1754944e-38, %v2252
    %v2254 = vsel %vm2251, %v2253, %v2249
    %v2255 = vmul.f32 1.0, %v2254
    %v2256 = vrcp.pop %v2238
    %v2257 = vmul.f32 %v2238, %v2256
    %v2258 = vsub.f32 1.0, %v2257
    %v2259 = vmul.f32 %v2256, %v2258
    %v2260 = vadd.f32 %v2256, %v2259
    %vm2261 = vweird.f32 %v2238
    %vm2262 = vweird.f32 %v2256
    %vm2263 = vmor %vm2261, %vm2262
    %v2264 = vsel %vm2263, %v2256, %v2260
    %v2265 = vand.u32 2147483647, %v2238
    %vm2266 = vcmp.eq.f32.partialorder %v2265, 8.507059e+37
    %v2267 = vand.u32 %v2238, 2147483648
    %v2268 = vor.u32 1.1754944e-38, %v2267
    %v2269 = vsel %vm2266, %v2268, %v2264
    %v2270 = vmul.f32 1.0, %v2269
    %v2271 = vrcp.pop %v2239
    %v2272 = vmul.f32 %v2239, %v2271
    %v2273 = vsub.f32 1.0, %v2272
    %v2274 = vmul.f32 %v2271, %v2273
    %v2275 = vadd.f32 %v2271, %v2274
    %vm2276 = vweird.f32 %v2239
    %vm2277 = vweird.f32 %v2271
    %vm2278 = vmor %vm2276, %vm2277
    %v2279 = vsel %vm2278, %v2271, %v2275
    %v2280 = vand.u32 2147483647, %v2239
    %vm2281 = vcmp.eq.f32.partialorder %v2280, 8.507059e+37
    %v2282 = vand.u32 %v2239, 2147483648
    %v2283 = vor.u32 1.1754944e-38, %v2282
    %v2284 = vsel %vm2281, %v2283, %v2279
    %v2285 = vmul.f32 1.0, %v2284
    %v2286 = vrcp.pop %v2240
    %v2287 = vmul.f32 %v2240, %v2286
    %v2288 = vsub.f32 1.0, %v2287
    %v2289 = vmul.f32 %v2286, %v2288
    %v2290 = vadd.f32 %v2286, %v2289
    %vm2291 = vweird.f32 %v2240
    %vm2292 = vweird.f32 %v2286
    %vm2293 = vmor %vm2291, %vm2292
    %v2294 = vsel %vm2293, %v2286, %v2290
    %v2295 = vand.u32 2147483647, %v2240
    %vm2296 = vcmp.eq.f32.partialorder %v2295, 8.507059e+37
    %v2297 = vand.u32 %v2240, 2147483648
    %v2298 = vor.u32 1.1754944e-38, %v2297
    %v2299 = vsel %vm2296, %v2298, %v2294
    %v2300 = vmul.f32 1.0, %v2299
    %2305 = vrot.lane.b32.xlu0 %v2255, 127
    %v2306 = vpop.permute.xlu0 %2305
    %2307 = vrot.lane.b32.xlu0 %v2270, 127
    %v2308 = vpop.permute.xlu0 %2307
    %2309 = vrot.lane.b32.xlu0 %v2285, 127
    %v2310 = vpop.permute.xlu0 %2309
    %2311 = vrot.lane.b32.xlu0 %v2300, 127
    %v2312 = vpop.permute.xlu0 %2311
    %2317 = vst.msk [vmem:[%s28] sm:$0xff] %vm2220, %v2306
    %2318 = vst.msk [vmem:[%s28 + $0x8] sm:$0xff] %vm2220, %v2308
    %2319 = vst.msk [vmem:[%s28 + $0x10] sm:$0xff] %vm2220, %v2310
    %2320 = vst.msk [vmem:[%s28 + $0x18] sm:$0xff] %vm2220, %v2312
    // Predicated region
    $region194: #{tpc_forward.1} parent=1 // pred_check
      _
    $region195: #{tpc_forward.1} parent=1 // pred_check_branch
      %2322 = sbr.rel (0) target = $region197
    $region196: #{tpc_forward.1} parent=1 // pred_region
      _
    $region197: #{tpc_forward.1} parent=1 // pred_fallthru
      _
    // Predicated region
    $region198: #{tpc_forward.1} parent=1 // pred_check
      _
    $region199: #{tpc_forward.1} parent=1 // pred_check_branch
      %2324 = sbr.rel (0) target = $region201
    $region200: #{tpc_forward.1} parent=1 // pred_region
      _
    $region201: #{tpc_forward.1} parent=1 // pred_fallthru
      _
    // Predicated region
    $region202: #{tpc_forward.1} parent=1 // pred_check
      _
    $region203: #{tpc_forward.1} parent=1 // pred_check_branch
      %2326 = sbr.rel (0) target = $region205
    $region204: #{tpc_forward.1} parent=1 // pred_region
      _
    $region205: #{tpc_forward.1} parent=1 // pred_fallthru
      _
    // Predicated region
    $region206: #{tpc_forward.1} parent=1 // pred_check
      _
    $region207: #{tpc_forward.1} parent=1 // pred_check_branch
      %2328 = sbr.rel (0) target = $region209
    $region208: #{tpc_forward.1} parent=1 // pred_region
      _
    $region209: #{tpc_forward.1} parent=1 // pred_fallthru
      _
    %2329 = vsyncpa [#allocation3], 1
    %2330 = vsyncpa [#allocation5], 1
    %2331 = vsyncpa [#allocation8], 1
    %2332 = vsyncpa [#allocation11], 1
    %2333 = vsyncpa [#allocation14], 1
    %2334 = vsyncpa [#allocation17], 1
    %2335 = vsyncpa [#allocation20], 1
    %2336 = vsyncpa [#allocation23], 1
    %2337 = vsyncpa [#allocation26], 1
    %2338 = vsyncpa [#allocation29], 1
    %2339 = vsyncpa [#allocation32], 1

</llo_original>
